<compile_context>
chip_gen: v7x
topology: tpu7x:2x2x1
jax: 0.10.0
libtpu: 0.0.40
codegen_flags: <defaults>
</compile_context>

<pallas_src>
import functools

import jax
import jax.numpy as jnp
from jax import lax
from jax.experimental import pallas as pl
from jax.experimental.pallas import tpu as pltpu


def _convlstm_cell_kernel(x_ref, c_ref, w_ref, b_ref, peep_ref,
                          h_out_ref, c_out_ref, *, C_out, Wp, KH, KW):
    """One batch element of the ConvLSTM cell (full frame per grid step).

    x_ref   : (1, Rp, Cp)        f32  zero-padded [X | H_prev], rows flattened
                                      over the padded frame, channels padded to Cp
    c_ref   : (1, R, C_out)      f32  C_prev, padded-width row layout (R = H*Wp)
    w_ref   : (KH*KW, Cp, 4C)    bf16 conv weight, one slab per tap (resident)
    b_ref   : (1, 4C)            f32  conv bias
    peep_ref: (R, 3C)            bf16 [W_ci | W_cf | W_co], padded-width layout
    h_out   : (1, R, C_out)      x.dtype
    c_out   : (1, R, C_out)      f32  (cell state stays f32)
    """
    R = c_ref.shape[1]

    # ---- conv: KH*KW shifted taps, each one static slice + one MXU matmul.
    # bf16 operands, f32 accumulation.
    def tap(k):
        di, dj = divmod(k, KW)
        off = di * Wp + dj
        lhs = x_ref[0, off:off + R, :].astype(jnp.bfloat16)
        return jnp.dot(lhs, w_ref[k], preferred_element_type=jnp.float32)

    acc = tap(0)
    for k in range(1, KH * KW):
        acc = acc + tap(k)

    # ---- gate math: bias add at full 128-lane width, peephole terms as
    # per-gate 32-lane FMAs (no c_prev lane replication).
    pre = acc + b_ref[...]                               # (R, 4*C_out) f32
    c_prev = c_ref[0]                                    # (R, C_out)   f32
    peep = peep_ref[...].astype(jnp.float32)             # (R, 3*C_out) f32

    i_gate = jax.nn.sigmoid(pre[:, 0 * C_out:1 * C_out]
                            + peep[:, 0 * C_out:1 * C_out] * c_prev)
    f_gate = jax.nn.sigmoid(pre[:, 1 * C_out:2 * C_out]
                            + peep[:, 1 * C_out:2 * C_out] * c_prev)
    g_act = jnp.tanh(pre[:, 2 * C_out:3 * C_out])        # activation='tanh'
    c_new = f_gate * c_prev + i_gate * g_act
    o_gate = jax.nn.sigmoid(pre[:, 3 * C_out:4 * C_out]
                            + peep[:, 2 * C_out:3 * C_out] * c_new)
    h_new = o_gate * jnp.tanh(c_new)

    h_out_ref[0] = h_new.astype(h_out_ref.dtype)
    c_out_ref[0] = c_new                                  # keep cell state f32


def convlstm_cell_forward(x, h_prev, c_prev, conv_w, conv_b,
                          w_ci, w_cf, w_co, *, padding):
    """NHWC activations / HWIO conv weight / (H, W, C_out) peepholes."""
    N, H, W, C_in = x.shape
    C_out = h_prev.shape[-1]
    KH, KW, C_tot, C4 = conv_w.shape
    assert C_tot == C_in + C_out and C4 == 4 * C_out
    assert 2 * padding == KH - 1 == KW - 1, "assumes 'same'-size conv output"

    Wp = W + 2 * padding
    R = H * Wp                               # pixel rows, padded-width layout
    Cp = ((C_tot + 127) // 128) * 128        # lane-aligned contraction dim

    # rows the shifted taps may touch: R + (KH-1)*Wp + (KW-1)
    rows_needed = R + (KH - 1) * Wp + (KW - 1)
    Hp_tot = -(-rows_needed // Wp)           # total padded frame rows
    pad_top, pad_bot = padding, Hp_tot - H - padding

    # ---- glue on raw-size tensors only (no im2col slab in HBM):
    # concat channels, zero-pad spatially + channel-pad to Cp, flatten rows.
    xh = jnp.concatenate([x, h_prev], axis=-1)
    xflat = jnp.pad(xh, ((0, 0), (pad_top, pad_bot), (padding, padding),
                         (0, Cp - C_tot)))
    xflat = xflat.reshape(N, Hp_tot * Wp, Cp).astype(jnp.float32)

    # conv weight: (KH*KW, Cp, 4*C_out) bf16, resident across the batch loop.
    w_taps = jnp.pad(conv_w.reshape(KH * KW, C_tot, C4),
                     ((0, 0), (0, Cp - C_tot), (0, 0))).astype(jnp.bfloat16)
    bias2 = conv_b.reshape(1, C4).astype(jnp.float32)

    # peephole: only the non-zero [W_ci | W_cf | W_co] stream, bf16,
    # padded-width row layout so no in-kernel row compaction is needed.
    peep = jnp.concatenate([w_ci, w_cf, w_co], axis=-1)          # (H, W, 3C)
    peep = jnp.pad(peep, ((0, 0), (0, Wp - W), (0, 0)))
    peep = peep.reshape(R, 3 * C_out).astype(jnp.bfloat16)

    c_rows = jnp.pad(c_prev, ((0, 0), (0, 0), (0, Wp - W), (0, 0)))
    c_rows = c_rows.reshape(N, R, C_out).astype(jnp.float32)

    kernel = functools.partial(_convlstm_cell_kernel,
                               C_out=C_out, Wp=Wp, KH=KH, KW=KW)

    flops = 2 * N * KH * KW * R * Cp * C4 + 12 * N * R * C4
    transcend = 5 * N * R * C_out
    bytes_acc = (xflat.size * 4 + c_rows.size * 4 + w_taps.size * 2
                 + bias2.size * 4 + peep.size * 2
                 + N * R * C_out * (x.dtype.itemsize + 4))

    h2, c2 = pl.pallas_call(
        kernel,
        out_shape=(jax.ShapeDtypeStruct((N, R, C_out), x.dtype),
                   jax.ShapeDtypeStruct((N, R, C_out), jnp.float32)),
        grid_spec=pltpu.PrefetchScalarGridSpec(
            num_scalar_prefetch=0,
            grid=(N,),                                   # 2 parallel units (v7x 2 TCs)
            in_specs=[
                pl.BlockSpec((1, Hp_tot * Wp, Cp), lambda b: (b, 0, 0)),   # xh rows
                pl.BlockSpec((1, R, C_out), lambda b: (b, 0, 0)),          # C_prev
                pl.BlockSpec((KH * KW, Cp, C4), lambda b: (0, 0, 0)),      # weight
                pl.BlockSpec((1, C4), lambda b: (0, 0)),                   # bias
                pl.BlockSpec((R, 3 * C_out), lambda b: (0, 0)),            # peephole
            ],
            out_specs=[
                pl.BlockSpec((1, R, C_out), lambda b: (b, 0, 0)),
                pl.BlockSpec((1, R, C_out), lambda b: (b, 0, 0)),
            ],
        ),
        compiler_params=pltpu.CompilerParams(
            dimension_semantics=("parallel",),
            vmem_limit_bytes=32 * 1024 * 1024),
        cost_estimate=pl.CostEstimate(flops=flops, transcendentals=transcend,
                                      bytes_accessed=bytes_acc),
    )(xflat, c_rows, w_taps, bias2, peep)

    # drop the padded-width garbage columns; keep the cell state in f32.
    h_new = h2.reshape(N, H, Wp, C_out)[:, :, :W, :]
    c_new = c2.reshape(N, H, Wp, C_out)[:, :, :W, :]
    return h_new, c_new


def convlstm_cell_reference(x, h_prev, c_prev, conv_w, conv_b,
                            w_ci, w_cf, w_co, *, padding, operand_dtype=None):
    """Pure-JAX reference matching the PyTorch forward (NHWC layout).

    If operand_dtype is given, the conv operands AND the multiplicative
    peephole weights are rounded through that dtype (mirroring the kernel's
    bf16 operands); all accumulation and gate math stays f32.
    """
    if operand_dtype is None:
        rnd = lambda a: a
    else:
        rnd = lambda a: a.astype(operand_dtype).astype(jnp.float32)
    xh = jnp.concatenate([x, h_prev], axis=-1)
    conv_out = lax.conv_general_dilated(
        rnd(xh), rnd(conv_w), window_strides=(1, 1),
        padding=[(padding, padding), (padding, padding)],
        dimension_numbers=("NHWC", "HWIO", "NHWC"),
        precision=lax.Precision.HIGHEST) + conv_b
    C_out = h_prev.shape[-1]
    i_conv = conv_out[..., 0 * C_out:1 * C_out]
    f_conv = conv_out[..., 1 * C_out:2 * C_out]
    g_conv = conv_out[..., 2 * C_out:3 * C_out]
    o_conv = conv_out[..., 3 * C_out:4 * C_out]
    input_gate = jax.nn.sigmoid(i_conv + rnd(w_ci) * c_prev)
    forget_gate = jax.nn.sigmoid(f_conv + rnd(w_cf) * c_prev)
    c_new = forget_gate * c_prev + input_gate * jnp.tanh(g_conv)
    output_gate = jax.nn.sigmoid(o_conv + rnd(w_co) * c_new)
    h_new = output_gate * jnp.tanh(c_new)
    return h_new, c_new


if __name__ == "__main__":
    # module hyper-params (ConvLSTMCell.__init__ shapes)
    N = 2
    C_IN = 4          # in_channels
    C_OUT = 32        # out_channels
    H = W = 16        # frame_size = (16, 16)
    K = 3             # kernel_size
    PAD = 1           # padding

    key = jax.random.PRNGKey(0)
    kx, kh, kc, kw, kb, k1, k2, k3 = jax.random.split(key, 8)

    # inputs (NHWC; the PyTorch NCHW equivalent is x.transpose(0, 3, 1, 2))
    x = jax.random.normal(kx, (N, H, W, C_IN), jnp.float32)
    h_prev = jax.random.normal(kh, (N, H, W, C_OUT), jnp.float32)
    c_prev = jax.random.normal(kc, (N, H, W, C_OUT), jnp.float32)

    # nn.Conv2d(in=C_IN+C_OUT, out=4*C_OUT, k=3, padding=1) in HWIO layout
    conv_w = 0.1 * jax.random.normal(kw, (K, K, C_IN + C_OUT, 4 * C_OUT),
                                     jnp.float32)
    conv_b = 0.1 * jax.random.normal(kb, (4 * C_OUT,), jnp.float32)
    # peephole params (PyTorch (C_OUT, H, W); stored (H, W, C_OUT))
    w_ci = 0.1 * jax.random.normal(k1, (H, W, C_OUT), jnp.float32)
    w_cf = 0.1 * jax.random.normal(k2, (H, W, C_OUT), jnp.float32)
    w_co = 0.1 * jax.random.normal(k3, (H, W, C_OUT), jnp.float32)

    h_new, c_new = convlstm_cell_forward(
        x, h_prev, c_prev, conv_w, conv_b, w_ci, w_cf, w_co, padding=PAD)
    jax.block_until_ready((h_new, c_new))

    # tight check: reference with the same bf16-rounded operands (f32 accum)
    h_bf, c_bf = convlstm_cell_reference(
        x, h_prev, c_prev, conv_w, conv_b, w_ci, w_cf, w_co, padding=PAD,
        operand_dtype=jnp.bfloat16)
    assert jnp.allclose(h_new, h_bf, atol=2e-3, rtol=2e-3)
    assert jnp.allclose(c_new, c_bf, atol=2e-3, rtol=2e-3)

    # loose check: pure-f32 module math (bf16 MXU operands => loosened tol)
    h_ref, c_ref = convlstm_cell_reference(
        x, h_prev, c_prev, conv_w, conv_b, w_ci, w_cf, w_co, padding=PAD)
    assert jnp.allclose(h_new, h_ref, atol=7.5e-2, rtol=7.5e-2)
    assert jnp.allclose(c_new, c_ref, atol=7.5e-2, rtol=7.5e-2)

    print("KERNEL_OK")
</pallas_src>

<mosaic_0001>
module attributes {stable_mosaic.version = 11 : i64} {
  func.func @_convlstm_cell_kernel(%arg0: i32, %arg1: memref<1x342x128xf32, #tpu.memory_space<vmem>>, %arg2: memref<1x288x32xf32, #tpu.memory_space<vmem>>, %arg3: memref<9x128x128xbf16, #tpu.memory_space<vmem>>, %arg4: memref<1x128xf32, #tpu.memory_space<vmem>>, %arg5: memref<288x96xbf16, #tpu.memory_space<vmem>>, %arg6: memref<1x288x32xf32, #tpu.memory_space<vmem>>, %arg7: memref<1x288x32xf32, #tpu.memory_space<vmem>>) attributes {dimension_semantics = [#tpu.dimension_semantics<parallel>], iteration_bounds = array<i64: 2>, scalar_prefetch = 0 : i64, scratch_operands = 0 : i64, tpu.core_type = #tpu.core_type<tc>, window_params = [{transform_indices = @transform_0, window_bounds = array<i64: 1, 342, 128>}, {transform_indices = @transform_1, window_bounds = array<i64: 1, 288, 32>}, {pipeline_mode = #tpu.pipeline_mode<synchronous>, transform_indices = @transform_2, window_bounds = array<i64: 9, 128, 128>}, {pipeline_mode = #tpu.pipeline_mode<synchronous>, transform_indices = @transform_3, window_bounds = array<i64: 1, 128>}, {pipeline_mode = #tpu.pipeline_mode<synchronous>, transform_indices = @transform_4, window_bounds = array<i64: 288, 96>}, {transform_indices = @transform_5, window_bounds = array<i64: 1, 288, 32>}, {transform_indices = @transform_6, window_bounds = array<i64: 1, 288, 32>}]} {
    %c0 = arith.constant 0 : index
    %c0_0 = arith.constant 0 : index
    %c0_1 = arith.constant 0 : index
    %0 = vector.load %arg1[%c0, %c0_0, %c0_1] : memref<1x342x128xf32, #tpu.memory_space<vmem>>, vector<1x288x128xf32>
    %1 = vector.shape_cast %0 : vector<1x288x128xf32> to vector<288x128xf32>
    %2 = arith.truncf %1 : vector<288x128xf32> to vector<288x128xbf16>
    %c0_2 = arith.constant 0 : index
    %c0_3 = arith.constant 0 : index
    %c0_4 = arith.constant 0 : index
    %3 = vector.load %arg3[%c0_2, %c0_3, %c0_4] : memref<9x128x128xbf16, #tpu.memory_space<vmem>>, vector<1x128x128xbf16>
    %4 = vector.shape_cast %3 : vector<1x128x128xbf16> to vector<128x128xbf16>
    %cst = arith.constant dense<0.000000e+00> : vector<288x128xf32>
    %5 = tpu.matmul %2, %4, %cst {dimension_numbers = #tpu.dot_dimension_numbers<[1], [0], [0], [1], [0, 0, 1, 1], [], []>} : vector<288x128xbf16>, vector<128x128xbf16>, vector<288x128xf32> -> vector<288x128xf32>
    %c0_5 = arith.constant 0 : index
    %c1 = arith.constant 1 : index
    %c0_6 = arith.constant 0 : index
    %6 = vector.load %arg1[%c0_5, %c1, %c0_6] : memref<1x342x128xf32, #tpu.memory_space<vmem>>, vector<1x288x128xf32>
    %7 = vector.shape_cast %6 : vector<1x288x128xf32> to vector<288x128xf32>
    %8 = arith.truncf %7 : vector<288x128xf32> to vector<288x128xbf16>
    %c1_7 = arith.constant 1 : index
    %c0_8 = arith.constant 0 : index
    %c0_9 = arith.constant 0 : index
    %9 = vector.load %arg3[%c1_7, %c0_8, %c0_9] : memref<9x128x128xbf16, #tpu.memory_space<vmem>>, vector<1x128x128xbf16>
    %10 = vector.shape_cast %9 : vector<1x128x128xbf16> to vector<128x128xbf16>
    %cst_10 = arith.constant dense<0.000000e+00> : vector<288x128xf32>
    %11 = tpu.matmul %8, %10, %cst_10 {dimension_numbers = #tpu.dot_dimension_numbers<[1], [0], [0], [1], [0, 0, 1, 1], [], []>} : vector<288x128xbf16>, vector<128x128xbf16>, vector<288x128xf32> -> vector<288x128xf32>
    %12 = arith.addf %5, %11 : vector<288x128xf32>
    %c0_11 = arith.constant 0 : index
    %c2 = arith.constant 2 : index
    %c0_12 = arith.constant 0 : index
    %13 = vector.load %arg1[%c0_11, %c2, %c0_12] : memref<1x342x128xf32, #tpu.memory_space<vmem>>, vector<1x288x128xf32>
    %14 = vector.shape_cast %13 : vector<1x288x128xf32> to vector<288x128xf32>
    %15 = arith.truncf %14 : vector<288x128xf32> to vector<288x128xbf16>
    %c2_13 = arith.constant 2 : index
    %c0_14 = arith.constant 0 : index
    %c0_15 = arith.constant 0 : index
    %16 = vector.load %arg3[%c2_13, %c0_14, %c0_15] : memref<9x128x128xbf16, #tpu.memory_space<vmem>>, vector<1x128x128xbf16>
    %17 = vector.shape_cast %16 : vector<1x128x128xbf16> to vector<128x128xbf16>
    %cst_16 = arith.constant dense<0.000000e+00> : vector<288x128xf32>
    %18 = tpu.matmul %15, %17, %cst_16 {dimension_numbers = #tpu.dot_dimension_numbers<[1], [0], [0], [1], [0, 0, 1, 1], [], []>} : vector<288x128xbf16>, vector<128x128xbf16>, vector<288x128xf32> -> vector<288x128xf32>
    %19 = arith.addf %12, %18 : vector<288x128xf32>
    %c0_17 = arith.constant 0 : index
    %c18 = arith.constant 18 : index
    %c0_18 = arith.constant 0 : index
    %20 = vector.load %arg1[%c0_17, %c18, %c0_18] : memref<1x342x128xf32, #tpu.memory_space<vmem>>, vector<1x288x128xf32>
    %21 = vector.shape_cast %20 : vector<1x288x128xf32> to vector<288x128xf32>
    %22 = arith.truncf %21 : vector<288x128xf32> to vector<288x128xbf16>
    %c3 = arith.constant 3 : index
    %c0_19 = arith.constant 0 : index
    %c0_20 = arith.constant 0 : index
    %23 = vector.load %arg3[%c3, %c0_19, %c0_20] : memref<9x128x128xbf16, #tpu.memory_space<vmem>>, vector<1x128x128xbf16>
    %24 = vector.shape_cast %23 : vector<1x128x128xbf16> to vector<128x128xbf16>
    %cst_21 = arith.constant dense<0.000000e+00> : vector<288x128xf32>
    %25 = tpu.matmul %22, %24, %cst_21 {dimension_numbers = #tpu.dot_dimension_numbers<[1], [0], [0], [1], [0, 0, 1, 1], [], []>} : vector<288x128xbf16>, vector<128x128xbf16>, vector<288x128xf32> -> vector<288x128xf32>
    %26 = arith.addf %19, %25 : vector<288x128xf32>
    %c0_22 = arith.constant 0 : index
    %c19 = arith.constant 19 : index
    %c0_23 = arith.constant 0 : index
    %27 = vector.load %arg1[%c0_22, %c19, %c0_23] : memref<1x342x128xf32, #tpu.memory_space<vmem>>, vector<1x288x128xf32>
    %28 = vector.shape_cast %27 : vector<1x288x128xf32> to vector<288x128xf32>
    %29 = arith.truncf %28 : vector<288x128xf32> to vector<288x128xbf16>
    %c4 = arith.constant 4 : index
    %c0_24 = arith.constant 0 : index
    %c0_25 = arith.constant 0 : index
    %30 = vector.load %arg3[%c4, %c0_24, %c0_25] : memref<9x128x128xbf16, #tpu.memory_space<vmem>>, vector<1x128x128xbf16>
    %31 = vector.shape_cast %30 : vector<1x128x128xbf16> to vector<128x128xbf16>
    %cst_26 = arith.constant dense<0.000000e+00> : vector<288x128xf32>
    %32 = tpu.matmul %29, %31, %cst_26 {dimension_numbers = #tpu.dot_dimension_numbers<[1], [0], [0], [1], [0, 0, 1, 1], [], []>} : vector<288x128xbf16>, vector<128x128xbf16>, vector<288x128xf32> -> vector<288x128xf32>
    %33 = arith.addf %26, %32 : vector<288x128xf32>
    %c0_27 = arith.constant 0 : index
    %c20 = arith.constant 20 : index
    %c0_28 = arith.constant 0 : index
    %34 = vector.load %arg1[%c0_27, %c20, %c0_28] : memref<1x342x128xf32, #tpu.memory_space<vmem>>, vector<1x288x128xf32>
    %35 = vector.shape_cast %34 : vector<1x288x128xf32> to vector<288x128xf32>
    %36 = arith.truncf %35 : vector<288x128xf32> to vector<288x128xbf16>
    %c5 = arith.constant 5 : index
    %c0_29 = arith.constant 0 : index
    %c0_30 = arith.constant 0 : index
    %37 = vector.load %arg3[%c5, %c0_29, %c0_30] : memref<9x128x128xbf16, #tpu.memory_space<vmem>>, vector<1x128x128xbf16>
    %38 = vector.shape_cast %37 : vector<1x128x128xbf16> to vector<128x128xbf16>
    %cst_31 = arith.constant dense<0.000000e+00> : vector<288x128xf32>
    %39 = tpu.matmul %36, %38, %cst_31 {dimension_numbers = #tpu.dot_dimension_numbers<[1], [0], [0], [1], [0, 0, 1, 1], [], []>} : vector<288x128xbf16>, vector<128x128xbf16>, vector<288x128xf32> -> vector<288x128xf32>
    %40 = arith.addf %33, %39 : vector<288x128xf32>
    %c0_32 = arith.constant 0 : index
    %c36 = arith.constant 36 : index
    %c0_33 = arith.constant 0 : index
    %41 = vector.load %arg1[%c0_32, %c36, %c0_33] : memref<1x342x128xf32, #tpu.memory_space<vmem>>, vector<1x288x128xf32>
    %42 = vector.shape_cast %41 : vector<1x288x128xf32> to vector<288x128xf32>
    %43 = arith.truncf %42 : vector<288x128xf32> to vector<288x128xbf16>
    %c6 = arith.constant 6 : index
    %c0_34 = arith.constant 0 : index
    %c0_35 = arith.constant 0 : index
    %44 = vector.load %arg3[%c6, %c0_34, %c0_35] : memref<9x128x128xbf16, #tpu.memory_space<vmem>>, vector<1x128x128xbf16>
    %45 = vector.shape_cast %44 : vector<1x128x128xbf16> to vector<128x128xbf16>
    %cst_36 = arith.constant dense<0.000000e+00> : vector<288x128xf32>
    %46 = tpu.matmul %43, %45, %cst_36 {dimension_numbers = #tpu.dot_dimension_numbers<[1], [0], [0], [1], [0, 0, 1, 1], [], []>} : vector<288x128xbf16>, vector<128x128xbf16>, vector<288x128xf32> -> vector<288x128xf32>
    %47 = arith.addf %40, %46 : vector<288x128xf32>
    %c0_37 = arith.constant 0 : index
    %c37 = arith.constant 37 : index
    %c0_38 = arith.constant 0 : index
    %48 = vector.load %arg1[%c0_37, %c37, %c0_38] : memref<1x342x128xf32, #tpu.memory_space<vmem>>, vector<1x288x128xf32>
    %49 = vector.shape_cast %48 : vector<1x288x128xf32> to vector<288x128xf32>
    %50 = arith.truncf %49 : vector<288x128xf32> to vector<288x128xbf16>
    %c7 = arith.constant 7 : index
    %c0_39 = arith.constant 0 : index
    %c0_40 = arith.constant 0 : index
    %51 = vector.load %arg3[%c7, %c0_39, %c0_40] : memref<9x128x128xbf16, #tpu.memory_space<vmem>>, vector<1x128x128xbf16>
    %52 = vector.shape_cast %51 : vector<1x128x128xbf16> to vector<128x128xbf16>
    %cst_41 = arith.constant dense<0.000000e+00> : vector<288x128xf32>
    %53 = tpu.matmul %50, %52, %cst_41 {dimension_numbers = #tpu.dot_dimension_numbers<[1], [0], [0], [1], [0, 0, 1, 1], [], []>} : vector<288x128xbf16>, vector<128x128xbf16>, vector<288x128xf32> -> vector<288x128xf32>
    %54 = arith.addf %47, %53 : vector<288x128xf32>
    %c0_42 = arith.constant 0 : index
    %c38 = arith.constant 38 : index
    %c0_43 = arith.constant 0 : index
    %55 = vector.load %arg1[%c0_42, %c38, %c0_43] : memref<1x342x128xf32, #tpu.memory_space<vmem>>, vector<1x288x128xf32>
    %56 = vector.shape_cast %55 : vector<1x288x128xf32> to vector<288x128xf32>
    %57 = arith.truncf %56 : vector<288x128xf32> to vector<288x128xbf16>
    %c8 = arith.constant 8 : index
    %c0_44 = arith.constant 0 : index
    %c0_45 = arith.constant 0 : index
    %58 = vector.load %arg3[%c8, %c0_44, %c0_45] : memref<9x128x128xbf16, #tpu.memory_space<vmem>>, vector<1x128x128xbf16>
    %59 = vector.shape_cast %58 : vector<1x128x128xbf16> to vector<128x128xbf16>
    %cst_46 = arith.constant dense<0.000000e+00> : vector<288x128xf32>
    %60 = tpu.matmul %57, %59, %cst_46 {dimension_numbers = #tpu.dot_dimension_numbers<[1], [0], [0], [1], [0, 0, 1, 1], [], []>} : vector<288x128xbf16>, vector<128x128xbf16>, vector<288x128xf32> -> vector<288x128xf32>
    %61 = arith.addf %54, %60 : vector<288x128xf32>
    %c0_47 = arith.constant 0 : index
    %c0_48 = arith.constant 0 : index
    %62 = vector.load %arg4[%c0_47, %c0_48] : memref<1x128xf32, #tpu.memory_space<vmem>>, vector<1x128xf32>
    %63 = vector.broadcast %62 : vector<1x128xf32> to vector<288x128xf32>
    %64 = arith.addf %61, %63 : vector<288x128xf32>
    %c0_49 = arith.constant 0 : index
    %c0_50 = arith.constant 0 : index
    %c0_51 = arith.constant 0 : index
    %65 = vector.load %arg2[%c0_49, %c0_50, %c0_51] : memref<1x288x32xf32, #tpu.memory_space<vmem>>, vector<1x288x32xf32>
    %66 = vector.shape_cast %65 : vector<1x288x32xf32> to vector<288x32xf32>
    %c0_52 = arith.constant 0 : index
    %c0_53 = arith.constant 0 : index
    %67 = vector.load %arg5[%c0_52, %c0_53] : memref<288x96xbf16, #tpu.memory_space<vmem>>, vector<288x96xbf16>
    %68 = arith.extf %67 : vector<288x96xbf16> to vector<288x96xf32>
    %69 = vector.extract_strided_slice %64 {offsets = [0, 0], sizes = [288, 32], strides = [1, 1]} : vector<288x128xf32> to vector<288x32xf32>
    %70 = vector.extract_strided_slice %68 {offsets = [0, 0], sizes = [288, 32], strides = [1, 1]} : vector<288x96xf32> to vector<288x32xf32>
    %71 = arith.mulf %70, %66 : vector<288x32xf32>
    %72 = arith.addf %69, %71 : vector<288x32xf32>
    %73 = arith.negf %72 : vector<288x32xf32>
    %74 = math.exp %73 : vector<288x32xf32>
    %cst_54 = arith.constant 1.000000e+00 : f32
    %75 = vector.broadcast %cst_54 : f32 to vector<288x32xf32>
    %76 = arith.addf %75, %74 : vector<288x32xf32>
    %77 = arith.divf %75, %76 : vector<288x32xf32>
    %78 = vector.extract_strided_slice %64 {offsets = [0, 32], sizes = [288, 32], strides = [1, 1]} : vector<288x128xf32> to vector<288x32xf32>
    %79 = vector.extract_strided_slice %68 {offsets = [0, 32], sizes = [288, 32], strides = [1, 1]} : vector<288x96xf32> to vector<288x32xf32>
    %80 = arith.mulf %79, %66 : vector<288x32xf32>
    %81 = arith.addf %78, %80 : vector<288x32xf32>
    %82 = arith.negf %81 : vector<288x32xf32>
    %83 = math.exp %82 : vector<288x32xf32>
    %cst_55 = arith.constant 1.000000e+00 : f32
    %84 = vector.broadcast %cst_55 : f32 to vector<288x32xf32>
    %85 = arith.addf %84, %83 : vector<288x32xf32>
    %86 = arith.divf %84, %85 : vector<288x32xf32>
    %87 = vector.extract_strided_slice %64 {offsets = [0, 64], sizes = [288, 32], strides = [1, 1]} : vector<288x128xf32> to vector<288x32xf32>
    %88 = math.tanh %87 : vector<288x32xf32>
    %89 = arith.mulf %86, %66 : vector<288x32xf32>
    %90 = arith.mulf %77, %88 : vector<288x32xf32>
    %91 = arith.addf %89, %90 : vector<288x32xf32>
    %92 = vector.extract_strided_slice %64 {offsets = [0, 96], sizes = [288, 32], strides = [1, 1]} : vector<288x128xf32> to vector<288x32xf32>
    %93 = vector.extract_strided_slice %68 {offsets = [0, 64], sizes = [288, 32], strides = [1, 1]} : vector<288x96xf32> to vector<288x32xf32>
    %94 = arith.mulf %93, %91 : vector<288x32xf32>
    %95 = arith.addf %92, %94 : vector<288x32xf32>
    %96 = arith.negf %95 : vector<288x32xf32>
    %97 = math.exp %96 : vector<288x32xf32>
    %cst_56 = arith.constant 1.000000e+00 : f32
    %98 = vector.broadcast %cst_56 : f32 to vector<288x32xf32>
    %99 = arith.addf %98, %97 : vector<288x32xf32>
    %100 = arith.divf %98, %99 : vector<288x32xf32>
    %101 = math.tanh %91 : vector<288x32xf32>
    %102 = arith.mulf %100, %101 : vector<288x32xf32>
    %c0_57 = arith.constant 0 : index
    %c0_58 = arith.constant 0 : index
    %c0_59 = arith.constant 0 : index
    %103 = vector.load %arg6[%c0_57, %c0_58, %c0_59] : memref<1x288x32xf32, #tpu.memory_space<vmem>>, vector<1x288x32xf32>
    %104 = vector.shape_cast %103 : vector<1x288x32xf32> to vector<288x32xf32>
    %105 = vector.shape_cast %102 : vector<288x32xf32> to vector<1x288x32xf32>
    tpu.vector_store %arg6[%c0_57, %c0_58, %c0_59], %105 {strides = array<i32>} : memref<1x288x32xf32, #tpu.memory_space<vmem>>, vector<1x288x32xf32>,
    %c0_60 = arith.constant 0 : index
    %c0_61 = arith.constant 0 : index
    %c0_62 = arith.constant 0 : index
    %106 = vector.load %arg7[%c0_60, %c0_61, %c0_62] : memref<1x288x32xf32, #tpu.memory_space<vmem>>, vector<1x288x32xf32>
    %107 = vector.shape_cast %106 : vector<1x288x32xf32> to vector<288x32xf32>
    %108 = vector.shape_cast %91 : vector<288x32xf32> to vector<1x288x32xf32>
    tpu.vector_store %arg7[%c0_60, %c0_61, %c0_62], %108 {strides = array<i32>} : memref<1x288x32xf32, #tpu.memory_space<vmem>>, vector<1x288x32xf32>,
    return
  }
  func.func @transform_0(%arg0: i32) -> (i32, i32, i32) {
    %c0_i32 = arith.constant 0 : i32
    %c0_i32_0 = arith.constant 0 : i32
    %c0_i32_1 = arith.constant 0 : i32
    return %arg0, %c0_i32, %c0_i32_0 : i32, i32, i32
  }
  func.func @transform_1(%arg0: i32) -> (i32, i32, i32) {
    %c0_i32 = arith.constant 0 : i32
    %c0_i32_0 = arith.constant 0 : i32
    %c0_i32_1 = arith.constant 0 : i32
    return %arg0, %c0_i32, %c0_i32_0 : i32, i32, i32
  }
  func.func @transform_2(%arg0: i32) -> (i32, i32, i32) {
    %c0_i32 = arith.constant 0 : i32
    %c0_i32_0 = arith.constant 0 : i32
    %c0_i32_1 = arith.constant 0 : i32
    %c0_i32_2 = arith.constant 0 : i32
    return %c0_i32, %c0_i32_0, %c0_i32_1 : i32, i32, i32
  }
  func.func @transform_3(%arg0: i32) -> (i32, i32) {
    %c0_i32 = arith.constant 0 : i32
    %c0_i32_0 = arith.constant 0 : i32
    %c0_i32_1 = arith.constant 0 : i32
    return %c0_i32, %c0_i32_0 : i32, i32
  }
  func.func @transform_4(%arg0: i32) -> (i32, i32) {
    %c0_i32 = arith.constant 0 : i32
    %c0_i32_0 = arith.constant 0 : i32
    %c0_i32_1 = arith.constant 0 : i32
    return %c0_i32, %c0_i32_0 : i32, i32
  }
  func.func @transform_5(%arg0: i32) -> (i32, i32, i32) {
    %c0_i32 = arith.constant 0 : i32
    %c0_i32_0 = arith.constant 0 : i32
    %c0_i32_1 = arith.constant 0 : i32
    return %arg0, %c0_i32, %c0_i32_0 : i32, i32, i32
  }
  func.func @transform_6(%arg0: i32) -> (i32, i32, i32) {
    %c0_i32 = arith.constant 0 : i32
    %c0_i32_0 = arith.constant 0 : i32
    %c0_i32_1 = arith.constant 0 : i32
    return %arg0, %c0_i32, %c0_i32_0 : i32, i32, i32
  }
}

</mosaic_0001>

<llo_original>
// kernel: tpu_custom_call.1
$region0: #{tpu_custom_call.1}
  #allocation0 [shape = 'u32[]', space=smem, size = 0x4, offset = 0x4, fixed_abs, tag = 'smem constant byte address 0x4 - core index']
  #allocation1 [shape = 'u32[144,128]{1,0:T(1,128)}', space=vmem, size = 0x12000, scoped, tag = 'internal scratch']
  %s0 = inlined_call_operand.vmem [shape: f32[2,342,128], index: 0, kind: input, shape index: {}]
  %s1 = inlined_call_operand.vmem [shape: f32[2,288,32], index: 1, kind: input, shape index: {}]
  %s2 = inlined_call_operand.vmem [shape: bf16[9,128,128], index: 2, kind: input, shape index: {}]
  %s3 = inlined_call_operand.vmem [shape: f32[1,128], index: 3, kind: input, shape index: {}]
  %s4 = inlined_call_operand.vmem [shape: bf16[288,96], index: 4, kind: input, shape index: {}]
  %s5 = inlined_call_operand.vmem [shape: f32[2,288,32], index: 5, kind: output, shape index: {0}]
  %s6 = inlined_call_operand.vmem [shape: f32[2,288,32], index: 6, kind: output, shape index: {1}]
  %7 = xla_tuple %s5, %s6
  %s8 = sld [smem:[#allocation0]]
  $region61: #{tpu_custom_call.1} parent=0
    _
  %s10 = ssub.s32 1, %s8
  %s11 = scalar_select 0, %s10, %s8
  loop: start=0, step=1, limit=4
  $region2: #{tpu_custom_call.1} parent=0 // loop_pre_header
    _
  $region3: #{tpu_custom_call.1} parent=0 // loop_header
    %s13 = sphi 0, %s17
    %p14 = scmp.ge.s32.totalorder %s13, 4
    %s23 = sphi 0, %s25
    %s26 = sphi 0, %s23
    %s27 = sphi 0, %s26
    %s43 = sphi 0, %s27
    %s49 = sphi 0, %s51
    %s52 = sphi 0, %s49
    %s53 = sphi 0, %s52
    %s69 = sphi 0, %s53
    %s73 = sphi 0, %s73
    %s75 = sphi 0, %s73
    %s76 = sphi 0, %s75
    %s90 = sphi 0, %s76
    %s94 = sphi 0, %s94
    %s96 = sphi 0, %s94
    %s97 = sphi 0, %s96
    %s111 = sphi 0, %s97
    %s115 = sphi 0, %s115
    %s117 = sphi 0, %s115
    %s118 = sphi 0, %s117
    %s132 = sphi 0, %s118
    %s138 = sphi 0, %s140
    %s141 = sphi 0, %s138
    %s142 = sphi 0, %s141
    %s158 = sphi 0, %s142
    %s164 = sphi 0, %s166
    %s167 = sphi 0, %s164
    %s168 = sphi 0, %s167
    %s184 = sphi 0, %s168
  $region4: #{tpu_custom_call.1} parent=0 // loop_header_branch
    %16 = sbr.rel (%p14) target = $region8
  $region5: #{tpu_custom_call.1} parent=0 // loop_body
    %s18 = ssub.s32 %s13, 1
    %s19 = ssub.s32 %s13, 2
    %s20 = sadd.s32 %s13, 1
    %s21 = ssub.s32 %s13, %s20
    %p22 = scmp.eq.s32.totalorder %s21, 0
    %s24 = sadd.s32 %s23, 1
    %s25 = scalar_select %p22, %s23, %s24
    %p28 = pneg %p22
    %p29 = scmp.eq.s32.totalorder %s13, 1
    %p30 = por %p28, %p29
    %p31 = scmp.ne.s32.totalorder %s23, %s26
    %p32 = scmp.eq.s32.totalorder %s13, 0
    %p33 = por %p31, %p32
    %p34 = scmp.ne.s32.totalorder %s23, %s26
    %p35 = scmp.eq.s32.totalorder %s18, 1
    %p36 = por %p34, %p35
    %p37 = scmp.ne.s32.totalorder %s26, %s27
    %p38 = scmp.eq.s32.totalorder %s18, 0
    %p39 = por %p37, %p38
    %p40 = scmp.ne.s32.totalorder %s26, %s27
    %p41 = scmp.eq.s32.totalorder %s19, 1
    %p42 = por %p40, %p41
    %p44 = scmp.ne.s32.totalorder %s27, %s43
    %p45 = scmp.eq.s32.totalorder %s19, 0
    %p46 = por %p44, %p45
    %s47 = ssub.s32 %s13, %s20
    %p48 = scmp.eq.s32.totalorder %s47, 0
    %s50 = sadd.s32 %s49, 1
    %s51 = scalar_select %p48, %s49, %s50
    %p54 = pneg %p48
    %p55 = scmp.eq.s32.totalorder %s13, 1
    %p56 = por %p54, %p55
    %p57 = scmp.ne.s32.totalorder %s49, %s52
    %p58 = scmp.eq.s32.totalorder %s13, 0
    %p59 = por %p57, %p58
    %p60 = scmp.ne.s32.totalorder %s49, %s52
    %p61 = scmp.eq.s32.totalorder %s18, 1
    %p62 = por %p60, %p61
    %p63 = scmp.ne.s32.totalorder %s52, %s53
    %p64 = scmp.eq.s32.totalorder %s18, 0
    %p65 = por %p63, %p64
    %p66 = scmp.ne.s32.totalorder %s52, %s53
    %p67 = scmp.eq.s32.totalorder %s19, 1
    %p68 = por %p66, %p67
    %p70 = scmp.ne.s32.totalorder %s53, %s69
    %p71 = scmp.eq.s32.totalorder %s19, 0
    %p72 = por %p70, %p71
    %s74 = sadd.s32 %s73, 1
    %p77 = scmp.eq.s32.totalorder %s13, 1
    %p78 = scmp.ne.s32.totalorder %s73, %s75
    %p79 = scmp.eq.s32.totalorder %s13, 0
    %p80 = por %p78, %p79
    %p81 = scmp.ne.s32.totalorder %s73, %s75
    %p82 = scmp.eq.s32.totalorder %s18, 1
    %p83 = por %p81, %p82
    %p84 = scmp.ne.s32.totalorder %s75, %s76
    %p85 = scmp.eq.s32.totalorder %s18, 0
    %p86 = por %p84, %p85
    %p87 = scmp.ne.s32.totalorder %s75, %s76
    %p88 = scmp.eq.s32.totalorder %s19, 1
    %p89 = por %p87, %p88
    %p91 = scmp.ne.s32.totalorder %s76, %s90
    %p92 = scmp.eq.s32.totalorder %s19, 0
    %p93 = por %p91, %p92
    %s95 = sadd.s32 %s94, 1
    %p98 = scmp.eq.s32.totalorder %s13, 1
    %p99 = scmp.ne.s32.totalorder %s94, %s96
    %p100 = scmp.eq.s32.totalorder %s13, 0
    %p101 = por %p99, %p100
    %p102 = scmp.ne.s32.totalorder %s94, %s96
    %p103 = scmp.eq.s32.totalorder %s18, 1
    %p104 = por %p102, %p103
    %p105 = scmp.ne.s32.totalorder %s96, %s97
    %p106 = scmp.eq.s32.totalorder %s18, 0
    %p107 = por %p105, %p106
    %p108 = scmp.ne.s32.totalorder %s96, %s97
    %p109 = scmp.eq.s32.totalorder %s19, 1
    %p110 = por %p108, %p109
    %p112 = scmp.ne.s32.totalorder %s97, %s111
    %p113 = scmp.eq.s32.totalorder %s19, 0
    %p114 = por %p112, %p113
    %s116 = sadd.s32 %s115, 1
    %p119 = scmp.eq.s32.totalorder %s13, 1
    %p120 = scmp.ne.s32.totalorder %s115, %s117
    %p121 = scmp.eq.s32.totalorder %s13, 0
    %p122 = por %p120, %p121
    %p123 = scmp.ne.s32.totalorder %s115, %s117
    %p124 = scmp.eq.s32.totalorder %s18, 1
    %p125 = por %p123, %p124
    %p126 = scmp.ne.s32.totalorder %s117, %s118
    %p127 = scmp.eq.s32.totalorder %s18, 0
    %p128 = por %p126, %p127
    %p129 = scmp.ne.s32.totalorder %s117, %s118
    %p130 = scmp.eq.s32.totalorder %s19, 1
    %p131 = por %p129, %p130
    %p133 = scmp.ne.s32.totalorder %s118, %s132
    %p134 = scmp.eq.s32.totalorder %s19, 0
    %p135 = por %p133, %p134
    %s136 = ssub.s32 %s13, %s20
    %p137 = scmp.eq.s32.totalorder %s136, 0
    %s139 = sadd.s32 %s138, 1
    %s140 = scalar_select %p137, %s138, %s139
    %p143 = pneg %p137
    %p144 = scmp.eq.s32.totalorder %s13, 1
    %p145 = por %p143, %p144
    %p146 = scmp.ne.s32.totalorder %s138, %s141
    %p147 = scmp.eq.s32.totalorder %s13, 0
    %p148 = por %p146, %p147
    %p149 = scmp.ne.s32.totalorder %s138, %s141
    %p150 = scmp.eq.s32.totalorder %s18, 1
    %p151 = por %p149, %p150
    %p152 = scmp.ne.s32.totalorder %s141, %s142
    %p153 = scmp.eq.s32.totalorder %s18, 0
    %p154 = por %p152, %p153
    %p155 = scmp.ne.s32.totalorder %s141, %s142
    %p156 = scmp.eq.s32.totalorder %s19, 1
    %p157 = por %p155, %p156
    %p159 = scmp.ne.s32.totalorder %s142, %s158
    %p160 = scmp.eq.s32.totalorder %s19, 0
    %p161 = por %p159, %p160
    %s162 = ssub.s32 %s13, %s20
    %p163 = scmp.eq.s32.totalorder %s162, 0
    %s165 = sadd.s32 %s164, 1
    %s166 = scalar_select %p163, %s164, %s165
    %p169 = pneg %p163
    %p170 = scmp.eq.s32.totalorder %s13, 1
    %p171 = por %p169, %p170
    %p172 = scmp.ne.s32.totalorder %s164, %s167
    %p173 = scmp.eq.s32.totalorder %s13, 0
    %p174 = por %p172, %p173
    %p175 = scmp.ne.s32.totalorder %s164, %s167
    %p176 = scmp.eq.s32.totalorder %s18, 1
    %p177 = por %p175, %p176
    %p178 = scmp.ne.s32.totalorder %s167, %s168
    %p179 = scmp.eq.s32.totalorder %s18, 0
    %p180 = por %p178, %p179
    %p181 = scmp.ne.s32.totalorder %s167, %s168
    %p182 = scmp.eq.s32.totalorder %s19, 1
    %p183 = por %p181, %p182
    %p185 = scmp.ne.s32.totalorder %s168, %s184
    %p186 = scmp.eq.s32.totalorder %s19, 0
    %p187 = por %p185, %p186
    %p188 = scmp.le.s32.totalorder 1, %s13
    %p189 = scmp.lt.s32.totalorder %s13, 3
    %p190 = pnand %p188, %p189
    %p191 = pneg %p190
    // Predicated region
    $region9: #{tpu_custom_call.1} parent=5 // pred_check
      _
    $region10: #{tpu_custom_call.1} parent=5 // pred_check_branch
      %193 = sbr.rel (%p190) target = $region12
    $region11: #{tpu_custom_call.1} parent=5 // pred_region
      %s194 = ssub.s32 %s13, 1
      // Predicated region
      $region13: #{tpu_custom_call.1} parent=11 // pred_check
        %p195 = pneg %p86
      $region14: #{tpu_custom_call.1} parent=11 // pred_check_branch
        %197 = sbr.rel (%p195) target = $region16
      $region15: #{tpu_custom_call.1} parent=11 // pred_region
        _
      $region16: #{tpu_custom_call.1} parent=11 // pred_fallthru
        _
      // Predicated region
      $region17: #{tpu_custom_call.1} parent=11 // pred_check
        %p198 = pneg %p107
      $region18: #{tpu_custom_call.1} parent=11 // pred_check_branch
        %200 = sbr.rel (%p198) target = $region20
      $region19: #{tpu_custom_call.1} parent=11 // pred_region
        _
      $region20: #{tpu_custom_call.1} parent=11 // pred_fallthru
        _
      // Predicated region
      $region21: #{tpu_custom_call.1} parent=11 // pred_check
        %p201 = pneg %p128
      $region22: #{tpu_custom_call.1} parent=11 // pred_check_branch
        %203 = sbr.rel (%p201) target = $region24
      $region23: #{tpu_custom_call.1} parent=11 // pred_region
        _
      $region24: #{tpu_custom_call.1} parent=11 // pred_fallthru
        _
    $region12: #{tpu_custom_call.1} parent=5 // pred_fallthru
      _
    %p204 = scmp.lt.s32.totalorder %s13, 2
    // Predicated region
    $region25: #{tpu_custom_call.1} parent=5 // pred_check
      %p205 = pneg %p204
    $region26: #{tpu_custom_call.1} parent=5 // pred_check_branch
      %207 = sbr.rel (%p205) target = $region28
    $region27: #{tpu_custom_call.1} parent=5 // pred_region
      // Predicated region
      $region29: #{tpu_custom_call.1} parent=27 // pred_check
        %p208 = pneg %p33
      $region30: #{tpu_custom_call.1} parent=27 // pred_check_branch
        %210 = sbr.rel (%p208) target = $region32
      $region31: #{tpu_custom_call.1} parent=27 // pred_region
        %p211 = scmp.lt.s32.totalorder %s13, 1
        %s212 = scalar_select %p211, %s13, 1
        %s213 = smul.addr %s212, 43
        %s214 = smul.addr %s213, 8
        %s215 = scalar_lea.vmem %s0, %s214
      $region32: #{tpu_custom_call.1} parent=27 // pred_fallthru
        _
      // Predicated region
      $region33: #{tpu_custom_call.1} parent=27 // pred_check
        %p216 = pneg %p59
      $region34: #{tpu_custom_call.1} parent=27 // pred_check_branch
        %218 = sbr.rel (%p216) target = $region36
      $region35: #{tpu_custom_call.1} parent=27 // pred_region
        %p219 = scmp.lt.s32.totalorder %s13, 1
        %s220 = scalar_select %p219, %s13, 1
        %s221 = smul.addr %s220, 36
        %s222 = smul.addr %s221, 8
        %s223 = scalar_lea.vmem %s1, %s222
      $region36: #{tpu_custom_call.1} parent=27 // pred_fallthru
        _
    $region28: #{tpu_custom_call.1} parent=5 // pred_fallthru
      _
    %p224 = scmp.le.s32.totalorder 1, %s13
    %p225 = scmp.lt.s32.totalorder %s13, 3
    %p226 = pnand %p224, %p225
    %p227 = pneg %p226
    // Predicated region
    $region37: #{tpu_custom_call.1} parent=5 // pred_check
      _
    $region38: #{tpu_custom_call.1} parent=5 // pred_check_branch
      %229 = sbr.rel (%p226) target = $region40
    $region39: #{tpu_custom_call.1} parent=5 // pred_region
      %s230 = ssub.s32 %s13, 1
      %p231 = scmp.lt.s32.totalorder %s18, 1
      %s232 = scalar_select %p231, %s18, 1
      %s233 = smul.addr %s232, 43
      %s234 = smul.addr %s233, 8
      %s235 = scalar_lea.vmem %s0, %s234
      %p236 = pneg %p39
      %p237 = pneg %p36
      %p238 = scmp.lt.s32.totalorder %s18, 1
      %s239 = scalar_select %p238, %s18, 1
      %s240 = smul.addr %s239, 36
      %s241 = smul.addr %s240, 8
      %s242 = scalar_lea.vmem %s1, %s241
      %p243 = pneg %p65
      %p244 = pneg %p62
      %p245 = pneg %p86
      %p246 = pneg %p83
      %p247 = pneg %p107
      %p248 = pneg %p104
      %p249 = pneg %p128
      %p250 = pneg %p125
      %p251 = pneg %p154
      %p252 = pneg %p151
      %p253 = scmp.lt.s32.totalorder %s18, 1
      %s254 = scalar_select %p253, %s18, 1
      %s255 = smul.addr %s254, 36
      %s256 = smul.addr %s255, 8
      %s257 = scalar_lea.vmem %s5, %s256
      %p258 = pneg %p180
      %p259 = pneg %p177
      %p260 = scmp.lt.s32.totalorder %s18, 1
      %s261 = scalar_select %p260, %s18, 1
      %s262 = smul.addr %s261, 36
      %s263 = smul.addr %s262, 8
      %s264 = scalar_lea.vmem %s6, %s263
      %p265 = scmp.lt.s32.totalorder %s18, 1
      %s266 = scalar_select %p265, %s18, 1
      %s267 = smul.addr %s266, 43
      %s268 = smul.addr %s267, 8
      %s269 = scalar_lea.vmem %s0, %s268
      %p270 = scmp.lt.s32.totalorder %s18, 1
      %s271 = scalar_select %p270, %s18, 1
      %s272 = smul.addr %s271, 36
      %s273 = smul.addr %s272, 8
      %s274 = scalar_lea.vmem %s1, %s273
      %p275 = scmp.lt.s32.totalorder %s18, 1
      %s276 = scalar_select %p275, %s18, 1
      %s277 = smul.addr %s276, 36
      %s278 = smul.addr %s277, 8
      %s279 = scalar_lea.vmem %s5, %s278
      %p280 = scmp.lt.s32.totalorder %s18, 1
      %s281 = scalar_select %p280, %s18, 1
      %s282 = smul.addr %s281, 36
      %s283 = smul.addr %s282, 8
      %s284 = scalar_lea.vmem %s6, %s283
      %v286 = vld [vmem:[%s269] sm:$0xff]
      %v287 = vld [vmem:[%s269 + $0x8] sm:$0xff]
      %v288 = vld [vmem:[%s269 + $0x10] sm:$0xff]
      %v289 = vld [vmem:[%s269 + $0x18] sm:$0xff]
      %v290 = vld [vmem:[%s269 + $0x20] sm:$0xff]
      %v291 = vld [vmem:[%s269 + $0x28] sm:$0xff]
      %v292 = vld [vmem:[%s269 + $0x30] sm:$0xff]
      %v293 = vld [vmem:[%s269 + $0x38] sm:$0xff]
      %v294 = vld [vmem:[%s269 + $0x40] sm:$0xff]
      %v295 = vld [vmem:[%s269 + $0x48] sm:$0xff]
      %v296 = vld [vmem:[%s269 + $0x50] sm:$0xff]
      %v297 = vld [vmem:[%s269 + $0x58] sm:$0xff]
      %v298 = vld [vmem:[%s269 + $0x60] sm:$0xff]
      %v299 = vld [vmem:[%s269 + $0x68] sm:$0xff]
      %v300 = vld [vmem:[%s269 + $0x70] sm:$0xff]
      %v301 = vld [vmem:[%s269 + $0x78] sm:$0xff]
      %v302 = vld [vmem:[%s269 + $0x80] sm:$0xff]
      %v303 = vld [vmem:[%s269 + $0x88] sm:$0xff]
      %v304 = vld [vmem:[%s269 + $0x90] sm:$0xff]
      %v305 = vld [vmem:[%s269 + $0x98] sm:$0xff]
      %v306 = vld [vmem:[%s269 + $0xa0] sm:$0xff]
      %v307 = vld [vmem:[%s269 + $0xa8] sm:$0xff]
      %v308 = vld [vmem:[%s269 + $0xb0] sm:$0xff]
      %v309 = vld [vmem:[%s269 + $0xb8] sm:$0xff]
      %v310 = vld [vmem:[%s269 + $0xc0] sm:$0xff]
      %v311 = vld [vmem:[%s269 + $0xc8] sm:$0xff]
      %v312 = vld [vmem:[%s269 + $0xd0] sm:$0xff]
      %v313 = vld [vmem:[%s269 + $0xd8] sm:$0xff]
      %v314 = vld [vmem:[%s269 + $0xe0] sm:$0xff]
      %v315 = vld [vmem:[%s269 + $0xe8] sm:$0xff]
      %v316 = vld [vmem:[%s269 + $0xf0] sm:$0xff]
      %v317 = vld [vmem:[%s269 + $0xf8] sm:$0xff]
      %v318 = vld [vmem:[%s269 + $0x100] sm:$0xff]
      %v319 = vld [vmem:[%s269 + $0x108] sm:$0xff]
      %v320 = vld [vmem:[%s269 + $0x110] sm:$0xff]
      %v321 = vld [vmem:[%s269 + $0x118] sm:$0xff]
      %v322 = vpack.c.bf16 %v287, %v286
      %v323 = vpack.c.bf16 %v289, %v288
      %v324 = vpack.c.bf16 %v291, %v290
      %v325 = vpack.c.bf16 %v293, %v292
      %v326 = vpack.c.bf16 %v295, %v294
      %v327 = vpack.c.bf16 %v297, %v296
      %v328 = vpack.c.bf16 %v299, %v298
      %v329 = vpack.c.bf16 %v301, %v300
      %v330 = vpack.c.bf16 %v303, %v302
      %v331 = vpack.c.bf16 %v305, %v304
      %v332 = vpack.c.bf16 %v307, %v306
      %v333 = vpack.c.bf16 %v309, %v308
      %v334 = vpack.c.bf16 %v311, %v310
      %v335 = vpack.c.bf16 %v313, %v312
      %v336 = vpack.c.bf16 %v315, %v314
      %v337 = vpack.c.bf16 %v317, %v316
      %v338 = vpack.c.bf16 %v319, %v318
      %v339 = vpack.c.bf16 %v321, %v320
      %v340 = vld [vmem:[%s2] sm:$0xf]
      %v341 = vld [vmem:[%s2 + $0x4] sm:$0xf]
      %v342 = vld [vmem:[%s2 + $0x8] sm:$0xf]
      %v343 = vld [vmem:[%s2 + $0xc] sm:$0xf]
      %v344 = vld [vmem:[%s2 + $0x10] sm:$0xf]
      %v345 = vld [vmem:[%s2 + $0x14] sm:$0xf]
      %v346 = vld [vmem:[%s2 + $0x18] sm:$0xf]
      %v347 = vld [vmem:[%s2 + $0x1c] sm:$0xf]
      %v348 = vld [vmem:[%s2 + $0x20] sm:$0xf]
      %v349 = vld [vmem:[%s2 + $0x24] sm:$0xf]
      %v350 = vld [vmem:[%s2 + $0x28] sm:$0xf]
      %v351 = vld [vmem:[%s2 + $0x2c] sm:$0xf]
      %v352 = vld [vmem:[%s2 + $0x30] sm:$0xf]
      %v353 = vld [vmem:[%s2 + $0x34] sm:$0xf]
      %v354 = vld [vmem:[%s2 + $0x38] sm:$0xf]
      %v355 = vld [vmem:[%s2 + $0x3c] sm:$0xf]
      %v356 = vld [vmem:[%s269 + $0x1] sm:$0xff]
      %v357 = vld [vmem:[%s269 + $0x9] sm:$0xff]
      %v358 = vld [vmem:[%s269 + $0x11] sm:$0xff]
      %v359 = vld [vmem:[%s269 + $0x19] sm:$0xff]
      %v360 = vld [vmem:[%s269 + $0x21] sm:$0xff]
      %v361 = vld [vmem:[%s269 + $0x29] sm:$0xff]
      %v362 = vld [vmem:[%s269 + $0x31] sm:$0xff]
      %v363 = vld [vmem:[%s269 + $0x39] sm:$0xff]
      %v364 = vld [vmem:[%s269 + $0x41] sm:$0xff]
      %v365 = vld [vmem:[%s269 + $0x49] sm:$0xff]
      %v366 = vld [vmem:[%s269 + $0x51] sm:$0xff]
      %v367 = vld [vmem:[%s269 + $0x59] sm:$0xff]
      %v368 = vld [vmem:[%s269 + $0x61] sm:$0xff]
      %v369 = vld [vmem:[%s269 + $0x69] sm:$0xff]
      %v370 = vld [vmem:[%s269 + $0x71] sm:$0xff]
      %v371 = vld [vmem:[%s269 + $0x79] sm:$0xff]
      %v372 = vld [vmem:[%s269 + $0x81] sm:$0xff]
      %v373 = vld [vmem:[%s269 + $0x89] sm:$0xff]
      %v374 = vld [vmem:[%s269 + $0x91] sm:$0xff]
      %v375 = vld [vmem:[%s269 + $0x99] sm:$0xff]
      %v376 = vld [vmem:[%s269 + $0xa1] sm:$0xff]
      %v377 = vld [vmem:[%s269 + $0xa9] sm:$0xff]
      %v378 = vld [vmem:[%s269 + $0xb1] sm:$0xff]
      %v379 = vld [vmem:[%s269 + $0xb9] sm:$0xff]
      %v380 = vld [vmem:[%s269 + $0xc1] sm:$0xff]
      %v381 = vld [vmem:[%s269 + $0xc9] sm:$0xff]
      %v382 = vld [vmem:[%s269 + $0xd1] sm:$0xff]
      %v383 = vld [vmem:[%s269 + $0xd9] sm:$0xff]
      %v384 = vld [vmem:[%s269 + $0xe1] sm:$0xff]
      %v385 = vld [vmem:[%s269 + $0xe9] sm:$0xff]
      %v386 = vld [vmem:[%s269 + $0xf1] sm:$0xff]
      %v387 = vld [vmem:[%s269 + $0xf9] sm:$0xff]
      %v388 = vld [vmem:[%s269 + $0x101] sm:$0xff]
      %v389 = vld [vmem:[%s269 + $0x109] sm:$0xff]
      %v390 = vld [vmem:[%s269 + $0x111] sm:$0xff]
      %v391 = vld [vmem:[%s269 + $0x119] sm:$0xff]
      %v392 = vpack.c.bf16 %v357, %v356
      %v393 = vpack.c.bf16 %v359, %v358
      %v394 = vpack.c.bf16 %v361, %v360
      %v395 = vpack.c.bf16 %v363, %v362
      %v396 = vpack.c.bf16 %v365, %v364
      %v397 = vpack.c.bf16 %v367, %v366
      %v398 = vpack.c.bf16 %v369, %v368
      %v399 = vpack.c.bf16 %v371, %v370
      %v400 = vpack.c.bf16 %v373, %v372
      %v401 = vpack.c.bf16 %v375, %v374
      %v402 = vpack.c.bf16 %v377, %v376
      %v403 = vpack.c.bf16 %v379, %v378
      %v404 = vpack.c.bf16 %v381, %v380
      %v405 = vpack.c.bf16 %v383, %v382
      %v406 = vpack.c.bf16 %v385, %v384
      %v407 = vpack.c.bf16 %v387, %v386
      %v408 = vpack.c.bf16 %v389, %v388
      %v409 = vpack.c.bf16 %v391, %v390
      %s410 = scalar_lea.vmem %s2, 64
      %v411 = vld [vmem:[%s410] sm:$0xf]
      %v412 = vld [vmem:[%s410 + $0x4] sm:$0xf]
      %v413 = vld [vmem:[%s410 + $0x8] sm:$0xf]
      %v414 = vld [vmem:[%s410 + $0xc] sm:$0xf]
      %v415 = vld [vmem:[%s410 + $0x10] sm:$0xf]
      %v416 = vld [vmem:[%s410 + $0x14] sm:$0xf]
      %v417 = vld [vmem:[%s410 + $0x18] sm:$0xf]
      %v418 = vld [vmem:[%s410 + $0x1c] sm:$0xf]
      %v419 = vld [vmem:[%s410 + $0x20] sm:$0xf]
      %v420 = vld [vmem:[%s410 + $0x24] sm:$0xf]
      %v421 = vld [vmem:[%s410 + $0x28] sm:$0xf]
      %v422 = vld [vmem:[%s410 + $0x2c] sm:$0xf]
      %v423 = vld [vmem:[%s410 + $0x30] sm:$0xf]
      %v424 = vld [vmem:[%s410 + $0x34] sm:$0xf]
      %v425 = vld [vmem:[%s410 + $0x38] sm:$0xf]
      %v426 = vld [vmem:[%s410 + $0x3c] sm:$0xf]
      %v443 = vunpack.c.l.b16 %v411
      %v444 = vunpack.c.l.b16 %v412
      %v445 = vunpack.c.l.b16 %v413
      %v446 = vunpack.c.l.b16 %v414
      %v447 = vunpack.c.l.b16 %v415
      %v448 = vunpack.c.l.b16 %v416
      %v449 = vunpack.c.l.b16 %v417
      %v450 = vunpack.c.l.b16 %v418
      %v451 = vunpack.c.l.b16 %v419
      %v452 = vunpack.c.l.b16 %v420
      %v453 = vunpack.c.l.b16 %v421
      %v454 = vunpack.c.l.b16 %v422
      %v455 = vunpack.c.l.b16 %v423
      %v456 = vunpack.c.l.b16 %v424
      %v457 = vunpack.c.l.b16 %v425
      %v458 = vunpack.c.l.b16 %v426
      %v459 = vpack.c.b16 %v444, %v443
      %v460 = vpack.c.b16 %v446, %v445
      %v461 = vpack.c.b16 %v448, %v447
      %v462 = vpack.c.b16 %v450, %v449
      %v463 = vpack.c.b16 %v452, %v451
      %v464 = vpack.c.b16 %v454, %v453
      %v465 = vpack.c.b16 %v456, %v455
      %v466 = vpack.c.b16 %v458, %v457
      %475 = vmatprep.subr.bf16.mxu0 0
      %476 = vmatpush1.bf16.msra.mxu0 %v459
      %477 = vmatprep.subr.bf16.mxu0 0
      %478 = vmatpush1.bf16.msra.mxu0 %v460
      %479 = vmatprep.subr.bf16.mxu0 0
      %480 = vmatpush1.bf16.msra.mxu0 %v461
      %481 = vmatprep.subr.bf16.mxu0 0
      %482 = vmatpush1.bf16.msra.mxu0 %v462
      %483 = vmatprep.subr.bf16.mxu0 0
      %484 = vmatpush1.bf16.msra.mxu0 %v463
      %485 = vmatprep.subr.bf16.mxu0 0
      %486 = vmatpush1.bf16.msra.mxu0 %v464
      %487 = vmatprep.subr.bf16.mxu0 0
      %488 = vmatpush1.bf16.msra.mxu0 %v465
      %489 = vmatprep.subr.bf16.mxu0 0
      %490 = vmatpush1.bf16.msra.mxu0 %v466
      %491 = vmatprep.subr.bf16.mxu0 0
      %492 = vmatpush1.bf16.msra.mxu0 0
      %493 = vmatprep.subr.bf16.mxu0 0
      %494 = vmatpush1.bf16.msra.mxu0 0
      %495 = vmatprep.subr.bf16.mxu0 0
      %496 = vmatpush1.bf16.msra.mxu0 0
      %497 = vmatprep.subr.bf16.mxu0 0
      %498 = vmatpush1.bf16.msra.mxu0 0
      %499 = vmatprep.subr.bf16.mxu0 0
      %500 = vmatpush1.bf16.msra.mxu0 0
      %501 = vmatprep.subr.bf16.mxu0 0
      %502 = vmatpush1.bf16.msra.mxu0 0
      %503 = vmatprep.subr.bf16.mxu0 0
      %504 = vmatpush1.bf16.msra.mxu0 0
      %505 = vmatprep.subr.bf16.mxu0 0
      %506 = vmatpush1.bf16.msra.mxu0 0
      %507 = vmatprep.mubr.bf16.mxu0 0
      %508 = vmatmul.mubr.bf16.gmra.mrb[0].mxu0 %v392
      %v509 = vpop.f32.mrb[0].mxu0
      %v510 = vadd.f32 0.0, %v509
      %v511 = vpop.f32.mrb[0].mxu0
      %v512 = vpop.f32.mrb[0].mxu0
      %v513 = vadd.f32 0.0, %v512
      %v514 = vpop.f32.mrb[0].mxu0
      %515 = vmatprep.mubr.bf16.mxu0 0
      %516 = vmatmul.mubr.bf16.gmra.mrb[0].mxu0 %v393
      %v517 = vpop.f32.mrb[0].mxu0
      %v518 = vadd.f32 0.0, %v517
      %v519 = vpop.f32.mrb[0].mxu0
      %v520 = vpop.f32.mrb[0].mxu0
      %v521 = vadd.f32 0.0, %v520
      %v522 = vpop.f32.mrb[0].mxu0
      %523 = vmatprep.mubr.bf16.mxu0 0
      %524 = vmatmul.mubr.bf16.gmra.mrb[0].mxu0 %v394
      %v525 = vpop.f32.mrb[0].mxu0
      %v526 = vadd.f32 0.0, %v525
      %v527 = vpop.f32.mrb[0].mxu0
      %v528 = vpop.f32.mrb[0].mxu0
      %v529 = vadd.f32 0.0, %v528
      %v530 = vpop.f32.mrb[0].mxu0
      %531 = vmatprep.mubr.bf16.mxu0 0
      %532 = vmatmul.mubr.bf16.gmra.mrb[0].mxu0 %v395
      %v533 = vpop.f32.mrb[0].mxu0
      %v534 = vadd.f32 0.0, %v533
      %v535 = vpop.f32.mrb[0].mxu0
      %v536 = vpop.f32.mrb[0].mxu0
      %v537 = vadd.f32 0.0, %v536
      %v538 = vpop.f32.mrb[0].mxu0
      %539 = vmatprep.mubr.bf16.mxu0 0
      %540 = vmatmul.mubr.bf16.gmra.mrb[0].mxu0 %v396
      %v541 = vpop.f32.mrb[0].mxu0
      %v542 = vadd.f32 0.0, %v541
      %v543 = vpop.f32.mrb[0].mxu0
      %v544 = vpop.f32.mrb[0].mxu0
      %v545 = vadd.f32 0.0, %v544
      %v546 = vpop.f32.mrb[0].mxu0
      %547 = vmatprep.mubr.bf16.mxu0 0
      %548 = vmatmul.mubr.bf16.gmra.mrb[0].mxu0 %v397
      %v549 = vpop.f32.mrb[0].mxu0
      %v550 = vadd.f32 0.0, %v549
      %v551 = vpop.f32.mrb[0].mxu0
      %v552 = vpop.f32.mrb[0].mxu0
      %v553 = vadd.f32 0.0, %v552
      %v554 = vpop.f32.mrb[0].mxu0
      %555 = vmatprep.mubr.bf16.mxu0 0
      %556 = vmatmul.mubr.bf16.gmra.mrb[0].mxu0 %v398
      %v557 = vpop.f32.mrb[0].mxu0
      %v558 = vadd.f32 0.0, %v557
      %v559 = vpop.f32.mrb[0].mxu0
      %v560 = vpop.f32.mrb[0].mxu0
      %v561 = vadd.f32 0.0, %v560
      %v562 = vpop.f32.mrb[0].mxu0
      %563 = vmatprep.mubr.bf16.mxu0 0
      %564 = vmatmul.mubr.bf16.gmra.mrb[0].mxu0 %v399
      %v565 = vpop.f32.mrb[0].mxu0
      %v566 = vadd.f32 0.0, %v565
      %v567 = vpop.f32.mrb[0].mxu0
      %v568 = vpop.f32.mrb[0].mxu0
      %v569 = vadd.f32 0.0, %v568
      %v570 = vpop.f32.mrb[0].mxu0
      %571 = vmatprep.mubr.bf16.mxu0 0
      %572 = vmatmul.mubr.bf16.gmra.mrb[0].mxu0 %v400
      %v573 = vpop.f32.mrb[0].mxu0
      %v574 = vadd.f32 0.0, %v573
      %v575 = vpop.f32.mrb[0].mxu0
      %v576 = vpop.f32.mrb[0].mxu0
      %v577 = vadd.f32 0.0, %v576
      %v578 = vpop.f32.mrb[0].mxu0
      %579 = vmatprep.mubr.bf16.mxu0 0
      %580 = vmatmul.mubr.bf16.gmra.mrb[0].mxu0 %v401
      %v581 = vpop.f32.mrb[0].mxu0
      %v582 = vadd.f32 0.0, %v581
      %v583 = vpop.f32.mrb[0].mxu0
      %v584 = vpop.f32.mrb[0].mxu0
      %v585 = vadd.f32 0.0, %v584
      %v586 = vpop.f32.mrb[0].mxu0
      %587 = vmatprep.mubr.bf16.mxu0 0
      %588 = vmatmul.mubr.bf16.gmra.mrb[0].mxu0 %v402
      %v589 = vpop.f32.mrb[0].mxu0
      %v590 = vadd.f32 0.0, %v589
      %v591 = vpop.f32.mrb[0].mxu0
      %v592 = vpop.f32.mrb[0].mxu0
      %v593 = vadd.f32 0.0, %v592
      %v594 = vpop.f32.mrb[0].mxu0
      %595 = vmatprep.mubr.bf16.mxu0 0
      %596 = vmatmul.mubr.bf16.gmra.mrb[0].mxu0 %v403
      %v597 = vpop.f32.mrb[0].mxu0
      %v598 = vadd.f32 0.0, %v597
      %v599 = vpop.f32.mrb[0].mxu0
      %v600 = vpop.f32.mrb[0].mxu0
      %v601 = vadd.f32 0.0, %v600
      %v602 = vpop.f32.mrb[0].mxu0
      %603 = vmatprep.mubr.bf16.mxu0 0
      %604 = vmatmul.mubr.bf16.gmra.mrb[0].mxu0 %v404
      %v605 = vpop.f32.mrb[0].mxu0
      %v606 = vadd.f32 0.0, %v605
      %v607 = vpop.f32.mrb[0].mxu0
      %v608 = vpop.f32.mrb[0].mxu0
      %v609 = vadd.f32 0.0, %v608
      %v610 = vpop.f32.mrb[0].mxu0
      %611 = vmatprep.mubr.bf16.mxu0 0
      %612 = vmatmul.mubr.bf16.gmra.mrb[0].mxu0 %v405
      %v613 = vpop.f32.mrb[0].mxu0
      %v614 = vadd.f32 0.0, %v613
      %v615 = vpop.f32.mrb[0].mxu0
      %v616 = vpop.f32.mrb[0].mxu0
      %v617 = vadd.f32 0.0, %v616
      %v618 = vpop.f32.mrb[0].mxu0
      %619 = vmatprep.mubr.bf16.mxu0 0
      %620 = vmatmul.mubr.bf16.gmra.mrb[0].mxu0 %v406
      %v621 = vpop.f32.mrb[0].mxu0
      %v622 = vadd.f32 0.0, %v621
      %v623 = vpop.f32.mrb[0].mxu0
      %v624 = vpop.f32.mrb[0].mxu0
      %v625 = vadd.f32 0.0, %v624
      %v626 = vpop.f32.mrb[0].mxu0
      %627 = vmatprep.mubr.bf16.mxu0 0
      %628 = vmatmul.mubr.bf16.gmra.mrb[0].mxu0 %v407
      %v629 = vpop.f32.mrb[0].mxu0
      %v630 = vadd.f32 0.0, %v629
      %v631 = vpop.f32.mrb[0].mxu0
      %v632 = vpop.f32.mrb[0].mxu0
      %v633 = vadd.f32 0.0, %v632
      %v634 = vpop.f32.mrb[0].mxu0
      %635 = vmatprep.mubr.bf16.mxu0 0
      %636 = vmatmul.mubr.bf16.gmra.mrb[0].mxu0 %v408
      %v637 = vpop.f32.mrb[0].mxu0
      %v638 = vadd.f32 0.0, %v637
      %v639 = vpop.f32.mrb[0].mxu0
      %v640 = vpop.f32.mrb[0].mxu0
      %v641 = vadd.f32 0.0, %v640
      %v642 = vpop.f32.mrb[0].mxu0
      %643 = vmatprep.mubr.bf16.mxu0 0
      %644 = vmatmul.mubr.bf16.gmra.mrb[0].mxu0 %v409
      %v645 = vpop.f32.mrb[0].mxu0
      %v646 = vadd.f32 0.0, %v645
      %v647 = vpop.f32.mrb[0].mxu0
      %v648 = vpop.f32.mrb[0].mxu0
      %v649 = vadd.f32 0.0, %v648
      %v650 = vpop.f32.mrb[0].mxu0
      %651 = vdwg.mxu0
      %v668 = vunpack.c.l.b16 %v340
      %v669 = vunpack.c.l.b16 %v341
      %v670 = vunpack.c.l.b16 %v342
      %v671 = vunpack.c.l.b16 %v343
      %v672 = vunpack.c.l.b16 %v344
      %v673 = vunpack.c.l.b16 %v345
      %v674 = vunpack.c.l.b16 %v346
      %v675 = vunpack.c.l.b16 %v347
      %v676 = vunpack.c.l.b16 %v348
      %v677 = vunpack.c.l.b16 %v349
      %v678 = vunpack.c.l.b16 %v350
      %v679 = vunpack.c.l.b16 %v351
      %v680 = vunpack.c.l.b16 %v352
      %v681 = vunpack.c.l.b16 %v353
      %v682 = vunpack.c.l.b16 %v354
      %v683 = vunpack.c.l.b16 %v355
      %v684 = vpack.c.b16 %v669, %v668
      %v685 = vpack.c.b16 %v671, %v670
      %v686 = vpack.c.b16 %v673, %v672
      %v687 = vpack.c.b16 %v675, %v674
      %v688 = vpack.c.b16 %v677, %v676
      %v689 = vpack.c.b16 %v679, %v678
      %v690 = vpack.c.b16 %v681, %v680
      %v691 = vpack.c.b16 %v683, %v682
      %700 = vmatprep.subr.bf16.mxu0 0
      %701 = vmatpush1.bf16.msra.mxu0 %v684
      %702 = vmatprep.subr.bf16.mxu0 0
      %703 = vmatpush1.bf16.msra.mxu0 %v685
      %704 = vmatprep.subr.bf16.mxu0 0
      %705 = vmatpush1.bf16.msra.mxu0 %v686
      %706 = vmatprep.subr.bf16.mxu0 0
      %707 = vmatpush1.bf16.msra.mxu0 %v687
      %708 = vmatprep.subr.bf16.mxu0 0
      %709 = vmatpush1.bf16.msra.mxu0 %v688
      %710 = vmatprep.subr.bf16.mxu0 0
      %711 = vmatpush1.bf16.msra.mxu0 %v689
      %712 = vmatprep.subr.bf16.mxu0 0
      %713 = vmatpush1.bf16.msra.mxu0 %v690
      %714 = vmatprep.subr.bf16.mxu0 0
      %715 = vmatpush1.bf16.msra.mxu0 %v691
      %716 = vmatprep.subr.bf16.mxu0 0
      %717 = vmatpush1.bf16.msra.mxu0 0
      %718 = vmatprep.subr.bf16.mxu0 0
      %719 = vmatpush1.bf16.msra.mxu0 0
      %720 = vmatprep.subr.bf16.mxu0 0
      %721 = vmatpush1.bf16.msra.mxu0 0
      %722 = vmatprep.subr.bf16.mxu0 0
      %723 = vmatpush1.bf16.msra.mxu0 0
      %724 = vmatprep.subr.bf16.mxu0 0
      %725 = vmatpush1.bf16.msra.mxu0 0
      %726 = vmatprep.subr.bf16.mxu0 0
      %727 = vmatpush1.bf16.msra.mxu0 0
      %728 = vmatprep.subr.bf16.mxu0 0
      %729 = vmatpush1.bf16.msra.mxu0 0
      %730 = vmatprep.subr.bf16.mxu0 0
      %731 = vmatpush1.bf16.msra.mxu0 0
      %732 = vmatprep.mubr.bf16.mxu0 0
      %733 = vmatmul.mubr.bf16.gmra.mrb[0].mxu0 %v322
      %v734 = vpop.f32.mrb[0].mxu0
      %v735 = vadd.f32 %v510, %v734
      %v736 = vpop.f32.mrb[0].mxu0
      %v737 = vpop.f32.mrb[0].mxu0
      %v738 = vadd.f32 %v513, %v737
      %v739 = vpop.f32.mrb[0].mxu0
      %740 = vmatprep.mubr.bf16.mxu0 0
      %741 = vmatmul.mubr.bf16.gmra.mrb[0].mxu0 %v323
      %v742 = vpop.f32.mrb[0].mxu0
      %v743 = vadd.f32 %v518, %v742
      %v744 = vpop.f32.mrb[0].mxu0
      %v745 = vpop.f32.mrb[0].mxu0
      %v746 = vadd.f32 %v521, %v745
      %v747 = vpop.f32.mrb[0].mxu0
      %748 = vmatprep.mubr.bf16.mxu0 0
      %749 = vmatmul.mubr.bf16.gmra.mrb[0].mxu0 %v324
      %v750 = vpop.f32.mrb[0].mxu0
      %v751 = vadd.f32 %v526, %v750
      %v752 = vpop.f32.mrb[0].mxu0
      %v753 = vpop.f32.mrb[0].mxu0
      %v754 = vadd.f32 %v529, %v753
      %v755 = vpop.f32.mrb[0].mxu0
      %756 = vmatprep.mubr.bf16.mxu0 0
      %757 = vmatmul.mubr.bf16.gmra.mrb[0].mxu0 %v325
      %v758 = vpop.f32.mrb[0].mxu0
      %v759 = vadd.f32 %v534, %v758
      %v760 = vpop.f32.mrb[0].mxu0
      %v761 = vpop.f32.mrb[0].mxu0
      %v762 = vadd.f32 %v537, %v761
      %v763 = vpop.f32.mrb[0].mxu0
      %764 = vmatprep.mubr.bf16.mxu0 0
      %765 = vmatmul.mubr.bf16.gmra.mrb[0].mxu0 %v326
      %v766 = vpop.f32.mrb[0].mxu0
      %v767 = vadd.f32 %v542, %v766
      %v768 = vpop.f32.mrb[0].mxu0
      %v769 = vpop.f32.mrb[0].mxu0
      %v770 = vadd.f32 %v545, %v769
      %v771 = vpop.f32.mrb[0].mxu0
      %772 = vmatprep.mubr.bf16.mxu0 0
      %773 = vmatmul.mubr.bf16.gmra.mrb[0].mxu0 %v327
      %v774 = vpop.f32.mrb[0].mxu0
      %v775 = vadd.f32 %v550, %v774
      %v776 = vpop.f32.mrb[0].mxu0
      %v777 = vpop.f32.mrb[0].mxu0
      %v778 = vadd.f32 %v553, %v777
      %v779 = vpop.f32.mrb[0].mxu0
      %780 = vmatprep.mubr.bf16.mxu0 0
      %781 = vmatmul.mubr.bf16.gmra.mrb[0].mxu0 %v328
      %v782 = vpop.f32.mrb[0].mxu0
      %v783 = vadd.f32 %v558, %v782
      %v784 = vpop.f32.mrb[0].mxu0
      %v785 = vpop.f32.mrb[0].mxu0
      %v786 = vadd.f32 %v561, %v785
      %v787 = vpop.f32.mrb[0].mxu0
      %788 = vmatprep.mubr.bf16.mxu0 0
      %789 = vmatmul.mubr.bf16.gmra.mrb[0].mxu0 %v329
      %v790 = vpop.f32.mrb[0].mxu0
      %v791 = vadd.f32 %v566, %v790
      %v792 = vpop.f32.mrb[0].mxu0
      %v793 = vpop.f32.mrb[0].mxu0
      %v794 = vadd.f32 %v569, %v793
      %v795 = vpop.f32.mrb[0].mxu0
      %796 = vmatprep.mubr.bf16.mxu0 0
      %797 = vmatmul.mubr.bf16.gmra.mrb[0].mxu0 %v330
      %v798 = vpop.f32.mrb[0].mxu0
      %v799 = vadd.f32 %v574, %v798
      %v800 = vpop.f32.mrb[0].mxu0
      %v801 = vpop.f32.mrb[0].mxu0
      %v802 = vadd.f32 %v577, %v801
      %v803 = vpop.f32.mrb[0].mxu0
      %804 = vmatprep.mubr.bf16.mxu0 0
      %805 = vmatmul.mubr.bf16.gmra.mrb[0].mxu0 %v331
      %v806 = vpop.f32.mrb[0].mxu0
      %v807 = vadd.f32 %v582, %v806
      %v808 = vpop.f32.mrb[0].mxu0
      %v809 = vpop.f32.mrb[0].mxu0
      %v810 = vadd.f32 %v585, %v809
      %v811 = vpop.f32.mrb[0].mxu0
      %812 = vmatprep.mubr.bf16.mxu0 0
      %813 = vmatmul.mubr.bf16.gmra.mrb[0].mxu0 %v332
      %v814 = vpop.f32.mrb[0].mxu0
      %v815 = vadd.f32 %v590, %v814
      %v816 = vpop.f32.mrb[0].mxu0
      %v817 = vpop.f32.mrb[0].mxu0
      %v818 = vadd.f32 %v593, %v817
      %v819 = vpop.f32.mrb[0].mxu0
      %820 = vmatprep.mubr.bf16.mxu0 0
      %821 = vmatmul.mubr.bf16.gmra.mrb[0].mxu0 %v333
      %v822 = vpop.f32.mrb[0].mxu0
      %v823 = vadd.f32 %v598, %v822
      %v824 = vpop.f32.mrb[0].mxu0
      %v825 = vpop.f32.mrb[0].mxu0
      %v826 = vadd.f32 %v601, %v825
      %v827 = vpop.f32.mrb[0].mxu0
      %828 = vmatprep.mubr.bf16.mxu0 0
      %829 = vmatmul.mubr.bf16.gmra.mrb[0].mxu0 %v334
      %v830 = vpop.f32.mrb[0].mxu0
      %v831 = vadd.f32 %v606, %v830
      %v832 = vpop.f32.mrb[0].mxu0
      %v833 = vpop.f32.mrb[0].mxu0
      %v834 = vadd.f32 %v609, %v833
      %v835 = vpop.f32.mrb[0].mxu0
      %836 = vmatprep.mubr.bf16.mxu0 0
      %837 = vmatmul.mubr.bf16.gmra.mrb[0].mxu0 %v335
      %v838 = vpop.f32.mrb[0].mxu0
      %v839 = vadd.f32 %v614, %v838
      %v840 = vpop.f32.mrb[0].mxu0
      %v841 = vpop.f32.mrb[0].mxu0
      %v842 = vadd.f32 %v617, %v841
      %v843 = vpop.f32.mrb[0].mxu0
      %844 = vmatprep.mubr.bf16.mxu0 0
      %845 = vmatmul.mubr.bf16.gmra.mrb[0].mxu0 %v336
      %v846 = vpop.f32.mrb[0].mxu0
      %v847 = vadd.f32 %v622, %v846
      %v848 = vpop.f32.mrb[0].mxu0
      %v849 = vpop.f32.mrb[0].mxu0
      %v850 = vadd.f32 %v625, %v849
      %v851 = vpop.f32.mrb[0].mxu0
      %852 = vmatprep.mubr.bf16.mxu0 0
      %853 = vmatmul.mubr.bf16.gmra.mrb[0].mxu0 %v337
      %v854 = vpop.f32.mrb[0].mxu0
      %v855 = vadd.f32 %v630, %v854
      %v856 = vpop.f32.mrb[0].mxu0
      %v857 = vpop.f32.mrb[0].mxu0
      %v858 = vadd.f32 %v633, %v857
      %v859 = vpop.f32.mrb[0].mxu0
      %860 = vmatprep.mubr.bf16.mxu0 0
      %861 = vmatmul.mubr.bf16.gmra.mrb[0].mxu0 %v338
      %v862 = vpop.f32.mrb[0].mxu0
      %v863 = vadd.f32 %v638, %v862
      %v864 = vpop.f32.mrb[0].mxu0
      %v865 = vpop.f32.mrb[0].mxu0
      %v866 = vadd.f32 %v641, %v865
      %v867 = vpop.f32.mrb[0].mxu0
      %868 = vmatprep.mubr.bf16.mxu0 0
      %869 = vmatmul.mubr.bf16.gmra.mrb[0].mxu0 %v339
      %v870 = vpop.f32.mrb[0].mxu0
      %v871 = vadd.f32 %v646, %v870
      %v872 = vpop.f32.mrb[0].mxu0
      %v873 = vpop.f32.mrb[0].mxu0
      %v874 = vadd.f32 %v649, %v873
      %v875 = vpop.f32.mrb[0].mxu0
      %876 = vdwg.mxu0
      %v877 = vld [vmem:[%s269 + $0x2] sm:$0xff]
      %v878 = vld [vmem:[%s269 + $0xa] sm:$0xff]
      %v879 = vld [vmem:[%s269 + $0x12] sm:$0xff]
      %v880 = vld [vmem:[%s269 + $0x1a] sm:$0xff]
      %v881 = vld [vmem:[%s269 + $0x22] sm:$0xff]
      %v882 = vld [vmem:[%s269 + $0x2a] sm:$0xff]
      %v883 = vld [vmem:[%s269 + $0x32] sm:$0xff]
      %v884 = vld [vmem:[%s269 + $0x3a] sm:$0xff]
      %v885 = vld [vmem:[%s269 + $0x42] sm:$0xff]
      %v886 = vld [vmem:[%s269 + $0x4a] sm:$0xff]
      %v887 = vld [vmem:[%s269 + $0x52] sm:$0xff]
      %v888 = vld [vmem:[%s269 + $0x5a] sm:$0xff]
      %v889 = vld [vmem:[%s269 + $0x62] sm:$0xff]
      %v890 = vld [vmem:[%s269 + $0x6a] sm:$0xff]
      %v891 = vld [vmem:[%s269 + $0x72] sm:$0xff]
      %v892 = vld [vmem:[%s269 + $0x7a] sm:$0xff]
      %v893 = vld [vmem:[%s269 + $0x82] sm:$0xff]
      %v894 = vld [vmem:[%s269 + $0x8a] sm:$0xff]
      %v895 = vld [vmem:[%s269 + $0x92] sm:$0xff]
      %v896 = vld [vmem:[%s269 + $0x9a] sm:$0xff]
      %v897 = vld [vmem:[%s269 + $0xa2] sm:$0xff]
      %v898 = vld [vmem:[%s269 + $0xaa] sm:$0xff]
      %v899 = vld [vmem:[%s269 + $0xb2] sm:$0xff]
      %v900 = vld [vmem:[%s269 + $0xba] sm:$0xff]
      %v901 = vld [vmem:[%s269 + $0xc2] sm:$0xff]
      %v902 = vld [vmem:[%s269 + $0xca] sm:$0xff]
      %v903 = vld [vmem:[%s269 + $0xd2] sm:$0xff]
      %v904 = vld [vmem:[%s269 + $0xda] sm:$0xff]
      %v905 = vld [vmem:[%s269 + $0xe2] sm:$0xff]
      %v906 = vld [vmem:[%s269 + $0xea] sm:$0xff]
      %v907 = vld [vmem:[%s269 + $0xf2] sm:$0xff]
      %v908 = vld [vmem:[%s269 + $0xfa] sm:$0xff]
      %v909 = vld [vmem:[%s269 + $0x102] sm:$0xff]
      %v910 = vld [vmem:[%s269 + $0x10a] sm:$0xff]
      %v911 = vld [vmem:[%s269 + $0x112] sm:$0xff]
      %v912 = vld [vmem:[%s269 + $0x11a] sm:$0xff]
      %v913 = vpack.c.bf16 %v878, %v877
      %v914 = vpack.c.bf16 %v880, %v879
      %v915 = vpack.c.bf16 %v882, %v881
      %v916 = vpack.c.bf16 %v884, %v883
      %v917 = vpack.c.bf16 %v886, %v885
      %v918 = vpack.c.bf16 %v888, %v887
      %v919 = vpack.c.bf16 %v890, %v889
      %v920 = vpack.c.bf16 %v892, %v891
      %v921 = vpack.c.bf16 %v894, %v893
      %v922 = vpack.c.bf16 %v896, %v895
      %v923 = vpack.c.bf16 %v898, %v897
      %v924 = vpack.c.bf16 %v900, %v899
      %v925 = vpack.c.bf16 %v902, %v901
      %v926 = vpack.c.bf16 %v904, %v903
      %v927 = vpack.c.bf16 %v906, %v905
      %v928 = vpack.c.bf16 %v908, %v907
      %v929 = vpack.c.bf16 %v910, %v909
      %v930 = vpack.c.bf16 %v912, %v911
      %s931 = scalar_lea.vmem %s2, 128
      %v932 = vld [vmem:[%s931] sm:$0xf]
      %v933 = vld [vmem:[%s931 + $0x4] sm:$0xf]
      %v934 = vld [vmem:[%s931 + $0x8] sm:$0xf]
      %v935 = vld [vmem:[%s931 + $0xc] sm:$0xf]
      %v936 = vld [vmem:[%s931 + $0x10] sm:$0xf]
      %v937 = vld [vmem:[%s931 + $0x14] sm:$0xf]
      %v938 = vld [vmem:[%s931 + $0x18] sm:$0xf]
      %v939 = vld [vmem:[%s931 + $0x1c] sm:$0xf]
      %v940 = vld [vmem:[%s931 + $0x20] sm:$0xf]
      %v941 = vld [vmem:[%s931 + $0x24] sm:$0xf]
      %v942 = vld [vmem:[%s931 + $0x28] sm:$0xf]
      %v943 = vld [vmem:[%s931 + $0x2c] sm:$0xf]
      %v944 = vld [vmem:[%s931 + $0x30] sm:$0xf]
      %v945 = vld [vmem:[%s931 + $0x34] sm:$0xf]
      %v946 = vld [vmem:[%s931 + $0x38] sm:$0xf]
      %v947 = vld [vmem:[%s931 + $0x3c] sm:$0xf]
      %v964 = vunpack.c.l.b16 %v932
      %v965 = vunpack.c.l.b16 %v933
      %v966 = vunpack.c.l.b16 %v934
      %v967 = vunpack.c.l.b16 %v935
      %v968 = vunpack.c.l.b16 %v936
      %v969 = vunpack.c.l.b16 %v937
      %v970 = vunpack.c.l.b16 %v938
      %v971 = vunpack.c.l.b16 %v939
      %v972 = vunpack.c.l.b16 %v940
      %v973 = vunpack.c.l.b16 %v941
      %v974 = vunpack.c.l.b16 %v942
      %v975 = vunpack.c.l.b16 %v943
      %v976 = vunpack.c.l.b16 %v944
      %v977 = vunpack.c.l.b16 %v945
      %v978 = vunpack.c.l.b16 %v946
      %v979 = vunpack.c.l.b16 %v947
      %v980 = vpack.c.b16 %v965, %v964
      %v981 = vpack.c.b16 %v967, %v966
      %v982 = vpack.c.b16 %v969, %v968
      %v983 = vpack.c.b16 %v971, %v970
      %v984 = vpack.c.b16 %v973, %v972
      %v985 = vpack.c.b16 %v975, %v974
      %v986 = vpack.c.b16 %v977, %v976
      %v987 = vpack.c.b16 %v979, %v978
      %996 = vmatprep.subr.bf16.mxu0 0
      %997 = vmatpush1.bf16.msra.mxu0 %v980
      %998 = vmatprep.subr.bf16.mxu0 0
      %999 = vmatpush1.bf16.msra.mxu0 %v981
      %1000 = vmatprep.subr.bf16.mxu0 0
      %1001 = vmatpush1.bf16.msra.mxu0 %v982
      %1002 = vmatprep.subr.bf16.mxu0 0
      %1003 = vmatpush1.bf16.msra.mxu0 %v983
      %1004 = vmatprep.subr.bf16.mxu0 0
      %1005 = vmatpush1.bf16.msra.mxu0 %v984
      %1006 = vmatprep.subr.bf16.mxu0 0
      %1007 = vmatpush1.bf16.msra.mxu0 %v985
      %1008 = vmatprep.subr.bf16.mxu0 0
      %1009 = vmatpush1.bf16.msra.mxu0 %v986
      %1010 = vmatprep.subr.bf16.mxu0 0
      %1011 = vmatpush1.bf16.msra.mxu0 %v987
      %1012 = vmatprep.subr.bf16.mxu0 0
      %1013 = vmatpush1.bf16.msra.mxu0 0
      %1014 = vmatprep.subr.bf16.mxu0 0
      %1015 = vmatpush1.bf16.msra.mxu0 0
      %1016 = vmatprep.subr.bf16.mxu0 0
      %1017 = vmatpush1.bf16.msra.mxu0 0
      %1018 = vmatprep.subr.bf16.mxu0 0
      %1019 = vmatpush1.bf16.msra.mxu0 0
      %1020 = vmatprep.subr.bf16.mxu0 0
      %1021 = vmatpush1.bf16.msra.mxu0 0
      %1022 = vmatprep.subr.bf16.mxu0 0
      %1023 = vmatpush1.bf16.msra.mxu0 0
      %1024 = vmatprep.subr.bf16.mxu0 0
      %1025 = vmatpush1.bf16.msra.mxu0 0
      %1026 = vmatprep.subr.bf16.mxu0 0
      %1027 = vmatpush1.bf16.msra.mxu0 0
      %1028 = vmatprep.mubr.bf16.mxu0 0
      %1029 = vmatmul.mubr.bf16.gmra.mrb[0].mxu0 %v913
      %v1030 = vpop.f32.mrb[0].mxu0
      %v1031 = vadd.f32 0.0, %v1030
      %v1032 = vpop.f32.mrb[0].mxu0
      %v1033 = vpop.f32.mrb[0].mxu0
      %v1034 = vadd.f32 0.0, %v1033
      %v1035 = vpop.f32.mrb[0].mxu0
      %1036 = vmatprep.mubr.bf16.mxu0 0
      %1037 = vmatmul.mubr.bf16.gmra.mrb[0].mxu0 %v914
      %v1038 = vpop.f32.mrb[0].mxu0
      %v1039 = vadd.f32 0.0, %v1038
      %v1040 = vpop.f32.mrb[0].mxu0
      %v1041 = vpop.f32.mrb[0].mxu0
      %v1042 = vadd.f32 0.0, %v1041
      %v1043 = vpop.f32.mrb[0].mxu0
      %1044 = vmatprep.mubr.bf16.mxu0 0
      %1045 = vmatmul.mubr.bf16.gmra.mrb[0].mxu0 %v915
      %v1046 = vpop.f32.mrb[0].mxu0
      %v1047 = vadd.f32 0.0, %v1046
      %v1048 = vpop.f32.mrb[0].mxu0
      %v1049 = vpop.f32.mrb[0].mxu0
      %v1050 = vadd.f32 0.0, %v1049
      %v1051 = vpop.f32.mrb[0].mxu0
      %1052 = vmatprep.mubr.bf16.mxu0 0
      %1053 = vmatmul.mubr.bf16.gmra.mrb[0].mxu0 %v916
      %v1054 = vpop.f32.mrb[0].mxu0
      %v1055 = vadd.f32 0.0, %v1054
      %v1056 = vpop.f32.mrb[0].mxu0
      %v1057 = vpop.f32.mrb[0].mxu0
      %v1058 = vadd.f32 0.0, %v1057
      %v1059 = vpop.f32.mrb[0].mxu0
      %1060 = vmatprep.mubr.bf16.mxu0 0
      %1061 = vmatmul.mubr.bf16.gmra.mrb[0].mxu0 %v917
      %v1062 = vpop.f32.mrb[0].mxu0
      %v1063 = vadd.f32 0.0, %v1062
      %v1064 = vpop.f32.mrb[0].mxu0
      %v1065 = vpop.f32.mrb[0].mxu0
      %v1066 = vadd.f32 0.0, %v1065
      %v1067 = vpop.f32.mrb[0].mxu0
      %1068 = vmatprep.mubr.bf16.mxu0 0
      %1069 = vmatmul.mubr.bf16.gmra.mrb[0].mxu0 %v918
      %v1070 = vpop.f32.mrb[0].mxu0
      %v1071 = vadd.f32 0.0, %v1070
      %v1072 = vpop.f32.mrb[0].mxu0
      %v1073 = vpop.f32.mrb[0].mxu0
      %v1074 = vadd.f32 0.0, %v1073
      %v1075 = vpop.f32.mrb[0].mxu0
      %1076 = vmatprep.mubr.bf16.mxu0 0
      %1077 = vmatmul.mubr.bf16.gmra.mrb[0].mxu0 %v919
      %v1078 = vpop.f32.mrb[0].mxu0
      %v1079 = vadd.f32 0.0, %v1078
      %v1080 = vpop.f32.mrb[0].mxu0
      %v1081 = vpop.f32.mrb[0].mxu0
      %v1082 = vadd.f32 0.0, %v1081
      %v1083 = vpop.f32.mrb[0].mxu0
      %1084 = vmatprep.mubr.bf16.mxu0 0
      %1085 = vmatmul.mubr.bf16.gmra.mrb[0].mxu0 %v920
      %v1086 = vpop.f32.mrb[0].mxu0
      %v1087 = vadd.f32 0.0, %v1086
      %v1088 = vpop.f32.mrb[0].mxu0
      %v1089 = vpop.f32.mrb[0].mxu0
      %v1090 = vadd.f32 0.0, %v1089
      %v1091 = vpop.f32.mrb[0].mxu0
      %1092 = vmatprep.mubr.bf16.mxu0 0
      %1093 = vmatmul.mubr.bf16.gmra.mrb[0].mxu0 %v921
      %v1094 = vpop.f32.mrb[0].mxu0
      %v1095 = vadd.f32 0.0, %v1094
      %v1096 = vpop.f32.mrb[0].mxu0
      %v1097 = vpop.f32.mrb[0].mxu0
      %v1098 = vadd.f32 0.0, %v1097
      %v1099 = vpop.f32.mrb[0].mxu0
      %1100 = vmatprep.mubr.bf16.mxu0 0
      %1101 = vmatmul.mubr.bf16.gmra.mrb[0].mxu0 %v922
      %v1102 = vpop.f32.mrb[0].mxu0
      %v1103 = vadd.f32 0.0, %v1102
      %v1104 = vpop.f32.mrb[0].mxu0
      %v1105 = vpop.f32.mrb[0].mxu0
      %v1106 = vadd.f32 0.0, %v1105
      %v1107 = vpop.f32.mrb[0].mxu0
      %1108 = vmatprep.mubr.bf16.mxu0 0
      %1109 = vmatmul.mubr.bf16.gmra.mrb[0].mxu0 %v923
      %v1110 = vpop.f32.mrb[0].mxu0
      %v1111 = vadd.f32 0.0, %v1110
      %v1112 = vpop.f32.mrb[0].mxu0
      %v1113 = vpop.f32.mrb[0].mxu0
      %v1114 = vadd.f32 0.0, %v1113
      %v1115 = vpop.f32.mrb[0].mxu0
      %1116 = vmatprep.mubr.bf16.mxu0 0
      %1117 = vmatmul.mubr.bf16.gmra.mrb[0].mxu0 %v924
      %v1118 = vpop.f32.mrb[0].mxu0
      %v1119 = vadd.f32 0.0, %v1118
      %v1120 = vpop.f32.mrb[0].mxu0
      %v1121 = vpop.f32.mrb[0].mxu0
      %v1122 = vadd.f32 0.0, %v1121
      %v1123 = vpop.f32.mrb[0].mxu0
      %1124 = vmatprep.mubr.bf16.mxu0 0
      %1125 = vmatmul.mubr.bf16.gmra.mrb[0].mxu0 %v925
      %v1126 = vpop.f32.mrb[0].mxu0
      %v1127 = vadd.f32 0.0, %v1126
      %v1128 = vpop.f32.mrb[0].mxu0
      %v1129 = vpop.f32.mrb[0].mxu0
      %v1130 = vadd.f32 0.0, %v1129
      %v1131 = vpop.f32.mrb[0].mxu0
      %1132 = vmatprep.mubr.bf16.mxu0 0
      %1133 = vmatmul.mubr.bf16.gmra.mrb[0].mxu0 %v926
      %v1134 = vpop.f32.mrb[0].mxu0
      %v1135 = vadd.f32 0.0, %v1134
      %v1136 = vpop.f32.mrb[0].mxu0
      %v1137 = vpop.f32.mrb[0].mxu0
      %v1138 = vadd.f32 0.0, %v1137
      %v1139 = vpop.f32.mrb[0].mxu0
      %1140 = vmatprep.mubr.bf16.mxu0 0
      %1141 = vmatmul.mubr.bf16.gmra.mrb[0].mxu0 %v927
      %v1142 = vpop.f32.mrb[0].mxu0
      %v1143 = vadd.f32 0.0, %v1142
      %v1144 = vpop.f32.mrb[0].mxu0
      %v1145 = vpop.f32.mrb[0].mxu0
      %v1146 = vadd.f32 0.0, %v1145
      %v1147 = vpop.f32.mrb[0].mxu0
      %1148 = vmatprep.mubr.bf16.mxu0 0
      %1149 = vmatmul.mubr.bf16.gmra.mrb[0].mxu0 %v928
      %v1150 = vpop.f32.mrb[0].mxu0
      %v1151 = vadd.f32 0.0, %v1150
      %v1152 = vpop.f32.mrb[0].mxu0
      %v1153 = vpop.f32.mrb[0].mxu0
      %v1154 = vadd.f32 0.0, %v1153
      %v1155 = vpop.f32.mrb[0].mxu0
      %1156 = vmatprep.mubr.bf16.mxu0 0
      %1157 = vmatmul.mubr.bf16.gmra.mrb[0].mxu0 %v929
      %v1158 = vpop.f32.mrb[0].mxu0
      %v1159 = vadd.f32 0.0, %v1158
      %v1160 = vpop.f32.mrb[0].mxu0
      %v1161 = vpop.f32.mrb[0].mxu0
      %v1162 = vadd.f32 0.0, %v1161
      %v1163 = vpop.f32.mrb[0].mxu0
      %1164 = vmatprep.mubr.bf16.mxu0 0
      %1165 = vmatmul.mubr.bf16.gmra.mrb[0].mxu0 %v930
      %v1166 = vpop.f32.mrb[0].mxu0
      %v1167 = vadd.f32 0.0, %v1166
      %v1168 = vpop.f32.mrb[0].mxu0
      %v1169 = vpop.f32.mrb[0].mxu0
      %v1170 = vadd.f32 0.0, %v1169
      %v1171 = vpop.f32.mrb[0].mxu0
      %1172 = vdwg.mxu0
      %v1173 = vadd.f32 %v735, %v1031
      %v1174 = vadd.f32 %v738, %v1034
      %v1175 = vadd.f32 %v743, %v1039
      %v1176 = vadd.f32 %v746, %v1042
      %v1177 = vadd.f32 %v751, %v1047
      %v1178 = vadd.f32 %v754, %v1050
      %v1179 = vadd.f32 %v759, %v1055
      %v1180 = vadd.f32 %v762, %v1058
      %v1181 = vadd.f32 %v767, %v1063
      %v1182 = vadd.f32 %v770, %v1066
      %v1183 = vadd.f32 %v775, %v1071
      %v1184 = vadd.f32 %v778, %v1074
      %v1185 = vadd.f32 %v783, %v1079
      %v1186 = vadd.f32 %v786, %v1082
      %v1187 = vadd.f32 %v791, %v1087
      %v1188 = vadd.f32 %v794, %v1090
      %v1189 = vadd.f32 %v799, %v1095
      %v1190 = vadd.f32 %v802, %v1098
      %v1191 = vadd.f32 %v807, %v1103
      %v1192 = vadd.f32 %v810, %v1106
      %v1193 = vadd.f32 %v815, %v1111
      %v1194 = vadd.f32 %v818, %v1114
      %v1195 = vadd.f32 %v823, %v1119
      %v1196 = vadd.f32 %v826, %v1122
      %v1197 = vadd.f32 %v831, %v1127
      %v1198 = vadd.f32 %v834, %v1130
      %v1199 = vadd.f32 %v839, %v1135
      %v1200 = vadd.f32 %v842, %v1138
      %v1201 = vadd.f32 %v847, %v1143
      %v1202 = vadd.f32 %v850, %v1146
      %v1203 = vadd.f32 %v855, %v1151
      %v1204 = vadd.f32 %v858, %v1154
      %v1205 = vadd.f32 %v863, %v1159
      %v1206 = vadd.f32 %v866, %v1162
      %v1207 = vadd.f32 %v871, %v1167
      %v1208 = vadd.f32 %v874, %v1170
      %v1209 = vld [vmem:[%s269 + $0x12] sm:$0xff]
      %v1210 = vld [vmem:[%s269 + $0x1a] sm:$0xff]
      %v1211 = vld [vmem:[%s269 + $0x22] sm:$0xff]
      %v1212 = vld [vmem:[%s269 + $0x2a] sm:$0xff]
      %v1213 = vld [vmem:[%s269 + $0x32] sm:$0xff]
      %v1214 = vld [vmem:[%s269 + $0x3a] sm:$0xff]
      %v1215 = vld [vmem:[%s269 + $0x42] sm:$0xff]
      %v1216 = vld [vmem:[%s269 + $0x4a] sm:$0xff]
      %v1217 = vld [vmem:[%s269 + $0x52] sm:$0xff]
      %v1218 = vld [vmem:[%s269 + $0x5a] sm:$0xff]
      %v1219 = vld [vmem:[%s269 + $0x62] sm:$0xff]
      %v1220 = vld [vmem:[%s269 + $0x6a] sm:$0xff]
      %v1221 = vld [vmem:[%s269 + $0x72] sm:$0xff]
      %v1222 = vld [vmem:[%s269 + $0x7a] sm:$0xff]
      %v1223 = vld [vmem:[%s269 + $0x82] sm:$0xff]
      %v1224 = vld [vmem:[%s269 + $0x8a] sm:$0xff]
      %v1225 = vld [vmem:[%s269 + $0x92] sm:$0xff]
      %v1226 = vld [vmem:[%s269 + $0x9a] sm:$0xff]
      %v1227 = vld [vmem:[%s269 + $0xa2] sm:$0xff]
      %v1228 = vld [vmem:[%s269 + $0xaa] sm:$0xff]
      %v1229 = vld [vmem:[%s269 + $0xb2] sm:$0xff]
      %v1230 = vld [vmem:[%s269 + $0xba] sm:$0xff]
      %v1231 = vld [vmem:[%s269 + $0xc2] sm:$0xff]
      %v1232 = vld [vmem:[%s269 + $0xca] sm:$0xff]
      %v1233 = vld [vmem:[%s269 + $0xd2] sm:$0xff]
      %v1234 = vld [vmem:[%s269 + $0xda] sm:$0xff]
      %v1235 = vld [vmem:[%s269 + $0xe2] sm:$0xff]
      %v1236 = vld [vmem:[%s269 + $0xea] sm:$0xff]
      %v1237 = vld [vmem:[%s269 + $0xf2] sm:$0xff]
      %v1238 = vld [vmem:[%s269 + $0xfa] sm:$0xff]
      %v1239 = vld [vmem:[%s269 + $0x102] sm:$0xff]
      %v1240 = vld [vmem:[%s269 + $0x10a] sm:$0xff]
      %v1241 = vld [vmem:[%s269 + $0x112] sm:$0xff]
      %v1242 = vld [vmem:[%s269 + $0x11a] sm:$0xff]
      %v1243 = vld [vmem:[%s269 + $0x122] sm:$0xff]
      %v1244 = vld [vmem:[%s269 + $0x12a] sm:$0xff]
      %v1245 = vpack.c.bf16 %v1210, %v1209
      %v1246 = vpack.c.bf16 %v1212, %v1211
      %v1247 = vpack.c.bf16 %v1214, %v1213
      %v1248 = vpack.c.bf16 %v1216, %v1215
      %v1249 = vpack.c.bf16 %v1218, %v1217
      %v1250 = vpack.c.bf16 %v1220, %v1219
      %v1251 = vpack.c.bf16 %v1222, %v1221
      %v1252 = vpack.c.bf16 %v1224, %v1223
      %v1253 = vpack.c.bf16 %v1226, %v1225
      %v1254 = vpack.c.bf16 %v1228, %v1227
      %v1255 = vpack.c.bf16 %v1230, %v1229
      %v1256 = vpack.c.bf16 %v1232, %v1231
      %v1257 = vpack.c.bf16 %v1234, %v1233
      %v1258 = vpack.c.bf16 %v1236, %v1235
      %v1259 = vpack.c.bf16 %v1238, %v1237
      %v1260 = vpack.c.bf16 %v1240, %v1239
      %v1261 = vpack.c.bf16 %v1242, %v1241
      %v1262 = vpack.c.bf16 %v1244, %v1243
      %s1263 = scalar_lea.vmem %s2, 192
      %v1264 = vld [vmem:[%s1263] sm:$0xf]
      %v1265 = vld [vmem:[%s1263 + $0x4] sm:$0xf]
      %v1266 = vld [vmem:[%s1263 + $0x8] sm:$0xf]
      %v1267 = vld [vmem:[%s1263 + $0xc] sm:$0xf]
      %v1268 = vld [vmem:[%s1263 + $0x10] sm:$0xf]
      %v1269 = vld [vmem:[%s1263 + $0x14] sm:$0xf]
      %v1270 = vld [vmem:[%s1263 + $0x18] sm:$0xf]
      %v1271 = vld [vmem:[%s1263 + $0x1c] sm:$0xf]
      %v1272 = vld [vmem:[%s1263 + $0x20] sm:$0xf]
      %v1273 = vld [vmem:[%s1263 + $0x24] sm:$0xf]
      %v1274 = vld [vmem:[%s1263 + $0x28] sm:$0xf]
      %v1275 = vld [vmem:[%s1263 + $0x2c] sm:$0xf]
      %v1276 = vld [vmem:[%s1263 + $0x30] sm:$0xf]
      %v1277 = vld [vmem:[%s1263 + $0x34] sm:$0xf]
      %v1278 = vld [vmem:[%s1263 + $0x38] sm:$0xf]
      %v1279 = vld [vmem:[%s1263 + $0x3c] sm:$0xf]
      %v1296 = vunpack.c.l.b16 %v1264
      %v1297 = vunpack.c.l.b16 %v1265
      %v1298 = vunpack.c.l.b16 %v1266
      %v1299 = vunpack.c.l.b16 %v1267
      %v1300 = vunpack.c.l.b16 %v1268
      %v1301 = vunpack.c.l.b16 %v1269
      %v1302 = vunpack.c.l.b16 %v1270
      %v1303 = vunpack.c.l.b16 %v1271
      %v1304 = vunpack.c.l.b16 %v1272
      %v1305 = vunpack.c.l.b16 %v1273
      %v1306 = vunpack.c.l.b16 %v1274
      %v1307 = vunpack.c.l.b16 %v1275
      %v1308 = vunpack.c.l.b16 %v1276
      %v1309 = vunpack.c.l.b16 %v1277
      %v1310 = vunpack.c.l.b16 %v1278
      %v1311 = vunpack.c.l.b16 %v1279
      %v1312 = vpack.c.b16 %v1297, %v1296
      %v1313 = vpack.c.b16 %v1299, %v1298
      %v1314 = vpack.c.b16 %v1301, %v1300
      %v1315 = vpack.c.b16 %v1303, %v1302
      %v1316 = vpack.c.b16 %v1305, %v1304
      %v1317 = vpack.c.b16 %v1307, %v1306
      %v1318 = vpack.c.b16 %v1309, %v1308
      %v1319 = vpack.c.b16 %v1311, %v1310
      %1328 = vmatprep.subr.bf16.mxu0 0
      %1329 = vmatpush1.bf16.msra.mxu0 %v1312
      %1330 = vmatprep.subr.bf16.mxu0 0
      %1331 = vmatpush1.bf16.msra.mxu0 %v1313
      %1332 = vmatprep.subr.bf16.mxu0 0
      %1333 = vmatpush1.bf16.msra.mxu0 %v1314
      %1334 = vmatprep.subr.bf16.mxu0 0
      %1335 = vmatpush1.bf16.msra.mxu0 %v1315
      %1336 = vmatprep.subr.bf16.mxu0 0
      %1337 = vmatpush1.bf16.msra.mxu0 %v1316
      %1338 = vmatprep.subr.bf16.mxu0 0
      %1339 = vmatpush1.bf16.msra.mxu0 %v1317
      %1340 = vmatprep.subr.bf16.mxu0 0
      %1341 = vmatpush1.bf16.msra.mxu0 %v1318
      %1342 = vmatprep.subr.bf16.mxu0 0
      %1343 = vmatpush1.bf16.msra.mxu0 %v1319
      %1344 = vmatprep.subr.bf16.mxu0 0
      %1345 = vmatpush1.bf16.msra.mxu0 0
      %1346 = vmatprep.subr.bf16.mxu0 0
      %1347 = vmatpush1.bf16.msra.mxu0 0
      %1348 = vmatprep.subr.bf16.mxu0 0
      %1349 = vmatpush1.bf16.msra.mxu0 0
      %1350 = vmatprep.subr.bf16.mxu0 0
      %1351 = vmatpush1.bf16.msra.mxu0 0
      %1352 = vmatprep.subr.bf16.mxu0 0
      %1353 = vmatpush1.bf16.msra.mxu0 0
      %1354 = vmatprep.subr.bf16.mxu0 0
      %1355 = vmatpush1.bf16.msra.mxu0 0
      %1356 = vmatprep.subr.bf16.mxu0 0
      %1357 = vmatpush1.bf16.msra.mxu0 0
      %1358 = vmatprep.subr.bf16.mxu0 0
      %1359 = vmatpush1.bf16.msra.mxu0 0
      %1360 = vmatprep.mubr.bf16.mxu0 0
      %1361 = vmatmul.mubr.bf16.gmra.mrb[0].mxu0 %v1245
      %v1362 = vpop.f32.mrb[0].mxu0
      %v1363 = vadd.f32 0.0, %v1362
      %v1364 = vpop.f32.mrb[0].mxu0
      %v1365 = vpop.f32.mrb[0].mxu0
      %v1366 = vadd.f32 0.0, %v1365
      %v1367 = vpop.f32.mrb[0].mxu0
      %1368 = vmatprep.mubr.bf16.mxu0 0
      %1369 = vmatmul.mubr.bf16.gmra.mrb[0].mxu0 %v1246
      %v1370 = vpop.f32.mrb[0].mxu0
      %v1371 = vadd.f32 0.0, %v1370
      %v1372 = vpop.f32.mrb[0].mxu0
      %v1373 = vpop.f32.mrb[0].mxu0
      %v1374 = vadd.f32 0.0, %v1373
      %v1375 = vpop.f32.mrb[0].mxu0
      %1376 = vmatprep.mubr.bf16.mxu0 0
      %1377 = vmatmul.mubr.bf16.gmra.mrb[0].mxu0 %v1247
      %v1378 = vpop.f32.mrb[0].mxu0
      %v1379 = vadd.f32 0.0, %v1378
      %v1380 = vpop.f32.mrb[0].mxu0
      %v1381 = vpop.f32.mrb[0].mxu0
      %v1382 = vadd.f32 0.0, %v1381
      %v1383 = vpop.f32.mrb[0].mxu0
      %1384 = vmatprep.mubr.bf16.mxu0 0
      %1385 = vmatmul.mubr.bf16.gmra.mrb[0].mxu0 %v1248
      %v1386 = vpop.f32.mrb[0].mxu0
      %v1387 = vadd.f32 0.0, %v1386
      %v1388 = vpop.f32.mrb[0].mxu0
      %v1389 = vpop.f32.mrb[0].mxu0
      %v1390 = vadd.f32 0.0, %v1389
      %v1391 = vpop.f32.mrb[0].mxu0
      %1392 = vmatprep.mubr.bf16.mxu0 0
      %1393 = vmatmul.mubr.bf16.gmra.mrb[0].mxu0 %v1249
      %v1394 = vpop.f32.mrb[0].mxu0
      %v1395 = vadd.f32 0.0, %v1394
      %v1396 = vpop.f32.mrb[0].mxu0
      %v1397 = vpop.f32.mrb[0].mxu0
      %v1398 = vadd.f32 0.0, %v1397
      %v1399 = vpop.f32.mrb[0].mxu0
      %1400 = vmatprep.mubr.bf16.mxu0 0
      %1401 = vmatmul.mubr.bf16.gmra.mrb[0].mxu0 %v1250
      %v1402 = vpop.f32.mrb[0].mxu0
      %v1403 = vadd.f32 0.0, %v1402
      %v1404 = vpop.f32.mrb[0].mxu0
      %v1405 = vpop.f32.mrb[0].mxu0
      %v1406 = vadd.f32 0.0, %v1405
      %v1407 = vpop.f32.mrb[0].mxu0
      %1408 = vmatprep.mubr.bf16.mxu0 0
      %1409 = vmatmul.mubr.bf16.gmra.mrb[0].mxu0 %v1251
      %v1410 = vpop.f32.mrb[0].mxu0
      %v1411 = vadd.f32 0.0, %v1410
      %v1412 = vpop.f32.mrb[0].mxu0
      %v1413 = vpop.f32.mrb[0].mxu0
      %v1414 = vadd.f32 0.0, %v1413
      %v1415 = vpop.f32.mrb[0].mxu0
      %1416 = vmatprep.mubr.bf16.mxu0 0
      %1417 = vmatmul.mubr.bf16.gmra.mrb[0].mxu0 %v1252
      %v1418 = vpop.f32.mrb[0].mxu0
      %v1419 = vadd.f32 0.0, %v1418
      %v1420 = vpop.f32.mrb[0].mxu0
      %v1421 = vpop.f32.mrb[0].mxu0
      %v1422 = vadd.f32 0.0, %v1421
      %v1423 = vpop.f32.mrb[0].mxu0
      %1424 = vmatprep.mubr.bf16.mxu0 0
      %1425 = vmatmul.mubr.bf16.gmra.mrb[0].mxu0 %v1253
      %v1426 = vpop.f32.mrb[0].mxu0
      %v1427 = vadd.f32 0.0, %v1426
      %v1428 = vpop.f32.mrb[0].mxu0
      %v1429 = vpop.f32.mrb[0].mxu0
      %v1430 = vadd.f32 0.0, %v1429
      %v1431 = vpop.f32.mrb[0].mxu0
      %1432 = vmatprep.mubr.bf16.mxu0 0
      %1433 = vmatmul.mubr.bf16.gmra.mrb[0].mxu0 %v1254
      %v1434 = vpop.f32.mrb[0].mxu0
      %v1435 = vadd.f32 0.0, %v1434
      %v1436 = vpop.f32.mrb[0].mxu0
      %v1437 = vpop.f32.mrb[0].mxu0
      %v1438 = vadd.f32 0.0, %v1437
      %v1439 = vpop.f32.mrb[0].mxu0
      %1440 = vmatprep.mubr.bf16.mxu0 0
      %1441 = vmatmul.mubr.bf16.gmra.mrb[0].mxu0 %v1255
      %v1442 = vpop.f32.mrb[0].mxu0
      %v1443 = vadd.f32 0.0, %v1442
      %v1444 = vpop.f32.mrb[0].mxu0
      %v1445 = vpop.f32.mrb[0].mxu0
      %v1446 = vadd.f32 0.0, %v1445
      %v1447 = vpop.f32.mrb[0].mxu0
      %1448 = vmatprep.mubr.bf16.mxu0 0
      %1449 = vmatmul.mubr.bf16.gmra.mrb[0].mxu0 %v1256
      %v1450 = vpop.f32.mrb[0].mxu0
      %v1451 = vadd.f32 0.0, %v1450
      %v1452 = vpop.f32.mrb[0].mxu0
      %v1453 = vpop.f32.mrb[0].mxu0
      %v1454 = vadd.f32 0.0, %v1453
      %v1455 = vpop.f32.mrb[0].mxu0
      %1456 = vmatprep.mubr.bf16.mxu0 0
      %1457 = vmatmul.mubr.bf16.gmra.mrb[0].mxu0 %v1257
      %v1458 = vpop.f32.mrb[0].mxu0
      %v1459 = vadd.f32 0.0, %v1458
      %v1460 = vpop.f32.mrb[0].mxu0
      %v1461 = vpop.f32.mrb[0].mxu0
      %v1462 = vadd.f32 0.0, %v1461
      %v1463 = vpop.f32.mrb[0].mxu0
      %1464 = vmatprep.mubr.bf16.mxu0 0
      %1465 = vmatmul.mubr.bf16.gmra.mrb[0].mxu0 %v1258
      %v1466 = vpop.f32.mrb[0].mxu0
      %v1467 = vadd.f32 0.0, %v1466
      %v1468 = vpop.f32.mrb[0].mxu0
      %v1469 = vpop.f32.mrb[0].mxu0
      %v1470 = vadd.f32 0.0, %v1469
      %v1471 = vpop.f32.mrb[0].mxu0
      %1472 = vmatprep.mubr.bf16.mxu0 0
      %1473 = vmatmul.mubr.bf16.gmra.mrb[0].mxu0 %v1259
      %v1474 = vpop.f32.mrb[0].mxu0
      %v1475 = vadd.f32 0.0, %v1474
      %v1476 = vpop.f32.mrb[0].mxu0
      %v1477 = vpop.f32.mrb[0].mxu0
      %v1478 = vadd.f32 0.0, %v1477
      %v1479 = vpop.f32.mrb[0].mxu0
      %1480 = vmatprep.mubr.bf16.mxu0 0
      %1481 = vmatmul.mubr.bf16.gmra.mrb[0].mxu0 %v1260
      %v1482 = vpop.f32.mrb[0].mxu0
      %v1483 = vadd.f32 0.0, %v1482
      %v1484 = vpop.f32.mrb[0].mxu0
      %v1485 = vpop.f32.mrb[0].mxu0
      %v1486 = vadd.f32 0.0, %v1485
      %v1487 = vpop.f32.mrb[0].mxu0
      %1488 = vmatprep.mubr.bf16.mxu0 0
      %1489 = vmatmul.mubr.bf16.gmra.mrb[0].mxu0 %v1261
      %v1490 = vpop.f32.mrb[0].mxu0
      %v1491 = vadd.f32 0.0, %v1490
      %v1492 = vpop.f32.mrb[0].mxu0
      %v1493 = vpop.f32.mrb[0].mxu0
      %v1494 = vadd.f32 0.0, %v1493
      %v1495 = vpop.f32.mrb[0].mxu0
      %1496 = vmatprep.mubr.bf16.mxu0 0
      %1497 = vmatmul.mubr.bf16.gmra.mrb[0].mxu0 %v1262
      %v1498 = vpop.f32.mrb[0].mxu0
      %v1499 = vadd.f32 0.0, %v1498
      %v1500 = vpop.f32.mrb[0].mxu0
      %v1501 = vpop.f32.mrb[0].mxu0
      %v1502 = vadd.f32 0.0, %v1501
      %v1503 = vpop.f32.mrb[0].mxu0
      %1504 = vdwg.mxu0
      %v1505 = vadd.f32 %v1173, %v1363
      %v1506 = vadd.f32 %v1174, %v1366
      %v1507 = vadd.f32 %v1175, %v1371
      %v1508 = vadd.f32 %v1176, %v1374
      %v1509 = vadd.f32 %v1177, %v1379
      %v1510 = vadd.f32 %v1178, %v1382
      %v1511 = vadd.f32 %v1179, %v1387
      %v1512 = vadd.f32 %v1180, %v1390
      %v1513 = vadd.f32 %v1181, %v1395
      %v1514 = vadd.f32 %v1182, %v1398
      %v1515 = vadd.f32 %v1183, %v1403
      %v1516 = vadd.f32 %v1184, %v1406
      %v1517 = vadd.f32 %v1185, %v1411
      %v1518 = vadd.f32 %v1186, %v1414
      %v1519 = vadd.f32 %v1187, %v1419
      %v1520 = vadd.f32 %v1188, %v1422
      %v1521 = vadd.f32 %v1189, %v1427
      %v1522 = vadd.f32 %v1190, %v1430
      %v1523 = vadd.f32 %v1191, %v1435
      %v1524 = vadd.f32 %v1192, %v1438
      %v1525 = vadd.f32 %v1193, %v1443
      %v1526 = vadd.f32 %v1194, %v1446
      %v1527 = vadd.f32 %v1195, %v1451
      %v1528 = vadd.f32 %v1196, %v1454
      %v1529 = vadd.f32 %v1197, %v1459
      %v1530 = vadd.f32 %v1198, %v1462
      %v1531 = vadd.f32 %v1199, %v1467
      %v1532 = vadd.f32 %v1200, %v1470
      %v1533 = vadd.f32 %v1201, %v1475
      %v1534 = vadd.f32 %v1202, %v1478
      %v1535 = vadd.f32 %v1203, %v1483
      %v1536 = vadd.f32 %v1204, %v1486
      %v1537 = vadd.f32 %v1205, %v1491
      %v1538 = vadd.f32 %v1206, %v1494
      %v1539 = vadd.f32 %v1207, %v1499
      %v1540 = vadd.f32 %v1208, %v1502
      %v1541 = vld [vmem:[%s269 + $0x13] sm:$0xff]
      %v1542 = vld [vmem:[%s269 + $0x1b] sm:$0xff]
      %v1543 = vld [vmem:[%s269 + $0x23] sm:$0xff]
      %v1544 = vld [vmem:[%s269 + $0x2b] sm:$0xff]
      %v1545 = vld [vmem:[%s269 + $0x33] sm:$0xff]
      %v1546 = vld [vmem:[%s269 + $0x3b] sm:$0xff]
      %v1547 = vld [vmem:[%s269 + $0x43] sm:$0xff]
      %v1548 = vld [vmem:[%s269 + $0x4b] sm:$0xff]
      %v1549 = vld [vmem:[%s269 + $0x53] sm:$0xff]
      %v1550 = vld [vmem:[%s269 + $0x5b] sm:$0xff]
      %v1551 = vld [vmem:[%s269 + $0x63] sm:$0xff]
      %v1552 = vld [vmem:[%s269 + $0x6b] sm:$0xff]
      %v1553 = vld [vmem:[%s269 + $0x73] sm:$0xff]
      %v1554 = vld [vmem:[%s269 + $0x7b] sm:$0xff]
      %v1555 = vld [vmem:[%s269 + $0x83] sm:$0xff]
      %v1556 = vld [vmem:[%s269 + $0x8b] sm:$0xff]
      %v1557 = vld [vmem:[%s269 + $0x93] sm:$0xff]
      %v1558 = vld [vmem:[%s269 + $0x9b] sm:$0xff]
      %v1559 = vld [vmem:[%s269 + $0xa3] sm:$0xff]
      %v1560 = vld [vmem:[%s269 + $0xab] sm:$0xff]
      %v1561 = vld [vmem:[%s269 + $0xb3] sm:$0xff]
      %v1562 = vld [vmem:[%s269 + $0xbb] sm:$0xff]
      %v1563 = vld [vmem:[%s269 + $0xc3] sm:$0xff]
      %v1564 = vld [vmem:[%s269 + $0xcb] sm:$0xff]
      %v1565 = vld [vmem:[%s269 + $0xd3] sm:$0xff]
      %v1566 = vld [vmem:[%s269 + $0xdb] sm:$0xff]
      %v1567 = vld [vmem:[%s269 + $0xe3] sm:$0xff]
      %v1568 = vld [vmem:[%s269 + $0xeb] sm:$0xff]
      %v1569 = vld [vmem:[%s269 + $0xf3] sm:$0xff]
      %v1570 = vld [vmem:[%s269 + $0xfb] sm:$0xff]
      %v1571 = vld [vmem:[%s269 + $0x103] sm:$0xff]
      %v1572 = vld [vmem:[%s269 + $0x10b] sm:$0xff]
      %v1573 = vld [vmem:[%s269 + $0x113] sm:$0xff]
      %v1574 = vld [vmem:[%s269 + $0x11b] sm:$0xff]
      %v1575 = vld [vmem:[%s269 + $0x123] sm:$0xff]
      %v1576 = vld [vmem:[%s269 + $0x12b] sm:$0xff]
      %v1577 = vpack.c.bf16 %v1542, %v1541
      %v1578 = vpack.c.bf16 %v1544, %v1543
      %v1579 = vpack.c.bf16 %v1546, %v1545
      %v1580 = vpack.c.bf16 %v1548, %v1547
      %v1581 = vpack.c.bf16 %v1550, %v1549
      %v1582 = vpack.c.bf16 %v1552, %v1551
      %v1583 = vpack.c.bf16 %v1554, %v1553
      %v1584 = vpack.c.bf16 %v1556, %v1555
      %v1585 = vpack.c.bf16 %v1558, %v1557
      %v1586 = vpack.c.bf16 %v1560, %v1559
      %v1587 = vpack.c.bf16 %v1562, %v1561
      %v1588 = vpack.c.bf16 %v1564, %v1563
      %v1589 = vpack.c.bf16 %v1566, %v1565
      %v1590 = vpack.c.bf16 %v1568, %v1567
      %v1591 = vpack.c.bf16 %v1570, %v1569
      %v1592 = vpack.c.bf16 %v1572, %v1571
      %v1593 = vpack.c.bf16 %v1574, %v1573
      %v1594 = vpack.c.bf16 %v1576, %v1575
      %s1595 = scalar_lea.vmem %s2, 256
      %v1596 = vld [vmem:[%s1595] sm:$0xf]
      %v1597 = vld [vmem:[%s1595 + $0x4] sm:$0xf]
      %v1598 = vld [vmem:[%s1595 + $0x8] sm:$0xf]
      %v1599 = vld [vmem:[%s1595 + $0xc] sm:$0xf]
      %v1600 = vld [vmem:[%s1595 + $0x10] sm:$0xf]
      %v1601 = vld [vmem:[%s1595 + $0x14] sm:$0xf]
      %v1602 = vld [vmem:[%s1595 + $0x18] sm:$0xf]
      %v1603 = vld [vmem:[%s1595 + $0x1c] sm:$0xf]
      %v1604 = vld [vmem:[%s1595 + $0x20] sm:$0xf]
      %v1605 = vld [vmem:[%s1595 + $0x24] sm:$0xf]
      %v1606 = vld [vmem:[%s1595 + $0x28] sm:$0xf]
      %v1607 = vld [vmem:[%s1595 + $0x2c] sm:$0xf]
      %v1608 = vld [vmem:[%s1595 + $0x30] sm:$0xf]
      %v1609 = vld [vmem:[%s1595 + $0x34] sm:$0xf]
      %v1610 = vld [vmem:[%s1595 + $0x38] sm:$0xf]
      %v1611 = vld [vmem:[%s1595 + $0x3c] sm:$0xf]
      %v1628 = vunpack.c.l.b16 %v1596
      %v1629 = vunpack.c.l.b16 %v1597
      %v1630 = vunpack.c.l.b16 %v1598
      %v1631 = vunpack.c.l.b16 %v1599
      %v1632 = vunpack.c.l.b16 %v1600
      %v1633 = vunpack.c.l.b16 %v1601
      %v1634 = vunpack.c.l.b16 %v1602
      %v1635 = vunpack.c.l.b16 %v1603
      %v1636 = vunpack.c.l.b16 %v1604
      %v1637 = vunpack.c.l.b16 %v1605
      %v1638 = vunpack.c.l.b16 %v1606
      %v1639 = vunpack.c.l.b16 %v1607
      %v1640 = vunpack.c.l.b16 %v1608
      %v1641 = vunpack.c.l.b16 %v1609
      %v1642 = vunpack.c.l.b16 %v1610
      %v1643 = vunpack.c.l.b16 %v1611
      %v1644 = vpack.c.b16 %v1629, %v1628
      %v1645 = vpack.c.b16 %v1631, %v1630
      %v1646 = vpack.c.b16 %v1633, %v1632
      %v1647 = vpack.c.b16 %v1635, %v1634
      %v1648 = vpack.c.b16 %v1637, %v1636
      %v1649 = vpack.c.b16 %v1639, %v1638
      %v1650 = vpack.c.b16 %v1641, %v1640
      %v1651 = vpack.c.b16 %v1643, %v1642
      %1660 = vmatprep.subr.bf16.mxu0 0
      %1661 = vmatpush1.bf16.msra.mxu0 %v1644
      %1662 = vmatprep.subr.bf16.mxu0 0
      %1663 = vmatpush1.bf16.msra.mxu0 %v1645
      %1664 = vmatprep.subr.bf16.mxu0 0
      %1665 = vmatpush1.bf16.msra.mxu0 %v1646
      %1666 = vmatprep.subr.bf16.mxu0 0
      %1667 = vmatpush1.bf16.msra.mxu0 %v1647
      %1668 = vmatprep.subr.bf16.mxu0 0
      %1669 = vmatpush1.bf16.msra.mxu0 %v1648
      %1670 = vmatprep.subr.bf16.mxu0 0
      %1671 = vmatpush1.bf16.msra.mxu0 %v1649
      %1672 = vmatprep.subr.bf16.mxu0 0
      %1673 = vmatpush1.bf16.msra.mxu0 %v1650
      %1674 = vmatprep.subr.bf16.mxu0 0
      %1675 = vmatpush1.bf16.msra.mxu0 %v1651
      %1676 = vmatprep.subr.bf16.mxu0 0
      %1677 = vmatpush1.bf16.msra.mxu0 0
      %1678 = vmatprep.subr.bf16.mxu0 0
      %1679 = vmatpush1.bf16.msra.mxu0 0
      %1680 = vmatprep.subr.bf16.mxu0 0
      %1681 = vmatpush1.bf16.msra.mxu0 0
      %1682 = vmatprep.subr.bf16.mxu0 0
      %1683 = vmatpush1.bf16.msra.mxu0 0
      %1684 = vmatprep.subr.bf16.mxu0 0
      %1685 = vmatpush1.bf16.msra.mxu0 0
      %1686 = vmatprep.subr.bf16.mxu0 0
      %1687 = vmatpush1.bf16.msra.mxu0 0
      %1688 = vmatprep.subr.bf16.mxu0 0
      %1689 = vmatpush1.bf16.msra.mxu0 0
      %1690 = vmatprep.subr.bf16.mxu0 0
      %1691 = vmatpush1.bf16.msra.mxu0 0
      %1692 = vmatprep.mubr.bf16.mxu0 0
      %1693 = vmatmul.mubr.bf16.gmra.mrb[0].mxu0 %v1577
      %v1694 = vpop.f32.mrb[0].mxu0
      %v1695 = vadd.f32 0.0, %v1694
      %v1696 = vpop.f32.mrb[0].mxu0
      %v1697 = vpop.f32.mrb[0].mxu0
      %v1698 = vadd.f32 0.0, %v1697
      %v1699 = vpop.f32.mrb[0].mxu0
      %1700 = vmatprep.mubr.bf16.mxu0 0
      %1701 = vmatmul.mubr.bf16.gmra.mrb[0].mxu0 %v1578
      %v1702 = vpop.f32.mrb[0].mxu0
      %v1703 = vadd.f32 0.0, %v1702
      %v1704 = vpop.f32.mrb[0].mxu0
      %v1705 = vpop.f32.mrb[0].mxu0
      %v1706 = vadd.f32 0.0, %v1705
      %v1707 = vpop.f32.mrb[0].mxu0
      %1708 = vmatprep.mubr.bf16.mxu0 0
      %1709 = vmatmul.mubr.bf16.gmra.mrb[0].mxu0 %v1579
      %v1710 = vpop.f32.mrb[0].mxu0
      %v1711 = vadd.f32 0.0, %v1710
      %v1712 = vpop.f32.mrb[0].mxu0
      %v1713 = vpop.f32.mrb[0].mxu0
      %v1714 = vadd.f32 0.0, %v1713
      %v1715 = vpop.f32.mrb[0].mxu0
      %1716 = vmatprep.mubr.bf16.mxu0 0
      %1717 = vmatmul.mubr.bf16.gmra.mrb[0].mxu0 %v1580
      %v1718 = vpop.f32.mrb[0].mxu0
      %v1719 = vadd.f32 0.0, %v1718
      %v1720 = vpop.f32.mrb[0].mxu0
      %v1721 = vpop.f32.mrb[0].mxu0
      %v1722 = vadd.f32 0.0, %v1721
      %v1723 = vpop.f32.mrb[0].mxu0
      %1724 = vmatprep.mubr.bf16.mxu0 0
      %1725 = vmatmul.mubr.bf16.gmra.mrb[0].mxu0 %v1581
      %v1726 = vpop.f32.mrb[0].mxu0
      %v1727 = vadd.f32 0.0, %v1726
      %v1728 = vpop.f32.mrb[0].mxu0
      %v1729 = vpop.f32.mrb[0].mxu0
      %v1730 = vadd.f32 0.0, %v1729
      %v1731 = vpop.f32.mrb[0].mxu0
      %1732 = vmatprep.mubr.bf16.mxu0 0
      %1733 = vmatmul.mubr.bf16.gmra.mrb[0].mxu0 %v1582
      %v1734 = vpop.f32.mrb[0].mxu0
      %v1735 = vadd.f32 0.0, %v1734
      %v1736 = vpop.f32.mrb[0].mxu0
      %v1737 = vpop.f32.mrb[0].mxu0
      %v1738 = vadd.f32 0.0, %v1737
      %v1739 = vpop.f32.mrb[0].mxu0
      %1740 = vmatprep.mubr.bf16.mxu0 0
      %1741 = vmatmul.mubr.bf16.gmra.mrb[0].mxu0 %v1583
      %v1742 = vpop.f32.mrb[0].mxu0
      %v1743 = vadd.f32 0.0, %v1742
      %v1744 = vpop.f32.mrb[0].mxu0
      %v1745 = vpop.f32.mrb[0].mxu0
      %v1746 = vadd.f32 0.0, %v1745
      %v1747 = vpop.f32.mrb[0].mxu0
      %1748 = vmatprep.mubr.bf16.mxu0 0
      %1749 = vmatmul.mubr.bf16.gmra.mrb[0].mxu0 %v1584
      %v1750 = vpop.f32.mrb[0].mxu0
      %v1751 = vadd.f32 0.0, %v1750
      %v1752 = vpop.f32.mrb[0].mxu0
      %v1753 = vpop.f32.mrb[0].mxu0
      %v1754 = vadd.f32 0.0, %v1753
      %v1755 = vpop.f32.mrb[0].mxu0
      %1756 = vmatprep.mubr.bf16.mxu0 0
      %1757 = vmatmul.mubr.bf16.gmra.mrb[0].mxu0 %v1585
      %v1758 = vpop.f32.mrb[0].mxu0
      %v1759 = vadd.f32 0.0, %v1758
      %v1760 = vpop.f32.mrb[0].mxu0
      %v1761 = vpop.f32.mrb[0].mxu0
      %v1762 = vadd.f32 0.0, %v1761
      %v1763 = vpop.f32.mrb[0].mxu0
      %1764 = vmatprep.mubr.bf16.mxu0 0
      %1765 = vmatmul.mubr.bf16.gmra.mrb[0].mxu0 %v1586
      %v1766 = vpop.f32.mrb[0].mxu0
      %v1767 = vadd.f32 0.0, %v1766
      %v1768 = vpop.f32.mrb[0].mxu0
      %v1769 = vpop.f32.mrb[0].mxu0
      %v1770 = vadd.f32 0.0, %v1769
      %v1771 = vpop.f32.mrb[0].mxu0
      %1772 = vmatprep.mubr.bf16.mxu0 0
      %1773 = vmatmul.mubr.bf16.gmra.mrb[0].mxu0 %v1587
      %v1774 = vpop.f32.mrb[0].mxu0
      %v1775 = vadd.f32 0.0, %v1774
      %v1776 = vpop.f32.mrb[0].mxu0
      %v1777 = vpop.f32.mrb[0].mxu0
      %v1778 = vadd.f32 0.0, %v1777
      %v1779 = vpop.f32.mrb[0].mxu0
      %1780 = vmatprep.mubr.bf16.mxu0 0
      %1781 = vmatmul.mubr.bf16.gmra.mrb[0].mxu0 %v1588
      %v1782 = vpop.f32.mrb[0].mxu0
      %v1783 = vadd.f32 0.0, %v1782
      %v1784 = vpop.f32.mrb[0].mxu0
      %v1785 = vpop.f32.mrb[0].mxu0
      %v1786 = vadd.f32 0.0, %v1785
      %v1787 = vpop.f32.mrb[0].mxu0
      %1788 = vmatprep.mubr.bf16.mxu0 0
      %1789 = vmatmul.mubr.bf16.gmra.mrb[0].mxu0 %v1589
      %v1790 = vpop.f32.mrb[0].mxu0
      %v1791 = vadd.f32 0.0, %v1790
      %v1792 = vpop.f32.mrb[0].mxu0
      %v1793 = vpop.f32.mrb[0].mxu0
      %v1794 = vadd.f32 0.0, %v1793
      %v1795 = vpop.f32.mrb[0].mxu0
      %1796 = vmatprep.mubr.bf16.mxu0 0
      %1797 = vmatmul.mubr.bf16.gmra.mrb[0].mxu0 %v1590
      %v1798 = vpop.f32.mrb[0].mxu0
      %v1799 = vadd.f32 0.0, %v1798
      %v1800 = vpop.f32.mrb[0].mxu0
      %v1801 = vpop.f32.mrb[0].mxu0
      %v1802 = vadd.f32 0.0, %v1801
      %v1803 = vpop.f32.mrb[0].mxu0
      %1804 = vmatprep.mubr.bf16.mxu0 0
      %1805 = vmatmul.mubr.bf16.gmra.mrb[0].mxu0 %v1591
      %v1806 = vpop.f32.mrb[0].mxu0
      %v1807 = vadd.f32 0.0, %v1806
      %v1808 = vpop.f32.mrb[0].mxu0
      %v1809 = vpop.f32.mrb[0].mxu0
      %v1810 = vadd.f32 0.0, %v1809
      %v1811 = vpop.f32.mrb[0].mxu0
      %1812 = vmatprep.mubr.bf16.mxu0 0
      %1813 = vmatmul.mubr.bf16.gmra.mrb[0].mxu0 %v1592
      %v1814 = vpop.f32.mrb[0].mxu0
      %v1815 = vadd.f32 0.0, %v1814
      %v1816 = vpop.f32.mrb[0].mxu0
      %v1817 = vpop.f32.mrb[0].mxu0
      %v1818 = vadd.f32 0.0, %v1817
      %v1819 = vpop.f32.mrb[0].mxu0
      %1820 = vmatprep.mubr.bf16.mxu0 0
      %1821 = vmatmul.mubr.bf16.gmra.mrb[0].mxu0 %v1593
      %v1822 = vpop.f32.mrb[0].mxu0
      %v1823 = vadd.f32 0.0, %v1822
      %v1824 = vpop.f32.mrb[0].mxu0
      %v1825 = vpop.f32.mrb[0].mxu0
      %v1826 = vadd.f32 0.0, %v1825
      %v1827 = vpop.f32.mrb[0].mxu0
      %1828 = vmatprep.mubr.bf16.mxu0 0
      %1829 = vmatmul.mubr.bf16.gmra.mrb[0].mxu0 %v1594
      %v1830 = vpop.f32.mrb[0].mxu0
      %v1831 = vadd.f32 0.0, %v1830
      %v1832 = vpop.f32.mrb[0].mxu0
      %v1833 = vpop.f32.mrb[0].mxu0
      %v1834 = vadd.f32 0.0, %v1833
      %v1835 = vpop.f32.mrb[0].mxu0
      %1836 = vdwg.mxu0
      %v1837 = vadd.f32 %v1505, %v1695
      %v1838 = vadd.f32 %v1506, %v1698
      %v1839 = vadd.f32 %v1507, %v1703
      %v1840 = vadd.f32 %v1508, %v1706
      %v1841 = vadd.f32 %v1509, %v1711
      %v1842 = vadd.f32 %v1510, %v1714
      %v1843 = vadd.f32 %v1511, %v1719
      %v1844 = vadd.f32 %v1512, %v1722
      %v1845 = vadd.f32 %v1513, %v1727
      %v1846 = vadd.f32 %v1514, %v1730
      %v1847 = vadd.f32 %v1515, %v1735
      %v1848 = vadd.f32 %v1516, %v1738
      %v1849 = vadd.f32 %v1517, %v1743
      %v1850 = vadd.f32 %v1518, %v1746
      %v1851 = vadd.f32 %v1519, %v1751
      %v1852 = vadd.f32 %v1520, %v1754
      %v1853 = vadd.f32 %v1521, %v1759
      %v1854 = vadd.f32 %v1522, %v1762
      %v1855 = vadd.f32 %v1523, %v1767
      %v1856 = vadd.f32 %v1524, %v1770
      %v1857 = vadd.f32 %v1525, %v1775
      %v1858 = vadd.f32 %v1526, %v1778
      %v1859 = vadd.f32 %v1527, %v1783
      %v1860 = vadd.f32 %v1528, %v1786
      %v1861 = vadd.f32 %v1529, %v1791
      %v1862 = vadd.f32 %v1530, %v1794
      %v1863 = vadd.f32 %v1531, %v1799
      %v1864 = vadd.f32 %v1532, %v1802
      %v1865 = vadd.f32 %v1533, %v1807
      %v1866 = vadd.f32 %v1534, %v1810
      %v1867 = vadd.f32 %v1535, %v1815
      %v1868 = vadd.f32 %v1536, %v1818
      %v1869 = vadd.f32 %v1537, %v1823
      %v1870 = vadd.f32 %v1538, %v1826
      %v1871 = vadd.f32 %v1539, %v1831
      %v1872 = vadd.f32 %v1540, %v1834
      %v1873 = vld [vmem:[%s269 + $0x14] sm:$0xff]
      %v1874 = vld [vmem:[%s269 + $0x1c] sm:$0xff]
      %v1875 = vld [vmem:[%s269 + $0x24] sm:$0xff]
      %v1876 = vld [vmem:[%s269 + $0x2c] sm:$0xff]
      %v1877 = vld [vmem:[%s269 + $0x34] sm:$0xff]
      %v1878 = vld [vmem:[%s269 + $0x3c] sm:$0xff]
      %v1879 = vld [vmem:[%s269 + $0x44] sm:$0xff]
      %v1880 = vld [vmem:[%s269 + $0x4c] sm:$0xff]
      %v1881 = vld [vmem:[%s269 + $0x54] sm:$0xff]
      %v1882 = vld [vmem:[%s269 + $0x5c] sm:$0xff]
      %v1883 = vld [vmem:[%s269 + $0x64] sm:$0xff]
      %v1884 = vld [vmem:[%s269 + $0x6c] sm:$0xff]
      %v1885 = vld [vmem:[%s269 + $0x74] sm:$0xff]
      %v1886 = vld [vmem:[%s269 + $0x7c] sm:$0xff]
      %v1887 = vld [vmem:[%s269 + $0x84] sm:$0xff]
      %v1888 = vld [vmem:[%s269 + $0x8c] sm:$0xff]
      %v1889 = vld [vmem:[%s269 + $0x94] sm:$0xff]
      %v1890 = vld [vmem:[%s269 + $0x9c] sm:$0xff]
      %v1891 = vld [vmem:[%s269 + $0xa4] sm:$0xff]
      %v1892 = vld [vmem:[%s269 + $0xac] sm:$0xff]
      %v1893 = vld [vmem:[%s269 + $0xb4] sm:$0xff]
      %v1894 = vld [vmem:[%s269 + $0xbc] sm:$0xff]
      %v1895 = vld [vmem:[%s269 + $0xc4] sm:$0xff]
      %v1896 = vld [vmem:[%s269 + $0xcc] sm:$0xff]
      %v1897 = vld [vmem:[%s269 + $0xd4] sm:$0xff]
      %v1898 = vld [vmem:[%s269 + $0xdc] sm:$0xff]
      %v1899 = vld [vmem:[%s269 + $0xe4] sm:$0xff]
      %v1900 = vld [vmem:[%s269 + $0xec] sm:$0xff]
      %v1901 = vld [vmem:[%s269 + $0xf4] sm:$0xff]
      %v1902 = vld [vmem:[%s269 + $0xfc] sm:$0xff]
      %v1903 = vld [vmem:[%s269 + $0x104] sm:$0xff]
      %v1904 = vld [vmem:[%s269 + $0x10c] sm:$0xff]
      %v1905 = vld [vmem:[%s269 + $0x114] sm:$0xff]
      %v1906 = vld [vmem:[%s269 + $0x11c] sm:$0xff]
      %v1907 = vld [vmem:[%s269 + $0x124] sm:$0xff]
      %v1908 = vld [vmem:[%s269 + $0x12c] sm:$0xff]
      %v1909 = vpack.c.bf16 %v1874, %v1873
      %v1910 = vpack.c.bf16 %v1876, %v1875
      %v1911 = vpack.c.bf16 %v1878, %v1877
      %v1912 = vpack.c.bf16 %v1880, %v1879
      %v1913 = vpack.c.bf16 %v1882, %v1881
      %v1914 = vpack.c.bf16 %v1884, %v1883
      %v1915 = vpack.c.bf16 %v1886, %v1885
      %v1916 = vpack.c.bf16 %v1888, %v1887
      %v1917 = vpack.c.bf16 %v1890, %v1889
      %v1918 = vpack.c.bf16 %v1892, %v1891
      %v1919 = vpack.c.bf16 %v1894, %v1893
      %v1920 = vpack.c.bf16 %v1896, %v1895
      %v1921 = vpack.c.bf16 %v1898, %v1897
      %v1922 = vpack.c.bf16 %v1900, %v1899
      %v1923 = vpack.c.bf16 %v1902, %v1901
      %v1924 = vpack.c.bf16 %v1904, %v1903
      %v1925 = vpack.c.bf16 %v1906, %v1905
      %v1926 = vpack.c.bf16 %v1908, %v1907
      %s1927 = scalar_lea.vmem %s2, 320
      %v1928 = vld [vmem:[%s1927] sm:$0xf]
      %v1929 = vld [vmem:[%s1927 + $0x4] sm:$0xf]
      %v1930 = vld [vmem:[%s1927 + $0x8] sm:$0xf]
      %v1931 = vld [vmem:[%s1927 + $0xc] sm:$0xf]
      %v1932 = vld [vmem:[%s1927 + $0x10] sm:$0xf]
      %v1933 = vld [vmem:[%s1927 + $0x14] sm:$0xf]
      %v1934 = vld [vmem:[%s1927 + $0x18] sm:$0xf]
      %v1935 = vld [vmem:[%s1927 + $0x1c] sm:$0xf]
      %v1936 = vld [vmem:[%s1927 + $0x20] sm:$0xf]
      %v1937 = vld [vmem:[%s1927 + $0x24] sm:$0xf]
      %v1938 = vld [vmem:[%s1927 + $0x28] sm:$0xf]
      %v1939 = vld [vmem:[%s1927 + $0x2c] sm:$0xf]
      %v1940 = vld [vmem:[%s1927 + $0x30] sm:$0xf]
      %v1941 = vld [vmem:[%s1927 + $0x34] sm:$0xf]
      %v1942 = vld [vmem:[%s1927 + $0x38] sm:$0xf]
      %v1943 = vld [vmem:[%s1927 + $0x3c] sm:$0xf]
      %v1960 = vunpack.c.l.b16 %v1928
      %v1961 = vunpack.c.l.b16 %v1929
      %v1962 = vunpack.c.l.b16 %v1930
      %v1963 = vunpack.c.l.b16 %v1931
      %v1964 = vunpack.c.l.b16 %v1932
      %v1965 = vunpack.c.l.b16 %v1933
      %v1966 = vunpack.c.l.b16 %v1934
      %v1967 = vunpack.c.l.b16 %v1935
      %v1968 = vunpack.c.l.b16 %v1936
      %v1969 = vunpack.c.l.b16 %v1937
      %v1970 = vunpack.c.l.b16 %v1938
      %v1971 = vunpack.c.l.b16 %v1939
      %v1972 = vunpack.c.l.b16 %v1940
      %v1973 = vunpack.c.l.b16 %v1941
      %v1974 = vunpack.c.l.b16 %v1942
      %v1975 = vunpack.c.l.b16 %v1943
      %v1976 = vpack.c.b16 %v1961, %v1960
      %v1977 = vpack.c.b16 %v1963, %v1962
      %v1978 = vpack.c.b16 %v1965, %v1964
      %v1979 = vpack.c.b16 %v1967, %v1966
      %v1980 = vpack.c.b16 %v1969, %v1968
      %v1981 = vpack.c.b16 %v1971, %v1970
      %v1982 = vpack.c.b16 %v1973, %v1972
      %v1983 = vpack.c.b16 %v1975, %v1974
      %1992 = vmatprep.subr.bf16.mxu0 0
      %1993 = vmatpush1.bf16.msra.mxu0 %v1976
      %1994 = vmatprep.subr.bf16.mxu0 0
      %1995 = vmatpush1.bf16.msra.mxu0 %v1977
      %1996 = vmatprep.subr.bf16.mxu0 0
      %1997 = vmatpush1.bf16.msra.mxu0 %v1978
      %1998 = vmatprep.subr.bf16.mxu0 0
      %1999 = vmatpush1.bf16.msra.mxu0 %v1979
      %2000 = vmatprep.subr.bf16.mxu0 0
      %2001 = vmatpush1.bf16.msra.mxu0 %v1980
      %2002 = vmatprep.subr.bf16.mxu0 0
      %2003 = vmatpush1.bf16.msra.mxu0 %v1981
      %2004 = vmatprep.subr.bf16.mxu0 0
      %2005 = vmatpush1.bf16.msra.mxu0 %v1982
      %2006 = vmatprep.subr.bf16.mxu0 0
      %2007 = vmatpush1.bf16.msra.mxu0 %v1983
      %2008 = vmatprep.subr.bf16.mxu0 0
      %2009 = vmatpush1.bf16.msra.mxu0 0
      %2010 = vmatprep.subr.bf16.mxu0 0
      %2011 = vmatpush1.bf16.msra.mxu0 0
      %2012 = vmatprep.subr.bf16.mxu0 0
      %2013 = vmatpush1.bf16.msra.mxu0 0
      %2014 = vmatprep.subr.bf16.mxu0 0
      %2015 = vmatpush1.bf16.msra.mxu0 0
      %2016 = vmatprep.subr.bf16.mxu0 0
      %2017 = vmatpush1.bf16.msra.mxu0 0
      %2018 = vmatprep.subr.bf16.mxu0 0
      %2019 = vmatpush1.bf16.msra.mxu0 0
      %2020 = vmatprep.subr.bf16.mxu0 0
      %2021 = vmatpush1.bf16.msra.mxu0 0
      %2022 = vmatprep.subr.bf16.mxu0 0
      %2023 = vmatpush1.bf16.msra.mxu0 0
      %2024 = vmatprep.mubr.bf16.mxu0 0
      %2025 = vmatmul.mubr.bf16.gmra.mrb[0].mxu0 %v1909
      %v2026 = vpop.f32.mrb[0].mxu0
      %v2027 = vadd.f32 0.0, %v2026
      %v2028 = vpop.f32.mrb[0].mxu0
      %v2029 = vpop.f32.mrb[0].mxu0
      %v2030 = vadd.f32 0.0, %v2029
      %v2031 = vpop.f32.mrb[0].mxu0
      %2032 = vmatprep.mubr.bf16.mxu0 0
      %2033 = vmatmul.mubr.bf16.gmra.mrb[0].mxu0 %v1910
      %v2034 = vpop.f32.mrb[0].mxu0
      %v2035 = vadd.f32 0.0, %v2034
      %v2036 = vpop.f32.mrb[0].mxu0
      %v2037 = vpop.f32.mrb[0].mxu0
      %v2038 = vadd.f32 0.0, %v2037
      %v2039 = vpop.f32.mrb[0].mxu0
      %2040 = vmatprep.mubr.bf16.mxu0 0
      %2041 = vmatmul.mubr.bf16.gmra.mrb[0].mxu0 %v1911
      %v2042 = vpop.f32.mrb[0].mxu0
      %v2043 = vadd.f32 0.0, %v2042
      %v2044 = vpop.f32.mrb[0].mxu0
      %v2045 = vpop.f32.mrb[0].mxu0
      %v2046 = vadd.f32 0.0, %v2045
      %v2047 = vpop.f32.mrb[0].mxu0
      %2048 = vmatprep.mubr.bf16.mxu0 0
      %2049 = vmatmul.mubr.bf16.gmra.mrb[0].mxu0 %v1912
      %v2050 = vpop.f32.mrb[0].mxu0
      %v2051 = vadd.f32 0.0, %v2050
      %v2052 = vpop.f32.mrb[0].mxu0
      %v2053 = vpop.f32.mrb[0].mxu0
      %v2054 = vadd.f32 0.0, %v2053
      %v2055 = vpop.f32.mrb[0].mxu0
      %2056 = vmatprep.mubr.bf16.mxu0 0
      %2057 = vmatmul.mubr.bf16.gmra.mrb[0].mxu0 %v1913
      %v2058 = vpop.f32.mrb[0].mxu0
      %v2059 = vadd.f32 0.0, %v2058
      %v2060 = vpop.f32.mrb[0].mxu0
      %v2061 = vpop.f32.mrb[0].mxu0
      %v2062 = vadd.f32 0.0, %v2061
      %v2063 = vpop.f32.mrb[0].mxu0
      %2064 = vmatprep.mubr.bf16.mxu0 0
      %2065 = vmatmul.mubr.bf16.gmra.mrb[0].mxu0 %v1914
      %v2066 = vpop.f32.mrb[0].mxu0
      %v2067 = vadd.f32 0.0, %v2066
      %v2068 = vpop.f32.mrb[0].mxu0
      %v2069 = vpop.f32.mrb[0].mxu0
      %v2070 = vadd.f32 0.0, %v2069
      %v2071 = vpop.f32.mrb[0].mxu0
      %2072 = vmatprep.mubr.bf16.mxu0 0
      %2073 = vmatmul.mubr.bf16.gmra.mrb[0].mxu0 %v1915
      %v2074 = vpop.f32.mrb[0].mxu0
      %v2075 = vadd.f32 0.0, %v2074
      %v2076 = vpop.f32.mrb[0].mxu0
      %v2077 = vpop.f32.mrb[0].mxu0
      %v2078 = vadd.f32 0.0, %v2077
      %v2079 = vpop.f32.mrb[0].mxu0
      %2080 = vmatprep.mubr.bf16.mxu0 0
      %2081 = vmatmul.mubr.bf16.gmra.mrb[0].mxu0 %v1916
      %v2082 = vpop.f32.mrb[0].mxu0
      %v2083 = vadd.f32 0.0, %v2082
      %v2084 = vpop.f32.mrb[0].mxu0
      %v2085 = vpop.f32.mrb[0].mxu0
      %v2086 = vadd.f32 0.0, %v2085
      %v2087 = vpop.f32.mrb[0].mxu0
      %2088 = vmatprep.mubr.bf16.mxu0 0
      %2089 = vmatmul.mubr.bf16.gmra.mrb[0].mxu0 %v1917
      %v2090 = vpop.f32.mrb[0].mxu0
      %v2091 = vadd.f32 0.0, %v2090
      %v2092 = vpop.f32.mrb[0].mxu0
      %v2093 = vpop.f32.mrb[0].mxu0
      %v2094 = vadd.f32 0.0, %v2093
      %v2095 = vpop.f32.mrb[0].mxu0
      %2096 = vmatprep.mubr.bf16.mxu0 0
      %2097 = vmatmul.mubr.bf16.gmra.mrb[0].mxu0 %v1918
      %v2098 = vpop.f32.mrb[0].mxu0
      %v2099 = vadd.f32 0.0, %v2098
      %v2100 = vpop.f32.mrb[0].mxu0
      %v2101 = vpop.f32.mrb[0].mxu0
      %v2102 = vadd.f32 0.0, %v2101
      %v2103 = vpop.f32.mrb[0].mxu0
      %2104 = vmatprep.mubr.bf16.mxu0 0
      %2105 = vmatmul.mubr.bf16.gmra.mrb[0].mxu0 %v1919
      %v2106 = vpop.f32.mrb[0].mxu0
      %v2107 = vadd.f32 0.0, %v2106
      %v2108 = vpop.f32.mrb[0].mxu0
      %v2109 = vpop.f32.mrb[0].mxu0
      %v2110 = vadd.f32 0.0, %v2109
      %v2111 = vpop.f32.mrb[0].mxu0
      %2112 = vmatprep.mubr.bf16.mxu0 0
      %2113 = vmatmul.mubr.bf16.gmra.mrb[0].mxu0 %v1920
      %v2114 = vpop.f32.mrb[0].mxu0
      %v2115 = vadd.f32 0.0, %v2114
      %v2116 = vpop.f32.mrb[0].mxu0
      %v2117 = vpop.f32.mrb[0].mxu0
      %v2118 = vadd.f32 0.0, %v2117
      %v2119 = vpop.f32.mrb[0].mxu0
      %2120 = vmatprep.mubr.bf16.mxu0 0
      %2121 = vmatmul.mubr.bf16.gmra.mrb[0].mxu0 %v1921
      %v2122 = vpop.f32.mrb[0].mxu0
      %v2123 = vadd.f32 0.0, %v2122
      %v2124 = vpop.f32.mrb[0].mxu0
      %v2125 = vpop.f32.mrb[0].mxu0
      %v2126 = vadd.f32 0.0, %v2125
      %v2127 = vpop.f32.mrb[0].mxu0
      %2128 = vmatprep.mubr.bf16.mxu0 0
      %2129 = vmatmul.mubr.bf16.gmra.mrb[0].mxu0 %v1922
      %v2130 = vpop.f32.mrb[0].mxu0
      %v2131 = vadd.f32 0.0, %v2130
      %v2132 = vpop.f32.mrb[0].mxu0
      %v2133 = vpop.f32.mrb[0].mxu0
      %v2134 = vadd.f32 0.0, %v2133
      %v2135 = vpop.f32.mrb[0].mxu0
      %2136 = vmatprep.mubr.bf16.mxu0 0
      %2137 = vmatmul.mubr.bf16.gmra.mrb[0].mxu0 %v1923
      %v2138 = vpop.f32.mrb[0].mxu0
      %v2139 = vadd.f32 0.0, %v2138
      %v2140 = vpop.f32.mrb[0].mxu0
      %v2141 = vpop.f32.mrb[0].mxu0
      %v2142 = vadd.f32 0.0, %v2141
      %v2143 = vpop.f32.mrb[0].mxu0
      %2144 = vmatprep.mubr.bf16.mxu0 0
      %2145 = vmatmul.mubr.bf16.gmra.mrb[0].mxu0 %v1924
      %v2146 = vpop.f32.mrb[0].mxu0
      %v2147 = vadd.f32 0.0, %v2146
      %v2148 = vpop.f32.mrb[0].mxu0
      %v2149 = vpop.f32.mrb[0].mxu0
      %v2150 = vadd.f32 0.0, %v2149
      %v2151 = vpop.f32.mrb[0].mxu0
      %2152 = vmatprep.mubr.bf16.mxu0 0
      %2153 = vmatmul.mubr.bf16.gmra.mrb[0].mxu0 %v1925
      %v2154 = vpop.f32.mrb[0].mxu0
      %v2155 = vadd.f32 0.0, %v2154
      %v2156 = vpop.f32.mrb[0].mxu0
      %v2157 = vpop.f32.mrb[0].mxu0
      %v2158 = vadd.f32 0.0, %v2157
      %v2159 = vpop.f32.mrb[0].mxu0
      %2160 = vmatprep.mubr.bf16.mxu0 0
      %2161 = vmatmul.mubr.bf16.gmra.mrb[0].mxu0 %v1926
      %v2162 = vpop.f32.mrb[0].mxu0
      %v2163 = vadd.f32 0.0, %v2162
      %v2164 = vpop.f32.mrb[0].mxu0
      %v2165 = vpop.f32.mrb[0].mxu0
      %v2166 = vadd.f32 0.0, %v2165
      %v2167 = vpop.f32.mrb[0].mxu0
      %2168 = vdwg.mxu0
      %v2169 = vadd.f32 %v1837, %v2027
      %v2170 = vadd.f32 %v1838, %v2030
      %v2171 = vadd.f32 %v1839, %v2035
      %v2172 = vadd.f32 %v1840, %v2038
      %v2173 = vadd.f32 %v1841, %v2043
      %v2174 = vadd.f32 %v1842, %v2046
      %v2175 = vadd.f32 %v1843, %v2051
      %v2176 = vadd.f32 %v1844, %v2054
      %v2177 = vadd.f32 %v1845, %v2059
      %v2178 = vadd.f32 %v1846, %v2062
      %v2179 = vadd.f32 %v1847, %v2067
      %v2180 = vadd.f32 %v1848, %v2070
      %v2181 = vadd.f32 %v1849, %v2075
      %v2182 = vadd.f32 %v1850, %v2078
      %v2183 = vadd.f32 %v1851, %v2083
      %v2184 = vadd.f32 %v1852, %v2086
      %v2185 = vadd.f32 %v1853, %v2091
      %v2186 = vadd.f32 %v1854, %v2094
      %v2187 = vadd.f32 %v1855, %v2099
      %v2188 = vadd.f32 %v1856, %v2102
      %v2189 = vadd.f32 %v1857, %v2107
      %v2190 = vadd.f32 %v1858, %v2110
      %v2191 = vadd.f32 %v1859, %v2115
      %v2192 = vadd.f32 %v1860, %v2118
      %v2193 = vadd.f32 %v1861, %v2123
      %v2194 = vadd.f32 %v1862, %v2126
      %v2195 = vadd.f32 %v1863, %v2131
      %v2196 = vadd.f32 %v1864, %v2134
      %v2197 = vadd.f32 %v1865, %v2139
      %v2198 = vadd.f32 %v1866, %v2142
      %v2199 = vadd.f32 %v1867, %v2147
      %v2200 = vadd.f32 %v1868, %v2150
      %v2201 = vadd.f32 %v1869, %v2155
      %v2202 = vadd.f32 %v1870, %v2158
      %v2203 = vadd.f32 %v1871, %v2163
      %v2204 = vadd.f32 %v1872, %v2166
      %v2205 = vld [vmem:[%s269 + $0x24] sm:$0xff]
      %v2206 = vld [vmem:[%s269 + $0x2c] sm:$0xff]
      %v2207 = vld [vmem:[%s269 + $0x34] sm:$0xff]
      %v2208 = vld [vmem:[%s269 + $0x3c] sm:$0xff]
      %v2209 = vld [vmem:[%s269 + $0x44] sm:$0xff]
      %v2210 = vld [vmem:[%s269 + $0x4c] sm:$0xff]
      %v2211 = vld [vmem:[%s269 + $0x54] sm:$0xff]
      %v2212 = vld [vmem:[%s269 + $0x5c] sm:$0xff]
      %v2213 = vld [vmem:[%s269 + $0x64] sm:$0xff]
      %v2214 = vld [vmem:[%s269 + $0x6c] sm:$0xff]
      %v2215 = vld [vmem:[%s269 + $0x74] sm:$0xff]
      %v2216 = vld [vmem:[%s269 + $0x7c] sm:$0xff]
      %v2217 = vld [vmem:[%s269 + $0x84] sm:$0xff]
      %v2218 = vld [vmem:[%s269 + $0x8c] sm:$0xff]
      %v2219 = vld [vmem:[%s269 + $0x94] sm:$0xff]
      %v2220 = vld [vmem:[%s269 + $0x9c] sm:$0xff]
      %v2221 = vld [vmem:[%s269 + $0xa4] sm:$0xff]
      %v2222 = vld [vmem:[%s269 + $0xac] sm:$0xff]
      %v2223 = vld [vmem:[%s269 + $0xb4] sm:$0xff]
      %v2224 = vld [vmem:[%s269 + $0xbc] sm:$0xff]
      %v2225 = vld [vmem:[%s269 + $0xc4] sm:$0xff]
      %v2226 = vld [vmem:[%s269 + $0xcc] sm:$0xff]
      %v2227 = vld [vmem:[%s269 + $0xd4] sm:$0xff]
      %v2228 = vld [vmem:[%s269 + $0xdc] sm:$0xff]
      %v2229 = vld [vmem:[%s269 + $0xe4] sm:$0xff]
      %v2230 = vld [vmem:[%s269 + $0xec] sm:$0xff]
      %v2231 = vld [vmem:[%s269 + $0xf4] sm:$0xff]
      %v2232 = vld [vmem:[%s269 + $0xfc] sm:$0xff]
      %v2233 = vld [vmem:[%s269 + $0x104] sm:$0xff]
      %v2234 = vld [vmem:[%s269 + $0x10c] sm:$0xff]
      %v2235 = vld [vmem:[%s269 + $0x114] sm:$0xff]
      %v2236 = vld [vmem:[%s269 + $0x11c] sm:$0xff]
      %v2237 = vld [vmem:[%s269 + $0x124] sm:$0xff]
      %v2238 = vld [vmem:[%s269 + $0x12c] sm:$0xff]
      %v2239 = vld [vmem:[%s269 + $0x134] sm:$0xff]
      %v2240 = vld [vmem:[%s269 + $0x13c] sm:$0xff]
      %v2241 = vpack.c.bf16 %v2206, %v2205
      %v2242 = vpack.c.bf16 %v2208, %v2207
      %v2243 = vpack.c.bf16 %v2210, %v2209
      %v2244 = vpack.c.bf16 %v2212, %v2211
      %v2245 = vpack.c.bf16 %v2214, %v2213
      %v2246 = vpack.c.bf16 %v2216, %v2215
      %v2247 = vpack.c.bf16 %v2218, %v2217
      %v2248 = vpack.c.bf16 %v2220, %v2219
      %v2249 = vpack.c.bf16 %v2222, %v2221
      %v2250 = vpack.c.bf16 %v2224, %v2223
      %v2251 = vpack.c.bf16 %v2226, %v2225
      %v2252 = vpack.c.bf16 %v2228, %v2227
      %v2253 = vpack.c.bf16 %v2230, %v2229
      %v2254 = vpack.c.bf16 %v2232, %v2231
      %v2255 = vpack.c.bf16 %v2234, %v2233
      %v2256 = vpack.c.bf16 %v2236, %v2235
      %v2257 = vpack.c.bf16 %v2238, %v2237
      %v2258 = vpack.c.bf16 %v2240, %v2239
      %s2259 = scalar_lea.vmem %s2, 384
      %v2260 = vld [vmem:[%s2259] sm:$0xf]
      %v2261 = vld [vmem:[%s2259 + $0x4] sm:$0xf]
      %v2262 = vld [vmem:[%s2259 + $0x8] sm:$0xf]
      %v2263 = vld [vmem:[%s2259 + $0xc] sm:$0xf]
      %v2264 = vld [vmem:[%s2259 + $0x10] sm:$0xf]
      %v2265 = vld [vmem:[%s2259 + $0x14] sm:$0xf]
      %v2266 = vld [vmem:[%s2259 + $0x18] sm:$0xf]
      %v2267 = vld [vmem:[%s2259 + $0x1c] sm:$0xf]
      %v2268 = vld [vmem:[%s2259 + $0x20] sm:$0xf]
      %v2269 = vld [vmem:[%s2259 + $0x24] sm:$0xf]
      %v2270 = vld [vmem:[%s2259 + $0x28] sm:$0xf]
      %v2271 = vld [vmem:[%s2259 + $0x2c] sm:$0xf]
      %v2272 = vld [vmem:[%s2259 + $0x30] sm:$0xf]
      %v2273 = vld [vmem:[%s2259 + $0x34] sm:$0xf]
      %v2274 = vld [vmem:[%s2259 + $0x38] sm:$0xf]
      %v2275 = vld [vmem:[%s2259 + $0x3c] sm:$0xf]
      %v2292 = vunpack.c.l.b16 %v2260
      %v2293 = vunpack.c.l.b16 %v2261
      %v2294 = vunpack.c.l.b16 %v2262
      %v2295 = vunpack.c.l.b16 %v2263
      %v2296 = vunpack.c.l.b16 %v2264
      %v2297 = vunpack.c.l.b16 %v2265
      %v2298 = vunpack.c.l.b16 %v2266
      %v2299 = vunpack.c.l.b16 %v2267
      %v2300 = vunpack.c.l.b16 %v2268
      %v2301 = vunpack.c.l.b16 %v2269
      %v2302 = vunpack.c.l.b16 %v2270
      %v2303 = vunpack.c.l.b16 %v2271
      %v2304 = vunpack.c.l.b16 %v2272
      %v2305 = vunpack.c.l.b16 %v2273
      %v2306 = vunpack.c.l.b16 %v2274
      %v2307 = vunpack.c.l.b16 %v2275
      %v2308 = vpack.c.b16 %v2293, %v2292
      %v2309 = vpack.c.b16 %v2295, %v2294
      %v2310 = vpack.c.b16 %v2297, %v2296
      %v2311 = vpack.c.b16 %v2299, %v2298
      %v2312 = vpack.c.b16 %v2301, %v2300
      %v2313 = vpack.c.b16 %v2303, %v2302
      %v2314 = vpack.c.b16 %v2305, %v2304
      %v2315 = vpack.c.b16 %v2307, %v2306
      %2324 = vmatprep.subr.bf16.mxu0 0
      %2325 = vmatpush1.bf16.msra.mxu0 %v2308
      %2326 = vmatprep.subr.bf16.mxu0 0
      %2327 = vmatpush1.bf16.msra.mxu0 %v2309
      %2328 = vmatprep.subr.bf16.mxu0 0
      %2329 = vmatpush1.bf16.msra.mxu0 %v2310
      %2330 = vmatprep.subr.bf16.mxu0 0
      %2331 = vmatpush1.bf16.msra.mxu0 %v2311
      %2332 = vmatprep.subr.bf16.mxu0 0
      %2333 = vmatpush1.bf16.msra.mxu0 %v2312
      %2334 = vmatprep.subr.bf16.mxu0 0
      %2335 = vmatpush1.bf16.msra.mxu0 %v2313
      %2336 = vmatprep.subr.bf16.mxu0 0
      %2337 = vmatpush1.bf16.msra.mxu0 %v2314
      %2338 = vmatprep.subr.bf16.mxu0 0
      %2339 = vmatpush1.bf16.msra.mxu0 %v2315
      %2340 = vmatprep.subr.bf16.mxu0 0
      %2341 = vmatpush1.bf16.msra.mxu0 0
      %2342 = vmatprep.subr.bf16.mxu0 0
      %2343 = vmatpush1.bf16.msra.mxu0 0
      %2344 = vmatprep.subr.bf16.mxu0 0
      %2345 = vmatpush1.bf16.msra.mxu0 0
      %2346 = vmatprep.subr.bf16.mxu0 0
      %2347 = vmatpush1.bf16.msra.mxu0 0
      %2348 = vmatprep.subr.bf16.mxu0 0
      %2349 = vmatpush1.bf16.msra.mxu0 0
      %2350 = vmatprep.subr.bf16.mxu0 0
      %2351 = vmatpush1.bf16.msra.mxu0 0
      %2352 = vmatprep.subr.bf16.mxu0 0
      %2353 = vmatpush1.bf16.msra.mxu0 0
      %2354 = vmatprep.subr.bf16.mxu0 0
      %2355 = vmatpush1.bf16.msra.mxu0 0
      %2356 = vmatprep.mubr.bf16.mxu0 0
      %2357 = vmatmul.mubr.bf16.gmra.mrb[0].mxu0 %v2241
      %v2358 = vpop.f32.mrb[0].mxu0
      %v2359 = vadd.f32 0.0, %v2358
      %v2360 = vpop.f32.mrb[0].mxu0
      %v2361 = vpop.f32.mrb[0].mxu0
      %v2362 = vadd.f32 0.0, %v2361
      %v2363 = vpop.f32.mrb[0].mxu0
      %2364 = vmatprep.mubr.bf16.mxu0 0
      %2365 = vmatmul.mubr.bf16.gmra.mrb[0].mxu0 %v2242
      %v2366 = vpop.f32.mrb[0].mxu0
      %v2367 = vadd.f32 0.0, %v2366
      %v2368 = vpop.f32.mrb[0].mxu0
      %v2369 = vpop.f32.mrb[0].mxu0
      %v2370 = vadd.f32 0.0, %v2369
      %v2371 = vpop.f32.mrb[0].mxu0
      %2372 = vmatprep.mubr.bf16.mxu0 0
      %2373 = vmatmul.mubr.bf16.gmra.mrb[0].mxu0 %v2243
      %v2374 = vpop.f32.mrb[0].mxu0
      %v2375 = vadd.f32 0.0, %v2374
      %v2376 = vpop.f32.mrb[0].mxu0
      %v2377 = vpop.f32.mrb[0].mxu0
      %v2378 = vadd.f32 0.0, %v2377
      %v2379 = vpop.f32.mrb[0].mxu0
      %2380 = vmatprep.mubr.bf16.mxu0 0
      %2381 = vmatmul.mubr.bf16.gmra.mrb[0].mxu0 %v2244
      %v2382 = vpop.f32.mrb[0].mxu0
      %v2383 = vadd.f32 0.0, %v2382
      %v2384 = vpop.f32.mrb[0].mxu0
      %v2385 = vpop.f32.mrb[0].mxu0
      %v2386 = vadd.f32 0.0, %v2385
      %v2387 = vpop.f32.mrb[0].mxu0
      %2388 = vmatprep.mubr.bf16.mxu0 0
      %2389 = vmatmul.mubr.bf16.gmra.mrb[0].mxu0 %v2245
      %v2390 = vpop.f32.mrb[0].mxu0
      %v2391 = vadd.f32 0.0, %v2390
      %v2392 = vpop.f32.mrb[0].mxu0
      %v2393 = vpop.f32.mrb[0].mxu0
      %v2394 = vadd.f32 0.0, %v2393
      %v2395 = vpop.f32.mrb[0].mxu0
      %2396 = vmatprep.mubr.bf16.mxu0 0
      %2397 = vmatmul.mubr.bf16.gmra.mrb[0].mxu0 %v2246
      %v2398 = vpop.f32.mrb[0].mxu0
      %v2399 = vadd.f32 0.0, %v2398
      %v2400 = vpop.f32.mrb[0].mxu0
      %v2401 = vpop.f32.mrb[0].mxu0
      %v2402 = vadd.f32 0.0, %v2401
      %v2403 = vpop.f32.mrb[0].mxu0
      %2404 = vmatprep.mubr.bf16.mxu0 0
      %2405 = vmatmul.mubr.bf16.gmra.mrb[0].mxu0 %v2247
      %v2406 = vpop.f32.mrb[0].mxu0
      %v2407 = vadd.f32 0.0, %v2406
      %v2408 = vpop.f32.mrb[0].mxu0
      %v2409 = vpop.f32.mrb[0].mxu0
      %v2410 = vadd.f32 0.0, %v2409
      %v2411 = vpop.f32.mrb[0].mxu0
      %2412 = vmatprep.mubr.bf16.mxu0 0
      %2413 = vmatmul.mubr.bf16.gmra.mrb[0].mxu0 %v2248
      %v2414 = vpop.f32.mrb[0].mxu0
      %v2415 = vadd.f32 0.0, %v2414
      %v2416 = vpop.f32.mrb[0].mxu0
      %v2417 = vpop.f32.mrb[0].mxu0
      %v2418 = vadd.f32 0.0, %v2417
      %v2419 = vpop.f32.mrb[0].mxu0
      %2420 = vmatprep.mubr.bf16.mxu0 0
      %2421 = vmatmul.mubr.bf16.gmra.mrb[0].mxu0 %v2249
      %v2422 = vpop.f32.mrb[0].mxu0
      %v2423 = vadd.f32 0.0, %v2422
      %v2424 = vpop.f32.mrb[0].mxu0
      %v2425 = vpop.f32.mrb[0].mxu0
      %v2426 = vadd.f32 0.0, %v2425
      %v2427 = vpop.f32.mrb[0].mxu0
      %2428 = vmatprep.mubr.bf16.mxu0 0
      %2429 = vmatmul.mubr.bf16.gmra.mrb[0].mxu0 %v2250
      %v2430 = vpop.f32.mrb[0].mxu0
      %v2431 = vadd.f32 0.0, %v2430
      %v2432 = vpop.f32.mrb[0].mxu0
      %v2433 = vpop.f32.mrb[0].mxu0
      %v2434 = vadd.f32 0.0, %v2433
      %v2435 = vpop.f32.mrb[0].mxu0
      %2436 = vmatprep.mubr.bf16.mxu0 0
      %2437 = vmatmul.mubr.bf16.gmra.mrb[0].mxu0 %v2251
      %v2438 = vpop.f32.mrb[0].mxu0
      %v2439 = vadd.f32 0.0, %v2438
      %v2440 = vpop.f32.mrb[0].mxu0
      %v2441 = vpop.f32.mrb[0].mxu0
      %v2442 = vadd.f32 0.0, %v2441
      %v2443 = vpop.f32.mrb[0].mxu0
      %2444 = vmatprep.mubr.bf16.mxu0 0
      %2445 = vmatmul.mubr.bf16.gmra.mrb[0].mxu0 %v2252
      %v2446 = vpop.f32.mrb[0].mxu0
      %v2447 = vadd.f32 0.0, %v2446
      %v2448 = vpop.f32.mrb[0].mxu0
      %v2449 = vpop.f32.mrb[0].mxu0
      %v2450 = vadd.f32 0.0, %v2449
      %v2451 = vpop.f32.mrb[0].mxu0
      %2452 = vmatprep.mubr.bf16.mxu0 0
      %2453 = vmatmul.mubr.bf16.gmra.mrb[0].mxu0 %v2253
      %v2454 = vpop.f32.mrb[0].mxu0
      %v2455 = vadd.f32 0.0, %v2454
      %v2456 = vpop.f32.mrb[0].mxu0
      %v2457 = vpop.f32.mrb[0].mxu0
      %v2458 = vadd.f32 0.0, %v2457
      %v2459 = vpop.f32.mrb[0].mxu0
      %2460 = vmatprep.mubr.bf16.mxu0 0
      %2461 = vmatmul.mubr.bf16.gmra.mrb[0].mxu0 %v2254
      %v2462 = vpop.f32.mrb[0].mxu0
      %v2463 = vadd.f32 0.0, %v2462
      %v2464 = vpop.f32.mrb[0].mxu0
      %v2465 = vpop.f32.mrb[0].mxu0
      %v2466 = vadd.f32 0.0, %v2465
      %v2467 = vpop.f32.mrb[0].mxu0
      %2468 = vmatprep.mubr.bf16.mxu0 0
      %2469 = vmatmul.mubr.bf16.gmra.mrb[0].mxu0 %v2255
      %v2470 = vpop.f32.mrb[0].mxu0
      %v2471 = vadd.f32 0.0, %v2470
      %v2472 = vpop.f32.mrb[0].mxu0
      %v2473 = vpop.f32.mrb[0].mxu0
      %v2474 = vadd.f32 0.0, %v2473
      %v2475 = vpop.f32.mrb[0].mxu0
      %2476 = vmatprep.mubr.bf16.mxu0 0
      %2477 = vmatmul.mubr.bf16.gmra.mrb[0].mxu0 %v2256
      %v2478 = vpop.f32.mrb[0].mxu0
      %v2479 = vadd.f32 0.0, %v2478
      %v2480 = vpop.f32.mrb[0].mxu0
      %v2481 = vpop.f32.mrb[0].mxu0
      %v2482 = vadd.f32 0.0, %v2481
      %v2483 = vpop.f32.mrb[0].mxu0
      %2484 = vmatprep.mubr.bf16.mxu0 0
      %2485 = vmatmul.mubr.bf16.gmra.mrb[0].mxu0 %v2257
      %v2486 = vpop.f32.mrb[0].mxu0
      %v2487 = vadd.f32 0.0, %v2486
      %v2488 = vpop.f32.mrb[0].mxu0
      %v2489 = vpop.f32.mrb[0].mxu0
      %v2490 = vadd.f32 0.0, %v2489
      %v2491 = vpop.f32.mrb[0].mxu0
      %2492 = vmatprep.mubr.bf16.mxu0 0
      %2493 = vmatmul.mubr.bf16.gmra.mrb[0].mxu0 %v2258
      %v2494 = vpop.f32.mrb[0].mxu0
      %v2495 = vadd.f32 0.0, %v2494
      %v2496 = vpop.f32.mrb[0].mxu0
      %v2497 = vpop.f32.mrb[0].mxu0
      %v2498 = vadd.f32 0.0, %v2497
      %v2499 = vpop.f32.mrb[0].mxu0
      %2500 = vdwg.mxu0
      %v2501 = vadd.f32 %v2169, %v2359
      %v2502 = vadd.f32 %v2170, %v2362
      %v2503 = vadd.f32 %v2171, %v2367
      %v2504 = vadd.f32 %v2172, %v2370
      %v2505 = vadd.f32 %v2173, %v2375
      %v2506 = vadd.f32 %v2174, %v2378
      %v2507 = vadd.f32 %v2175, %v2383
      %v2508 = vadd.f32 %v2176, %v2386
      %v2509 = vadd.f32 %v2177, %v2391
      %v2510 = vadd.f32 %v2178, %v2394
      %v2511 = vadd.f32 %v2179, %v2399
      %v2512 = vadd.f32 %v2180, %v2402
      %v2513 = vadd.f32 %v2181, %v2407
      %v2514 = vadd.f32 %v2182, %v2410
      %v2515 = vadd.f32 %v2183, %v2415
      %v2516 = vadd.f32 %v2184, %v2418
      %v2517 = vadd.f32 %v2185, %v2423
      %v2518 = vadd.f32 %v2186, %v2426
      %v2519 = vadd.f32 %v2187, %v2431
      %v2520 = vadd.f32 %v2188, %v2434
      %v2521 = vadd.f32 %v2189, %v2439
      %v2522 = vadd.f32 %v2190, %v2442
      %v2523 = vadd.f32 %v2191, %v2447
      %v2524 = vadd.f32 %v2192, %v2450
      %v2525 = vadd.f32 %v2193, %v2455
      %v2526 = vadd.f32 %v2194, %v2458
      %v2527 = vadd.f32 %v2195, %v2463
      %v2528 = vadd.f32 %v2196, %v2466
      %v2529 = vadd.f32 %v2197, %v2471
      %v2530 = vadd.f32 %v2198, %v2474
      %v2531 = vadd.f32 %v2199, %v2479
      %v2532 = vadd.f32 %v2200, %v2482
      %v2533 = vadd.f32 %v2201, %v2487
      %v2534 = vadd.f32 %v2202, %v2490
      %v2535 = vadd.f32 %v2203, %v2495
      %v2536 = vadd.f32 %v2204, %v2498
      %v2537 = vld [vmem:[%s269 + $0x25] sm:$0xff]
      %v2538 = vld [vmem:[%s269 + $0x2d] sm:$0xff]
      %v2539 = vld [vmem:[%s269 + $0x35] sm:$0xff]
      %v2540 = vld [vmem:[%s269 + $0x3d] sm:$0xff]
      %v2541 = vld [vmem:[%s269 + $0x45] sm:$0xff]
      %v2542 = vld [vmem:[%s269 + $0x4d] sm:$0xff]
      %v2543 = vld [vmem:[%s269 + $0x55] sm:$0xff]
      %v2544 = vld [vmem:[%s269 + $0x5d] sm:$0xff]
      %v2545 = vld [vmem:[%s269 + $0x65] sm:$0xff]
      %v2546 = vld [vmem:[%s269 + $0x6d] sm:$0xff]
      %v2547 = vld [vmem:[%s269 + $0x75] sm:$0xff]
      %v2548 = vld [vmem:[%s269 + $0x7d] sm:$0xff]
      %v2549 = vld [vmem:[%s269 + $0x85] sm:$0xff]
      %v2550 = vld [vmem:[%s269 + $0x8d] sm:$0xff]
      %v2551 = vld [vmem:[%s269 + $0x95] sm:$0xff]
      %v2552 = vld [vmem:[%s269 + $0x9d] sm:$0xff]
      %v2553 = vld [vmem:[%s269 + $0xa5] sm:$0xff]
      %v2554 = vld [vmem:[%s269 + $0xad] sm:$0xff]
      %v2555 = vld [vmem:[%s269 + $0xb5] sm:$0xff]
      %v2556 = vld [vmem:[%s269 + $0xbd] sm:$0xff]
      %v2557 = vld [vmem:[%s269 + $0xc5] sm:$0xff]
      %v2558 = vld [vmem:[%s269 + $0xcd] sm:$0xff]
      %v2559 = vld [vmem:[%s269 + $0xd5] sm:$0xff]
      %v2560 = vld [vmem:[%s269 + $0xdd] sm:$0xff]
      %v2561 = vld [vmem:[%s269 + $0xe5] sm:$0xff]
      %v2562 = vld [vmem:[%s269 + $0xed] sm:$0xff]
      %v2563 = vld [vmem:[%s269 + $0xf5] sm:$0xff]
      %v2564 = vld [vmem:[%s269 + $0xfd] sm:$0xff]
      %v2565 = vld [vmem:[%s269 + $0x105] sm:$0xff]
      %v2566 = vld [vmem:[%s269 + $0x10d] sm:$0xff]
      %v2567 = vld [vmem:[%s269 + $0x115] sm:$0xff]
      %v2568 = vld [vmem:[%s269 + $0x11d] sm:$0xff]
      %v2569 = vld [vmem:[%s269 + $0x125] sm:$0xff]
      %v2570 = vld [vmem:[%s269 + $0x12d] sm:$0xff]
      %v2571 = vld [vmem:[%s269 + $0x135] sm:$0xff]
      %v2572 = vld [vmem:[%s269 + $0x13d] sm:$0xff]
      %v2573 = vpack.c.bf16 %v2538, %v2537
      %v2574 = vpack.c.bf16 %v2540, %v2539
      %v2575 = vpack.c.bf16 %v2542, %v2541
      %v2576 = vpack.c.bf16 %v2544, %v2543
      %v2577 = vpack.c.bf16 %v2546, %v2545
      %v2578 = vpack.c.bf16 %v2548, %v2547
      %v2579 = vpack.c.bf16 %v2550, %v2549
      %v2580 = vpack.c.bf16 %v2552, %v2551
      %v2581 = vpack.c.bf16 %v2554, %v2553
      %v2582 = vpack.c.bf16 %v2556, %v2555
      %v2583 = vpack.c.bf16 %v2558, %v2557
      %v2584 = vpack.c.bf16 %v2560, %v2559
      %v2585 = vpack.c.bf16 %v2562, %v2561
      %v2586 = vpack.c.bf16 %v2564, %v2563
      %v2587 = vpack.c.bf16 %v2566, %v2565
      %v2588 = vpack.c.bf16 %v2568, %v2567
      %v2589 = vpack.c.bf16 %v2570, %v2569
      %v2590 = vpack.c.bf16 %v2572, %v2571
      %s2591 = scalar_lea.vmem %s2, 448
      %v2592 = vld [vmem:[%s2591] sm:$0xf]
      %v2593 = vld [vmem:[%s2591 + $0x4] sm:$0xf]
      %v2594 = vld [vmem:[%s2591 + $0x8] sm:$0xf]
      %v2595 = vld [vmem:[%s2591 + $0xc] sm:$0xf]
      %v2596 = vld [vmem:[%s2591 + $0x10] sm:$0xf]
      %v2597 = vld [vmem:[%s2591 + $0x14] sm:$0xf]
      %v2598 = vld [vmem:[%s2591 + $0x18] sm:$0xf]
      %v2599 = vld [vmem:[%s2591 + $0x1c] sm:$0xf]
      %v2600 = vld [vmem:[%s2591 + $0x20] sm:$0xf]
      %v2601 = vld [vmem:[%s2591 + $0x24] sm:$0xf]
      %v2602 = vld [vmem:[%s2591 + $0x28] sm:$0xf]
      %v2603 = vld [vmem:[%s2591 + $0x2c] sm:$0xf]
      %v2604 = vld [vmem:[%s2591 + $0x30] sm:$0xf]
      %v2605 = vld [vmem:[%s2591 + $0x34] sm:$0xf]
      %v2606 = vld [vmem:[%s2591 + $0x38] sm:$0xf]
      %v2607 = vld [vmem:[%s2591 + $0x3c] sm:$0xf]
      %v2624 = vunpack.c.l.b16 %v2592
      %v2625 = vunpack.c.l.b16 %v2593
      %v2626 = vunpack.c.l.b16 %v2594
      %v2627 = vunpack.c.l.b16 %v2595
      %v2628 = vunpack.c.l.b16 %v2596
      %v2629 = vunpack.c.l.b16 %v2597
      %v2630 = vunpack.c.l.b16 %v2598
      %v2631 = vunpack.c.l.b16 %v2599
      %v2632 = vunpack.c.l.b16 %v2600
      %v2633 = vunpack.c.l.b16 %v2601
      %v2634 = vunpack.c.l.b16 %v2602
      %v2635 = vunpack.c.l.b16 %v2603
      %v2636 = vunpack.c.l.b16 %v2604
      %v2637 = vunpack.c.l.b16 %v2605
      %v2638 = vunpack.c.l.b16 %v2606
      %v2639 = vunpack.c.l.b16 %v2607
      %v2640 = vpack.c.b16 %v2625, %v2624
      %v2641 = vpack.c.b16 %v2627, %v2626
      %v2642 = vpack.c.b16 %v2629, %v2628
      %v2643 = vpack.c.b16 %v2631, %v2630
      %v2644 = vpack.c.b16 %v2633, %v2632
      %v2645 = vpack.c.b16 %v2635, %v2634
      %v2646 = vpack.c.b16 %v2637, %v2636
      %v2647 = vpack.c.b16 %v2639, %v2638
      %2656 = vmatprep.subr.bf16.mxu0 0
      %2657 = vmatpush1.bf16.msra.mxu0 %v2640
      %2658 = vmatprep.subr.bf16.mxu0 0
      %2659 = vmatpush1.bf16.msra.mxu0 %v2641
      %2660 = vmatprep.subr.bf16.mxu0 0
      %2661 = vmatpush1.bf16.msra.mxu0 %v2642
      %2662 = vmatprep.subr.bf16.mxu0 0
      %2663 = vmatpush1.bf16.msra.mxu0 %v2643
      %2664 = vmatprep.subr.bf16.mxu0 0
      %2665 = vmatpush1.bf16.msra.mxu0 %v2644
      %2666 = vmatprep.subr.bf16.mxu0 0
      %2667 = vmatpush1.bf16.msra.mxu0 %v2645
      %2668 = vmatprep.subr.bf16.mxu0 0
      %2669 = vmatpush1.bf16.msra.mxu0 %v2646
      %2670 = vmatprep.subr.bf16.mxu0 0
      %2671 = vmatpush1.bf16.msra.mxu0 %v2647
      %2672 = vmatprep.subr.bf16.mxu0 0
      %2673 = vmatpush1.bf16.msra.mxu0 0
      %2674 = vmatprep.subr.bf16.mxu0 0
      %2675 = vmatpush1.bf16.msra.mxu0 0
      %2676 = vmatprep.subr.bf16.mxu0 0
      %2677 = vmatpush1.bf16.msra.mxu0 0
      %2678 = vmatprep.subr.bf16.mxu0 0
      %2679 = vmatpush1.bf16.msra.mxu0 0
      %2680 = vmatprep.subr.bf16.mxu0 0
      %2681 = vmatpush1.bf16.msra.mxu0 0
      %2682 = vmatprep.subr.bf16.mxu0 0
      %2683 = vmatpush1.bf16.msra.mxu0 0
      %2684 = vmatprep.subr.bf16.mxu0 0
      %2685 = vmatpush1.bf16.msra.mxu0 0
      %2686 = vmatprep.subr.bf16.mxu0 0
      %2687 = vmatpush1.bf16.msra.mxu0 0
      %2688 = vmatprep.mubr.bf16.mxu0 0
      %2689 = vmatmul.mubr.bf16.gmra.mrb[0].mxu0 %v2573
      %v2690 = vpop.f32.mrb[0].mxu0
      %v2691 = vadd.f32 0.0, %v2690
      %v2692 = vpop.f32.mrb[0].mxu0
      %v2693 = vpop.f32.mrb[0].mxu0
      %v2694 = vadd.f32 0.0, %v2693
      %v2695 = vpop.f32.mrb[0].mxu0
      %2696 = vmatprep.mubr.bf16.mxu0 0
      %2697 = vmatmul.mubr.bf16.gmra.mrb[0].mxu0 %v2574
      %v2698 = vpop.f32.mrb[0].mxu0
      %v2699 = vadd.f32 0.0, %v2698
      %v2700 = vpop.f32.mrb[0].mxu0
      %v2701 = vpop.f32.mrb[0].mxu0
      %v2702 = vadd.f32 0.0, %v2701
      %v2703 = vpop.f32.mrb[0].mxu0
      %2704 = vmatprep.mubr.bf16.mxu0 0
      %2705 = vmatmul.mubr.bf16.gmra.mrb[0].mxu0 %v2575
      %v2706 = vpop.f32.mrb[0].mxu0
      %v2707 = vadd.f32 0.0, %v2706
      %v2708 = vpop.f32.mrb[0].mxu0
      %v2709 = vpop.f32.mrb[0].mxu0
      %v2710 = vadd.f32 0.0, %v2709
      %v2711 = vpop.f32.mrb[0].mxu0
      %2712 = vmatprep.mubr.bf16.mxu0 0
      %2713 = vmatmul.mubr.bf16.gmra.mrb[0].mxu0 %v2576
      %v2714 = vpop.f32.mrb[0].mxu0
      %v2715 = vadd.f32 0.0, %v2714
      %v2716 = vpop.f32.mrb[0].mxu0
      %v2717 = vpop.f32.mrb[0].mxu0
      %v2718 = vadd.f32 0.0, %v2717
      %v2719 = vpop.f32.mrb[0].mxu0
      %2720 = vmatprep.mubr.bf16.mxu0 0
      %2721 = vmatmul.mubr.bf16.gmra.mrb[0].mxu0 %v2577
      %v2722 = vpop.f32.mrb[0].mxu0
      %v2723 = vadd.f32 0.0, %v2722
      %v2724 = vpop.f32.mrb[0].mxu0
      %v2725 = vpop.f32.mrb[0].mxu0
      %v2726 = vadd.f32 0.0, %v2725
      %v2727 = vpop.f32.mrb[0].mxu0
      %2728 = vmatprep.mubr.bf16.mxu0 0
      %2729 = vmatmul.mubr.bf16.gmra.mrb[0].mxu0 %v2578
      %v2730 = vpop.f32.mrb[0].mxu0
      %v2731 = vadd.f32 0.0, %v2730
      %v2732 = vpop.f32.mrb[0].mxu0
      %v2733 = vpop.f32.mrb[0].mxu0
      %v2734 = vadd.f32 0.0, %v2733
      %v2735 = vpop.f32.mrb[0].mxu0
      %2736 = vmatprep.mubr.bf16.mxu0 0
      %2737 = vmatmul.mubr.bf16.gmra.mrb[0].mxu0 %v2579
      %v2738 = vpop.f32.mrb[0].mxu0
      %v2739 = vadd.f32 0.0, %v2738
      %v2740 = vpop.f32.mrb[0].mxu0
      %v2741 = vpop.f32.mrb[0].mxu0
      %v2742 = vadd.f32 0.0, %v2741
      %v2743 = vpop.f32.mrb[0].mxu0
      %2744 = vmatprep.mubr.bf16.mxu0 0
      %2745 = vmatmul.mubr.bf16.gmra.mrb[0].mxu0 %v2580
      %v2746 = vpop.f32.mrb[0].mxu0
      %v2747 = vadd.f32 0.0, %v2746
      %v2748 = vpop.f32.mrb[0].mxu0
      %v2749 = vpop.f32.mrb[0].mxu0
      %v2750 = vadd.f32 0.0, %v2749
      %v2751 = vpop.f32.mrb[0].mxu0
      %2752 = vmatprep.mubr.bf16.mxu0 0
      %2753 = vmatmul.mubr.bf16.gmra.mrb[0].mxu0 %v2581
      %v2754 = vpop.f32.mrb[0].mxu0
      %v2755 = vadd.f32 0.0, %v2754
      %v2756 = vpop.f32.mrb[0].mxu0
      %v2757 = vpop.f32.mrb[0].mxu0
      %v2758 = vadd.f32 0.0, %v2757
      %v2759 = vpop.f32.mrb[0].mxu0
      %2760 = vmatprep.mubr.bf16.mxu0 0
      %2761 = vmatmul.mubr.bf16.gmra.mrb[0].mxu0 %v2582
      %v2762 = vpop.f32.mrb[0].mxu0
      %v2763 = vadd.f32 0.0, %v2762
      %v2764 = vpop.f32.mrb[0].mxu0
      %v2765 = vpop.f32.mrb[0].mxu0
      %v2766 = vadd.f32 0.0, %v2765
      %v2767 = vpop.f32.mrb[0].mxu0
      %2768 = vmatprep.mubr.bf16.mxu0 0
      %2769 = vmatmul.mubr.bf16.gmra.mrb[0].mxu0 %v2583
      %v2770 = vpop.f32.mrb[0].mxu0
      %v2771 = vadd.f32 0.0, %v2770
      %v2772 = vpop.f32.mrb[0].mxu0
      %v2773 = vpop.f32.mrb[0].mxu0
      %v2774 = vadd.f32 0.0, %v2773
      %v2775 = vpop.f32.mrb[0].mxu0
      %2776 = vmatprep.mubr.bf16.mxu0 0
      %2777 = vmatmul.mubr.bf16.gmra.mrb[0].mxu0 %v2584
      %v2778 = vpop.f32.mrb[0].mxu0
      %v2779 = vadd.f32 0.0, %v2778
      %v2780 = vpop.f32.mrb[0].mxu0
      %v2781 = vpop.f32.mrb[0].mxu0
      %v2782 = vadd.f32 0.0, %v2781
      %v2783 = vpop.f32.mrb[0].mxu0
      %2784 = vmatprep.mubr.bf16.mxu0 0
      %2785 = vmatmul.mubr.bf16.gmra.mrb[0].mxu0 %v2585
      %v2786 = vpop.f32.mrb[0].mxu0
      %v2787 = vadd.f32 0.0, %v2786
      %v2788 = vpop.f32.mrb[0].mxu0
      %v2789 = vpop.f32.mrb[0].mxu0
      %v2790 = vadd.f32 0.0, %v2789
      %v2791 = vpop.f32.mrb[0].mxu0
      %2792 = vmatprep.mubr.bf16.mxu0 0
      %2793 = vmatmul.mubr.bf16.gmra.mrb[0].mxu0 %v2586
      %v2794 = vpop.f32.mrb[0].mxu0
      %v2795 = vadd.f32 0.0, %v2794
      %v2796 = vpop.f32.mrb[0].mxu0
      %v2797 = vpop.f32.mrb[0].mxu0
      %v2798 = vadd.f32 0.0, %v2797
      %v2799 = vpop.f32.mrb[0].mxu0
      %2800 = vmatprep.mubr.bf16.mxu0 0
      %2801 = vmatmul.mubr.bf16.gmra.mrb[0].mxu0 %v2587
      %v2802 = vpop.f32.mrb[0].mxu0
      %v2803 = vadd.f32 0.0, %v2802
      %v2804 = vpop.f32.mrb[0].mxu0
      %v2805 = vpop.f32.mrb[0].mxu0
      %v2806 = vadd.f32 0.0, %v2805
      %v2807 = vpop.f32.mrb[0].mxu0
      %2808 = vmatprep.mubr.bf16.mxu0 0
      %2809 = vmatmul.mubr.bf16.gmra.mrb[0].mxu0 %v2588
      %v2810 = vpop.f32.mrb[0].mxu0
      %v2811 = vadd.f32 0.0, %v2810
      %v2812 = vpop.f32.mrb[0].mxu0
      %v2813 = vpop.f32.mrb[0].mxu0
      %v2814 = vadd.f32 0.0, %v2813
      %v2815 = vpop.f32.mrb[0].mxu0
      %2816 = vmatprep.mubr.bf16.mxu0 0
      %2817 = vmatmul.mubr.bf16.gmra.mrb[0].mxu0 %v2589
      %v2818 = vpop.f32.mrb[0].mxu0
      %v2819 = vadd.f32 0.0, %v2818
      %v2820 = vpop.f32.mrb[0].mxu0
      %v2821 = vpop.f32.mrb[0].mxu0
      %v2822 = vadd.f32 0.0, %v2821
      %v2823 = vpop.f32.mrb[0].mxu0
      %2824 = vmatprep.mubr.bf16.mxu0 0
      %2825 = vmatmul.mubr.bf16.gmra.mrb[0].mxu0 %v2590
      %v2826 = vpop.f32.mrb[0].mxu0
      %v2827 = vadd.f32 0.0, %v2826
      %v2828 = vpop.f32.mrb[0].mxu0
      %v2829 = vpop.f32.mrb[0].mxu0
      %v2830 = vadd.f32 0.0, %v2829
      %v2831 = vpop.f32.mrb[0].mxu0
      %2832 = vdwg.mxu0
      %v2833 = vadd.f32 %v2501, %v2691
      %v2834 = vadd.f32 %v2502, %v2694
      %v2835 = vadd.f32 %v2503, %v2699
      %v2836 = vadd.f32 %v2504, %v2702
      %v2837 = vadd.f32 %v2505, %v2707
      %v2838 = vadd.f32 %v2506, %v2710
      %v2839 = vadd.f32 %v2507, %v2715
      %v2840 = vadd.f32 %v2508, %v2718
      %v2841 = vadd.f32 %v2509, %v2723
      %v2842 = vadd.f32 %v2510, %v2726
      %v2843 = vadd.f32 %v2511, %v2731
      %v2844 = vadd.f32 %v2512, %v2734
      %v2845 = vadd.f32 %v2513, %v2739
      %v2846 = vadd.f32 %v2514, %v2742
      %v2847 = vadd.f32 %v2515, %v2747
      %v2848 = vadd.f32 %v2516, %v2750
      %v2849 = vadd.f32 %v2517, %v2755
      %v2850 = vadd.f32 %v2518, %v2758
      %v2851 = vadd.f32 %v2519, %v2763
      %v2852 = vadd.f32 %v2520, %v2766
      %v2853 = vadd.f32 %v2521, %v2771
      %v2854 = vadd.f32 %v2522, %v2774
      %v2855 = vadd.f32 %v2523, %v2779
      %v2856 = vadd.f32 %v2524, %v2782
      %v2857 = vadd.f32 %v2525, %v2787
      %v2858 = vadd.f32 %v2526, %v2790
      %v2859 = vadd.f32 %v2527, %v2795
      %v2860 = vadd.f32 %v2528, %v2798
      %v2861 = vadd.f32 %v2529, %v2803
      %v2862 = vadd.f32 %v2530, %v2806
      %v2863 = vadd.f32 %v2531, %v2811
      %v2864 = vadd.f32 %v2532, %v2814
      %v2865 = vadd.f32 %v2533, %v2819
      %v2866 = vadd.f32 %v2534, %v2822
      %v2867 = vadd.f32 %v2535, %v2827
      %v2868 = vadd.f32 %v2536, %v2830
      %v2869 = vld [vmem:[%s269 + $0x26] sm:$0xff]
      %v2870 = vld [vmem:[%s269 + $0x2e] sm:$0xff]
      %v2871 = vld [vmem:[%s269 + $0x36] sm:$0xff]
      %v2872 = vld [vmem:[%s269 + $0x3e] sm:$0xff]
      %v2873 = vld [vmem:[%s269 + $0x46] sm:$0xff]
      %v2874 = vld [vmem:[%s269 + $0x4e] sm:$0xff]
      %v2875 = vld [vmem:[%s269 + $0x56] sm:$0xff]
      %v2876 = vld [vmem:[%s269 + $0x5e] sm:$0xff]
      %v2877 = vld [vmem:[%s269 + $0x66] sm:$0xff]
      %v2878 = vld [vmem:[%s269 + $0x6e] sm:$0xff]
      %v2879 = vld [vmem:[%s269 + $0x76] sm:$0xff]
      %v2880 = vld [vmem:[%s269 + $0x7e] sm:$0xff]
      %v2881 = vld [vmem:[%s269 + $0x86] sm:$0xff]
      %v2882 = vld [vmem:[%s269 + $0x8e] sm:$0xff]
      %v2883 = vld [vmem:[%s269 + $0x96] sm:$0xff]
      %v2884 = vld [vmem:[%s269 + $0x9e] sm:$0xff]
      %v2885 = vld [vmem:[%s269 + $0xa6] sm:$0xff]
      %v2886 = vld [vmem:[%s269 + $0xae] sm:$0xff]
      %v2887 = vld [vmem:[%s269 + $0xb6] sm:$0xff]
      %v2888 = vld [vmem:[%s269 + $0xbe] sm:$0xff]
      %v2889 = vld [vmem:[%s269 + $0xc6] sm:$0xff]
      %v2890 = vld [vmem:[%s269 + $0xce] sm:$0xff]
      %v2891 = vld [vmem:[%s269 + $0xd6] sm:$0xff]
      %v2892 = vld [vmem:[%s269 + $0xde] sm:$0xff]
      %v2893 = vld [vmem:[%s269 + $0xe6] sm:$0xff]
      %v2894 = vld [vmem:[%s269 + $0xee] sm:$0xff]
      %v2895 = vld [vmem:[%s269 + $0xf6] sm:$0xff]
      %v2896 = vld [vmem:[%s269 + $0xfe] sm:$0xff]
      %v2897 = vld [vmem:[%s269 + $0x106] sm:$0xff]
      %v2898 = vld [vmem:[%s269 + $0x10e] sm:$0xff]
      %v2899 = vld [vmem:[%s269 + $0x116] sm:$0xff]
      %v2900 = vld [vmem:[%s269 + $0x11e] sm:$0xff]
      %v2901 = vld [vmem:[%s269 + $0x126] sm:$0xff]
      %v2902 = vld [vmem:[%s269 + $0x12e] sm:$0xff]
      %v2903 = vld [vmem:[%s269 + $0x136] sm:$0xff]
      %v2904 = vld [vmem:[%s269 + $0x13e] sm:$0xff]
      %v2905 = vpack.c.bf16 %v2870, %v2869
      %v2906 = vpack.c.bf16 %v2872, %v2871
      %v2907 = vpack.c.bf16 %v2874, %v2873
      %v2908 = vpack.c.bf16 %v2876, %v2875
      %v2909 = vpack.c.bf16 %v2878, %v2877
      %v2910 = vpack.c.bf16 %v2880, %v2879
      %v2911 = vpack.c.bf16 %v2882, %v2881
      %v2912 = vpack.c.bf16 %v2884, %v2883
      %v2913 = vpack.c.bf16 %v2886, %v2885
      %v2914 = vpack.c.bf16 %v2888, %v2887
      %v2915 = vpack.c.bf16 %v2890, %v2889
      %v2916 = vpack.c.bf16 %v2892, %v2891
      %v2917 = vpack.c.bf16 %v2894, %v2893
      %v2918 = vpack.c.bf16 %v2896, %v2895
      %v2919 = vpack.c.bf16 %v2898, %v2897
      %v2920 = vpack.c.bf16 %v2900, %v2899
      %v2921 = vpack.c.bf16 %v2902, %v2901
      %v2922 = vpack.c.bf16 %v2904, %v2903
      %s2923 = scalar_lea.vmem %s2, 512
      %v2924 = vld [vmem:[%s2923] sm:$0xf]
      %v2925 = vld [vmem:[%s2923 + $0x4] sm:$0xf]
      %v2926 = vld [vmem:[%s2923 + $0x8] sm:$0xf]
      %v2927 = vld [vmem:[%s2923 + $0xc] sm:$0xf]
      %v2928 = vld [vmem:[%s2923 + $0x10] sm:$0xf]
      %v2929 = vld [vmem:[%s2923 + $0x14] sm:$0xf]
      %v2930 = vld [vmem:[%s2923 + $0x18] sm:$0xf]
      %v2931 = vld [vmem:[%s2923 + $0x1c] sm:$0xf]
      %v2932 = vld [vmem:[%s2923 + $0x20] sm:$0xf]
      %v2933 = vld [vmem:[%s2923 + $0x24] sm:$0xf]
      %v2934 = vld [vmem:[%s2923 + $0x28] sm:$0xf]
      %v2935 = vld [vmem:[%s2923 + $0x2c] sm:$0xf]
      %v2936 = vld [vmem:[%s2923 + $0x30] sm:$0xf]
      %v2937 = vld [vmem:[%s2923 + $0x34] sm:$0xf]
      %v2938 = vld [vmem:[%s2923 + $0x38] sm:$0xf]
      %v2939 = vld [vmem:[%s2923 + $0x3c] sm:$0xf]
      %v2956 = vunpack.c.l.b16 %v2924
      %v2957 = vunpack.c.l.b16 %v2925
      %v2958 = vunpack.c.l.b16 %v2926
      %v2959 = vunpack.c.l.b16 %v2927
      %v2960 = vunpack.c.l.b16 %v2928
      %v2961 = vunpack.c.l.b16 %v2929
      %v2962 = vunpack.c.l.b16 %v2930
      %v2963 = vunpack.c.l.b16 %v2931
      %v2964 = vunpack.c.l.b16 %v2932
      %v2965 = vunpack.c.l.b16 %v2933
      %v2966 = vunpack.c.l.b16 %v2934
      %v2967 = vunpack.c.l.b16 %v2935
      %v2968 = vunpack.c.l.b16 %v2936
      %v2969 = vunpack.c.l.b16 %v2937
      %v2970 = vunpack.c.l.b16 %v2938
      %v2971 = vunpack.c.l.b16 %v2939
      %v2972 = vpack.c.b16 %v2957, %v2956
      %v2973 = vpack.c.b16 %v2959, %v2958
      %v2974 = vpack.c.b16 %v2961, %v2960
      %v2975 = vpack.c.b16 %v2963, %v2962
      %v2976 = vpack.c.b16 %v2965, %v2964
      %v2977 = vpack.c.b16 %v2967, %v2966
      %v2978 = vpack.c.b16 %v2969, %v2968
      %v2979 = vpack.c.b16 %v2971, %v2970
      %2988 = vmatprep.subr.bf16.mxu0 0
      %2989 = vmatpush1.bf16.msra.mxu0 %v2972
      %2990 = vmatprep.subr.bf16.mxu0 0
      %2991 = vmatpush1.bf16.msra.mxu0 %v2973
      %2992 = vmatprep.subr.bf16.mxu0 0
      %2993 = vmatpush1.bf16.msra.mxu0 %v2974
      %2994 = vmatprep.subr.bf16.mxu0 0
      %2995 = vmatpush1.bf16.msra.mxu0 %v2975
      %2996 = vmatprep.subr.bf16.mxu0 0
      %2997 = vmatpush1.bf16.msra.mxu0 %v2976
      %2998 = vmatprep.subr.bf16.mxu0 0
      %2999 = vmatpush1.bf16.msra.mxu0 %v2977
      %3000 = vmatprep.subr.bf16.mxu0 0
      %3001 = vmatpush1.bf16.msra.mxu0 %v2978
      %3002 = vmatprep.subr.bf16.mxu0 0
      %3003 = vmatpush1.bf16.msra.mxu0 %v2979
      %3004 = vmatprep.subr.bf16.mxu0 0
      %3005 = vmatpush1.bf16.msra.mxu0 0
      %3006 = vmatprep.subr.bf16.mxu0 0
      %3007 = vmatpush1.bf16.msra.mxu0 0
      %3008 = vmatprep.subr.bf16.mxu0 0
      %3009 = vmatpush1.bf16.msra.mxu0 0
      %3010 = vmatprep.subr.bf16.mxu0 0
      %3011 = vmatpush1.bf16.msra.mxu0 0
      %3012 = vmatprep.subr.bf16.mxu0 0
      %3013 = vmatpush1.bf16.msra.mxu0 0
      %3014 = vmatprep.subr.bf16.mxu0 0
      %3015 = vmatpush1.bf16.msra.mxu0 0
      %3016 = vmatprep.subr.bf16.mxu0 0
      %3017 = vmatpush1.bf16.msra.mxu0 0
      %3018 = vmatprep.subr.bf16.mxu0 0
      %3019 = vmatpush1.bf16.msra.mxu0 0
      %3020 = vmatprep.mubr.bf16.mxu0 0
      %3021 = vmatmul.mubr.bf16.gmra.mrb[0].mxu0 %v2905
      %v3022 = vpop.f32.mrb[0].mxu0
      %v3023 = vadd.f32 0.0, %v3022
      %v3024 = vpop.f32.mrb[0].mxu0
      %v3025 = vpop.f32.mrb[0].mxu0
      %v3026 = vadd.f32 0.0, %v3025
      %v3027 = vpop.f32.mrb[0].mxu0
      %3028 = vmatprep.mubr.bf16.mxu0 0
      %3029 = vmatmul.mubr.bf16.gmra.mrb[0].mxu0 %v2906
      %v3030 = vpop.f32.mrb[0].mxu0
      %v3031 = vadd.f32 0.0, %v3030
      %v3032 = vpop.f32.mrb[0].mxu0
      %v3033 = vpop.f32.mrb[0].mxu0
      %v3034 = vadd.f32 0.0, %v3033
      %v3035 = vpop.f32.mrb[0].mxu0
      %3036 = vmatprep.mubr.bf16.mxu0 0
      %3037 = vmatmul.mubr.bf16.gmra.mrb[0].mxu0 %v2907
      %v3038 = vpop.f32.mrb[0].mxu0
      %v3039 = vadd.f32 0.0, %v3038
      %v3040 = vpop.f32.mrb[0].mxu0
      %v3041 = vpop.f32.mrb[0].mxu0
      %v3042 = vadd.f32 0.0, %v3041
      %v3043 = vpop.f32.mrb[0].mxu0
      %3044 = vmatprep.mubr.bf16.mxu0 0
      %3045 = vmatmul.mubr.bf16.gmra.mrb[0].mxu0 %v2908
      %v3046 = vpop.f32.mrb[0].mxu0
      %v3047 = vadd.f32 0.0, %v3046
      %v3048 = vpop.f32.mrb[0].mxu0
      %v3049 = vpop.f32.mrb[0].mxu0
      %v3050 = vadd.f32 0.0, %v3049
      %v3051 = vpop.f32.mrb[0].mxu0
      %3052 = vmatprep.mubr.bf16.mxu0 0
      %3053 = vmatmul.mubr.bf16.gmra.mrb[0].mxu0 %v2909
      %v3054 = vpop.f32.mrb[0].mxu0
      %v3055 = vadd.f32 0.0, %v3054
      %v3056 = vpop.f32.mrb[0].mxu0
      %v3057 = vpop.f32.mrb[0].mxu0
      %v3058 = vadd.f32 0.0, %v3057
      %v3059 = vpop.f32.mrb[0].mxu0
      %3060 = vmatprep.mubr.bf16.mxu0 0
      %3061 = vmatmul.mubr.bf16.gmra.mrb[0].mxu0 %v2910
      %v3062 = vpop.f32.mrb[0].mxu0
      %v3063 = vadd.f32 0.0, %v3062
      %v3064 = vpop.f32.mrb[0].mxu0
      %v3065 = vpop.f32.mrb[0].mxu0
      %v3066 = vadd.f32 0.0, %v3065
      %v3067 = vpop.f32.mrb[0].mxu0
      %3068 = vmatprep.mubr.bf16.mxu0 0
      %3069 = vmatmul.mubr.bf16.gmra.mrb[0].mxu0 %v2911
      %v3070 = vpop.f32.mrb[0].mxu0
      %v3071 = vadd.f32 0.0, %v3070
      %v3072 = vpop.f32.mrb[0].mxu0
      %v3073 = vpop.f32.mrb[0].mxu0
      %v3074 = vadd.f32 0.0, %v3073
      %v3075 = vpop.f32.mrb[0].mxu0
      %3076 = vmatprep.mubr.bf16.mxu0 0
      %3077 = vmatmul.mubr.bf16.gmra.mrb[0].mxu0 %v2912
      %v3078 = vpop.f32.mrb[0].mxu0
      %v3079 = vadd.f32 0.0, %v3078
      %v3080 = vpop.f32.mrb[0].mxu0
      %v3081 = vpop.f32.mrb[0].mxu0
      %v3082 = vadd.f32 0.0, %v3081
      %v3083 = vpop.f32.mrb[0].mxu0
      %3084 = vmatprep.mubr.bf16.mxu0 0
      %3085 = vmatmul.mubr.bf16.gmra.mrb[0].mxu0 %v2913
      %v3086 = vpop.f32.mrb[0].mxu0
      %v3087 = vadd.f32 0.0, %v3086
      %v3088 = vpop.f32.mrb[0].mxu0
      %v3089 = vpop.f32.mrb[0].mxu0
      %v3090 = vadd.f32 0.0, %v3089
      %v3091 = vpop.f32.mrb[0].mxu0
      %3092 = vmatprep.mubr.bf16.mxu0 0
      %3093 = vmatmul.mubr.bf16.gmra.mrb[0].mxu0 %v2914
      %v3094 = vpop.f32.mrb[0].mxu0
      %v3095 = vadd.f32 0.0, %v3094
      %v3096 = vpop.f32.mrb[0].mxu0
      %v3097 = vpop.f32.mrb[0].mxu0
      %v3098 = vadd.f32 0.0, %v3097
      %v3099 = vpop.f32.mrb[0].mxu0
      %3100 = vmatprep.mubr.bf16.mxu0 0
      %3101 = vmatmul.mubr.bf16.gmra.mrb[0].mxu0 %v2915
      %v3102 = vpop.f32.mrb[0].mxu0
      %v3103 = vadd.f32 0.0, %v3102
      %v3104 = vpop.f32.mrb[0].mxu0
      %v3105 = vpop.f32.mrb[0].mxu0
      %v3106 = vadd.f32 0.0, %v3105
      %v3107 = vpop.f32.mrb[0].mxu0
      %3108 = vmatprep.mubr.bf16.mxu0 0
      %3109 = vmatmul.mubr.bf16.gmra.mrb[0].mxu0 %v2916
      %v3110 = vpop.f32.mrb[0].mxu0
      %v3111 = vadd.f32 0.0, %v3110
      %v3112 = vpop.f32.mrb[0].mxu0
      %v3113 = vpop.f32.mrb[0].mxu0
      %v3114 = vadd.f32 0.0, %v3113
      %v3115 = vpop.f32.mrb[0].mxu0
      %3116 = vmatprep.mubr.bf16.mxu0 0
      %3117 = vmatmul.mubr.bf16.gmra.mrb[0].mxu0 %v2917
      %v3118 = vpop.f32.mrb[0].mxu0
      %v3119 = vadd.f32 0.0, %v3118
      %v3120 = vpop.f32.mrb[0].mxu0
      %v3121 = vpop.f32.mrb[0].mxu0
      %v3122 = vadd.f32 0.0, %v3121
      %v3123 = vpop.f32.mrb[0].mxu0
      %3124 = vmatprep.mubr.bf16.mxu0 0
      %3125 = vmatmul.mubr.bf16.gmra.mrb[0].mxu0 %v2918
      %v3126 = vpop.f32.mrb[0].mxu0
      %v3127 = vadd.f32 0.0, %v3126
      %v3128 = vpop.f32.mrb[0].mxu0
      %v3129 = vpop.f32.mrb[0].mxu0
      %v3130 = vadd.f32 0.0, %v3129
      %v3131 = vpop.f32.mrb[0].mxu0
      %3132 = vmatprep.mubr.bf16.mxu0 0
      %3133 = vmatmul.mubr.bf16.gmra.mrb[0].mxu0 %v2919
      %v3134 = vpop.f32.mrb[0].mxu0
      %v3135 = vadd.f32 0.0, %v3134
      %v3136 = vpop.f32.mrb[0].mxu0
      %v3137 = vpop.f32.mrb[0].mxu0
      %v3138 = vadd.f32 0.0, %v3137
      %v3139 = vpop.f32.mrb[0].mxu0
      %3140 = vmatprep.mubr.bf16.mxu0 0
      %3141 = vmatmul.mubr.bf16.gmra.mrb[0].mxu0 %v2920
      %v3142 = vpop.f32.mrb[0].mxu0
      %v3143 = vadd.f32 0.0, %v3142
      %v3144 = vpop.f32.mrb[0].mxu0
      %v3145 = vpop.f32.mrb[0].mxu0
      %v3146 = vadd.f32 0.0, %v3145
      %v3147 = vpop.f32.mrb[0].mxu0
      %3148 = vmatprep.mubr.bf16.mxu0 0
      %3149 = vmatmul.mubr.bf16.gmra.mrb[0].mxu0 %v2921
      %v3150 = vpop.f32.mrb[0].mxu0
      %v3151 = vadd.f32 0.0, %v3150
      %v3152 = vpop.f32.mrb[0].mxu0
      %v3153 = vpop.f32.mrb[0].mxu0
      %v3154 = vadd.f32 0.0, %v3153
      %v3155 = vpop.f32.mrb[0].mxu0
      %3156 = vmatprep.mubr.bf16.mxu0 0
      %3157 = vmatmul.mubr.bf16.gmra.mrb[0].mxu0 %v2922
      %v3158 = vpop.f32.mrb[0].mxu0
      %v3159 = vadd.f32 0.0, %v3158
      %v3160 = vpop.f32.mrb[0].mxu0
      %v3161 = vpop.f32.mrb[0].mxu0
      %v3162 = vadd.f32 0.0, %v3161
      %v3163 = vpop.f32.mrb[0].mxu0
      %3164 = vdwg.mxu0
      %v3165 = vadd.f32 %v2833, %v3023
      %v3166 = vadd.f32 %v2834, %v3026
      %v3167 = vadd.f32 %v2835, %v3031
      %v3168 = vadd.f32 %v2836, %v3034
      %v3169 = vadd.f32 %v2837, %v3039
      %v3170 = vadd.f32 %v2838, %v3042
      %v3171 = vadd.f32 %v2839, %v3047
      %v3172 = vadd.f32 %v2840, %v3050
      %v3173 = vadd.f32 %v2841, %v3055
      %v3174 = vadd.f32 %v2842, %v3058
      %v3175 = vadd.f32 %v2843, %v3063
      %v3176 = vadd.f32 %v2844, %v3066
      %v3177 = vadd.f32 %v2845, %v3071
      %v3178 = vadd.f32 %v2846, %v3074
      %v3179 = vadd.f32 %v2847, %v3079
      %v3180 = vadd.f32 %v2848, %v3082
      %v3181 = vadd.f32 %v2849, %v3087
      %v3182 = vadd.f32 %v2850, %v3090
      %v3183 = vadd.f32 %v2851, %v3095
      %v3184 = vadd.f32 %v2852, %v3098
      %v3185 = vadd.f32 %v2853, %v3103
      %v3186 = vadd.f32 %v2854, %v3106
      %v3187 = vadd.f32 %v2855, %v3111
      %v3188 = vadd.f32 %v2856, %v3114
      %v3189 = vadd.f32 %v2857, %v3119
      %v3190 = vadd.f32 %v2858, %v3122
      %v3191 = vadd.f32 %v2859, %v3127
      %v3192 = vadd.f32 %v2860, %v3130
      %v3193 = vadd.f32 %v2861, %v3135
      %v3194 = vadd.f32 %v2862, %v3138
      %v3195 = vadd.f32 %v2863, %v3143
      %v3196 = vadd.f32 %v2864, %v3146
      %v3197 = vadd.f32 %v2865, %v3151
      %v3198 = vadd.f32 %v2866, %v3154
      %v3199 = vadd.f32 %v2867, %v3159
      %v3200 = vadd.f32 %v2868, %v3162
      %v3201 = vld [vmem:[%s3] sm:$0x1]
      %v3203 = vlaneseq
      %v3204 = vshrl.u32 %v3203, 7
      %v3205 = vsub.s32 0, %v3204
      %v3206 = vrot.slane %v3201, %v3205
      %v3208 = vadd.f32 %v3165, %v3206
      %v3209 = vadd.f32 %v3166, %v3206
      %v3210 = vadd.f32 %v3167, %v3206
      %v3211 = vadd.f32 %v3168, %v3206
      %v3212 = vadd.f32 %v3169, %v3206
      %v3213 = vadd.f32 %v3170, %v3206
      %v3214 = vadd.f32 %v3171, %v3206
      %v3215 = vadd.f32 %v3172, %v3206
      %v3216 = vadd.f32 %v3173, %v3206
      %v3217 = vadd.f32 %v3174, %v3206
      %v3218 = vadd.f32 %v3175, %v3206
      %v3219 = vadd.f32 %v3176, %v3206
      %v3220 = vadd.f32 %v3177, %v3206
      %v3221 = vadd.f32 %v3178, %v3206
      %v3222 = vadd.f32 %v3179, %v3206
      %v3223 = vadd.f32 %v3180, %v3206
      %v3224 = vadd.f32 %v3181, %v3206
      %v3225 = vadd.f32 %v3182, %v3206
      %v3226 = vadd.f32 %v3183, %v3206
      %v3227 = vadd.f32 %v3184, %v3206
      %v3228 = vadd.f32 %v3185, %v3206
      %v3229 = vadd.f32 %v3186, %v3206
      %v3230 = vadd.f32 %v3187, %v3206
      %v3231 = vadd.f32 %v3188, %v3206
      %v3232 = vadd.f32 %v3189, %v3206
      %v3233 = vadd.f32 %v3190, %v3206
      %v3234 = vadd.f32 %v3191, %v3206
      %v3235 = vadd.f32 %v3192, %v3206
      %v3236 = vadd.f32 %v3193, %v3206
      %v3237 = vadd.f32 %v3194, %v3206
      %v3238 = vadd.f32 %v3195, %v3206
      %v3239 = vadd.f32 %v3196, %v3206
      %v3240 = vadd.f32 %v3197, %v3206
      %v3241 = vadd.f32 %v3198, %v3206
      %v3242 = vadd.f32 %v3199, %v3206
      %v3243 = vadd.f32 %v3200, %v3206
      %v3244 = vld [vmem:[%s274] sm:$0xff]
      %v3245 = vld [vmem:[%s274 + $0x8] sm:$0xff]
      %v3246 = vld [vmem:[%s274 + $0x10] sm:$0xff]
      %v3247 = vld [vmem:[%s274 + $0x18] sm:$0xff]
      %v3248 = vld [vmem:[%s274 + $0x20] sm:$0xff]
      %v3249 = vld [vmem:[%s274 + $0x28] sm:$0xff]
      %v3250 = vld [vmem:[%s274 + $0x30] sm:$0xff]
      %v3251 = vld [vmem:[%s274 + $0x38] sm:$0xff]
      %v3252 = vld [vmem:[%s274 + $0x40] sm:$0xff]
      %v3253 = vld [vmem:[%s274 + $0x48] sm:$0xff]
      %v3254 = vld [vmem:[%s274 + $0x50] sm:$0xff]
      %v3255 = vld [vmem:[%s274 + $0x58] sm:$0xff]
      %v3256 = vld [vmem:[%s274 + $0x60] sm:$0xff]
      %v3257 = vld [vmem:[%s274 + $0x68] sm:$0xff]
      %v3258 = vld [vmem:[%s274 + $0x70] sm:$0xff]
      %v3259 = vld [vmem:[%s274 + $0x78] sm:$0xff]
      %v3260 = vld [vmem:[%s274 + $0x80] sm:$0xff]
      %v3261 = vld [vmem:[%s274 + $0x88] sm:$0xff]
      %v3262 = vld [vmem:[%s274 + $0x90] sm:$0xff]
      %v3263 = vld [vmem:[%s274 + $0x98] sm:$0xff]
      %v3264 = vld [vmem:[%s274 + $0xa0] sm:$0xff]
      %v3265 = vld [vmem:[%s274 + $0xa8] sm:$0xff]
      %v3266 = vld [vmem:[%s274 + $0xb0] sm:$0xff]
      %v3267 = vld [vmem:[%s274 + $0xb8] sm:$0xff]
      %v3268 = vld [vmem:[%s274 + $0xc0] sm:$0xff]
      %v3269 = vld [vmem:[%s274 + $0xc8] sm:$0xff]
      %v3270 = vld [vmem:[%s274 + $0xd0] sm:$0xff]
      %v3271 = vld [vmem:[%s274 + $0xd8] sm:$0xff]
      %v3272 = vld [vmem:[%s274 + $0xe0] sm:$0xff]
      %v3273 = vld [vmem:[%s274 + $0xe8] sm:$0xff]
      %v3274 = vld [vmem:[%s274 + $0xf0] sm:$0xff]
      %v3275 = vld [vmem:[%s274 + $0xf8] sm:$0xff]
      %v3276 = vld [vmem:[%s274 + $0x100] sm:$0xff]
      %v3277 = vld [vmem:[%s274 + $0x108] sm:$0xff]
      %v3278 = vld [vmem:[%s274 + $0x110] sm:$0xff]
      %v3279 = vld [vmem:[%s274 + $0x118] sm:$0xff]
      %v3280 = vld [vmem:[%s4] sm:$0xf]
      %v3281 = vld [vmem:[%s4 + $0x4] sm:$0xf]
      %v3282 = vld [vmem:[%s4 + $0x8] sm:$0xf]
      %v3283 = vld [vmem:[%s4 + $0xc] sm:$0xf]
      %v3284 = vld [vmem:[%s4 + $0x10] sm:$0xf]
      %v3285 = vld [vmem:[%s4 + $0x14] sm:$0xf]
      %v3286 = vld [vmem:[%s4 + $0x18] sm:$0xf]
      %v3287 = vld [vmem:[%s4 + $0x1c] sm:$0xf]
      %v3288 = vld [vmem:[%s4 + $0x20] sm:$0xf]
      %v3289 = vld [vmem:[%s4 + $0x24] sm:$0xf]
      %v3290 = vld [vmem:[%s4 + $0x28] sm:$0xf]
      %v3291 = vld [vmem:[%s4 + $0x2c] sm:$0xf]
      %v3292 = vld [vmem:[%s4 + $0x30] sm:$0xf]
      %v3293 = vld [vmem:[%s4 + $0x34] sm:$0xf]
      %v3294 = vld [vmem:[%s4 + $0x38] sm:$0xf]
      %v3295 = vld [vmem:[%s4 + $0x3c] sm:$0xf]
      %v3296 = vld [vmem:[%s4 + $0x40] sm:$0xf]
      %v3297 = vld [vmem:[%s4 + $0x44] sm:$0xf]
      %v3298 = vld [vmem:[%s4 + $0x48] sm:$0xf]
      %v3299 = vld [vmem:[%s4 + $0x4c] sm:$0xf]
      %v3300 = vld [vmem:[%s4 + $0x50] sm:$0xf]
      %v3301 = vld [vmem:[%s4 + $0x54] sm:$0xf]
      %v3302 = vld [vmem:[%s4 + $0x58] sm:$0xf]
      %v3303 = vld [vmem:[%s4 + $0x5c] sm:$0xf]
      %v3304 = vld [vmem:[%s4 + $0x60] sm:$0xf]
      %v3305 = vld [vmem:[%s4 + $0x64] sm:$0xf]
      %v3306 = vld [vmem:[%s4 + $0x68] sm:$0xf]
      %v3307 = vld [vmem:[%s4 + $0x6c] sm:$0xf]
      %v3308 = vld [vmem:[%s4 + $0x70] sm:$0xf]
      %v3309 = vld [vmem:[%s4 + $0x74] sm:$0xf]
      %v3310 = vld [vmem:[%s4 + $0x78] sm:$0xf]
      %v3311 = vld [vmem:[%s4 + $0x7c] sm:$0xf]
      %v3312 = vld [vmem:[%s4 + $0x80] sm:$0xf]
      %v3313 = vld [vmem:[%s4 + $0x84] sm:$0xf]
      %v3314 = vld [vmem:[%s4 + $0x88] sm:$0xf]
      %v3315 = vld [vmem:[%s4 + $0x8c] sm:$0xf]
      %v3316 = vunpack.c.l.bf16 %v3280
      %v3317 = vunpack.c.l.bf16 %v3281
      %v3318 = vunpack.c.l.bf16 %v3282
      %v3319 = vunpack.c.l.bf16 %v3283
      %v3320 = vunpack.c.l.bf16 %v3284
      %v3321 = vunpack.c.l.bf16 %v3285
      %v3322 = vunpack.c.l.bf16 %v3286
      %v3323 = vunpack.c.l.bf16 %v3287
      %v3324 = vunpack.c.l.bf16 %v3288
      %v3325 = vunpack.c.l.bf16 %v3289
      %v3326 = vunpack.c.l.bf16 %v3290
      %v3327 = vunpack.c.l.bf16 %v3291
      %v3328 = vunpack.c.l.bf16 %v3292
      %v3329 = vunpack.c.l.bf16 %v3293
      %v3330 = vunpack.c.l.bf16 %v3294
      %v3331 = vunpack.c.l.bf16 %v3295
      %v3332 = vunpack.c.l.bf16 %v3296
      %v3333 = vunpack.c.l.bf16 %v3297
      %v3334 = vunpack.c.l.bf16 %v3298
      %v3335 = vunpack.c.l.bf16 %v3299
      %v3336 = vunpack.c.l.bf16 %v3300
      %v3337 = vunpack.c.l.bf16 %v3301
      %v3338 = vunpack.c.l.bf16 %v3302
      %v3339 = vunpack.c.l.bf16 %v3303
      %v3340 = vunpack.c.l.bf16 %v3304
      %v3341 = vunpack.c.l.bf16 %v3305
      %v3342 = vunpack.c.l.bf16 %v3306
      %v3343 = vunpack.c.l.bf16 %v3307
      %v3344 = vunpack.c.l.bf16 %v3308
      %v3345 = vunpack.c.l.bf16 %v3309
      %v3346 = vunpack.c.l.bf16 %v3310
      %v3347 = vunpack.c.l.bf16 %v3311
      %v3348 = vunpack.c.l.bf16 %v3312
      %v3349 = vunpack.c.l.bf16 %v3313
      %v3350 = vunpack.c.l.bf16 %v3314
      %v3351 = vunpack.c.l.bf16 %v3315
      %v3352 = vmul.f32 %v3316, %v3244
      %v3353 = vmul.f32 %v3317, %v3245
      %v3354 = vmul.f32 %v3318, %v3246
      %v3355 = vmul.f32 %v3319, %v3247
      %v3356 = vmul.f32 %v3320, %v3248
      %v3357 = vmul.f32 %v3321, %v3249
      %v3358 = vmul.f32 %v3322, %v3250
      %v3359 = vmul.f32 %v3323, %v3251
      %v3360 = vmul.f32 %v3324, %v3252
      %v3361 = vmul.f32 %v3325, %v3253
      %v3362 = vmul.f32 %v3326, %v3254
      %v3363 = vmul.f32 %v3327, %v3255
      %v3364 = vmul.f32 %v3328, %v3256
      %v3365 = vmul.f32 %v3329, %v3257
      %v3366 = vmul.f32 %v3330, %v3258
      %v3367 = vmul.f32 %v3331, %v3259
      %v3368 = vmul.f32 %v3332, %v3260
      %v3369 = vmul.f32 %v3333, %v3261
      %v3370 = vmul.f32 %v3334, %v3262
      %v3371 = vmul.f32 %v3335, %v3263
      %v3372 = vmul.f32 %v3336, %v3264
      %v3373 = vmul.f32 %v3337, %v3265
      %v3374 = vmul.f32 %v3338, %v3266
      %v3375 = vmul.f32 %v3339, %v3267
      %v3376 = vmul.f32 %v3340, %v3268
      %v3377 = vmul.f32 %v3341, %v3269
      %v3378 = vmul.f32 %v3342, %v3270
      %v3379 = vmul.f32 %v3343, %v3271
      %v3380 = vmul.f32 %v3344, %v3272
      %v3381 = vmul.f32 %v3345, %v3273
      %v3382 = vmul.f32 %v3346, %v3274
      %v3383 = vmul.f32 %v3347, %v3275
      %v3384 = vmul.f32 %v3348, %v3276
      %v3385 = vmul.f32 %v3349, %v3277
      %v3386 = vmul.f32 %v3350, %v3278
      %v3387 = vmul.f32 %v3351, %v3279
      %v3388 = vadd.f32 %v3208, %v3352
      %v3389 = vadd.f32 %v3209, %v3353
      %v3390 = vadd.f32 %v3210, %v3354
      %v3391 = vadd.f32 %v3211, %v3355
      %v3392 = vadd.f32 %v3212, %v3356
      %v3393 = vadd.f32 %v3213, %v3357
      %v3394 = vadd.f32 %v3214, %v3358
      %v3395 = vadd.f32 %v3215, %v3359
      %v3396 = vadd.f32 %v3216, %v3360
      %v3397 = vadd.f32 %v3217, %v3361
      %v3398 = vadd.f32 %v3218, %v3362
      %v3399 = vadd.f32 %v3219, %v3363
      %v3400 = vadd.f32 %v3220, %v3364
      %v3401 = vadd.f32 %v3221, %v3365
      %v3402 = vadd.f32 %v3222, %v3366
      %v3403 = vadd.f32 %v3223, %v3367
      %v3404 = vadd.f32 %v3224, %v3368
      %v3405 = vadd.f32 %v3225, %v3369
      %v3406 = vadd.f32 %v3226, %v3370
      %v3407 = vadd.f32 %v3227, %v3371
      %v3408 = vadd.f32 %v3228, %v3372
      %v3409 = vadd.f32 %v3229, %v3373
      %v3410 = vadd.f32 %v3230, %v3374
      %v3411 = vadd.f32 %v3231, %v3375
      %v3412 = vadd.f32 %v3232, %v3376
      %v3413 = vadd.f32 %v3233, %v3377
      %v3414 = vadd.f32 %v3234, %v3378
      %v3415 = vadd.f32 %v3235, %v3379
      %v3416 = vadd.f32 %v3236, %v3380
      %v3417 = vadd.f32 %v3237, %v3381
      %v3418 = vadd.f32 %v3238, %v3382
      %v3419 = vadd.f32 %v3239, %v3383
      %v3420 = vadd.f32 %v3240, %v3384
      %v3421 = vadd.f32 %v3241, %v3385
      %v3422 = vadd.f32 %v3242, %v3386
      %v3423 = vadd.f32 %v3243, %v3387
      %v3424 = vxor.u32 %v3388, 2147483648
      %v3425 = vxor.u32 %v3389, 2147483648
      %v3426 = vxor.u32 %v3390, 2147483648
      %v3427 = vxor.u32 %v3391, 2147483648
      %v3428 = vxor.u32 %v3392, 2147483648
      %v3429 = vxor.u32 %v3393, 2147483648
      %v3430 = vxor.u32 %v3394, 2147483648
      %v3431 = vxor.u32 %v3395, 2147483648
      %v3432 = vxor.u32 %v3396, 2147483648
      %v3433 = vxor.u32 %v3397, 2147483648
      %v3434 = vxor.u32 %v3398, 2147483648
      %v3435 = vxor.u32 %v3399, 2147483648
      %v3436 = vxor.u32 %v3400, 2147483648
      %v3437 = vxor.u32 %v3401, 2147483648
      %v3438 = vxor.u32 %v3402, 2147483648
      %v3439 = vxor.u32 %v3403, 2147483648
      %v3440 = vxor.u32 %v3404, 2147483648
      %v3441 = vxor.u32 %v3405, 2147483648
      %v3442 = vxor.u32 %v3406, 2147483648
      %v3443 = vxor.u32 %v3407, 2147483648
      %v3444 = vxor.u32 %v3408, 2147483648
      %v3445 = vxor.u32 %v3409, 2147483648
      %v3446 = vxor.u32 %v3410, 2147483648
      %v3447 = vxor.u32 %v3411, 2147483648
      %v3448 = vxor.u32 %v3412, 2147483648
      %v3449 = vxor.u32 %v3413, 2147483648
      %v3450 = vxor.u32 %v3414, 2147483648
      %v3451 = vxor.u32 %v3415, 2147483648
      %v3452 = vxor.u32 %v3416, 2147483648
      %v3453 = vxor.u32 %v3417, 2147483648
      %v3454 = vxor.u32 %v3418, 2147483648
      %v3455 = vxor.u32 %v3419, 2147483648
      %v3456 = vxor.u32 %v3420, 2147483648
      %v3457 = vxor.u32 %v3421, 2147483648
      %v3458 = vxor.u32 %v3422, 2147483648
      %v3459 = vxor.u32 %v3423, 2147483648
      %v3460 = vmul.f32 %v3424, 1.442695
      %v3461 = vpow.pop %v3460
      %v3462 = vmul.f32 %v3425, 1.442695
      %v3463 = vpow.pop %v3462
      %v3464 = vmul.f32 %v3426, 1.442695
      %v3465 = vpow.pop %v3464
      %v3466 = vmul.f32 %v3427, 1.442695
      %v3467 = vpow.pop %v3466
      %v3468 = vmul.f32 %v3428, 1.442695
      %v3469 = vpow.pop %v3468
      %v3470 = vmul.f32 %v3429, 1.442695
      %v3471 = vpow.pop %v3470
      %v3472 = vmul.f32 %v3430, 1.442695
      %v3473 = vpow.pop %v3472
      %v3474 = vmul.f32 %v3431, 1.442695
      %v3475 = vpow.pop %v3474
      %v3476 = vmul.f32 %v3432, 1.442695
      %v3477 = vpow.pop %v3476
      %v3478 = vmul.f32 %v3433, 1.442695
      %v3479 = vpow.pop %v3478
      %v3480 = vmul.f32 %v3434, 1.442695
      %v3481 = vpow.pop %v3480
      %v3482 = vmul.f32 %v3435, 1.442695
      %v3483 = vpow.pop %v3482
      %v3484 = vmul.f32 %v3436, 1.442695
      %v3485 = vpow.pop %v3484
      %v3486 = vmul.f32 %v3437, 1.442695
      %v3487 = vpow.pop %v3486
      %v3488 = vmul.f32 %v3438, 1.442695
      %v3489 = vpow.pop %v3488
      %v3490 = vmul.f32 %v3439, 1.442695
      %v3491 = vpow.pop %v3490
      %v3492 = vmul.f32 %v3440, 1.442695
      %v3493 = vpow.pop %v3492
      %v3494 = vmul.f32 %v3441, 1.442695
      %v3495 = vpow.pop %v3494
      %v3496 = vmul.f32 %v3442, 1.442695
      %v3497 = vpow.pop %v3496
      %v3498 = vmul.f32 %v3443, 1.442695
      %v3499 = vpow.pop %v3498
      %v3500 = vmul.f32 %v3444, 1.442695
      %v3501 = vpow.pop %v3500
      %v3502 = vmul.f32 %v3445, 1.442695
      %v3503 = vpow.pop %v3502
      %v3504 = vmul.f32 %v3446, 1.442695
      %v3505 = vpow.pop %v3504
      %v3506 = vmul.f32 %v3447, 1.442695
      %v3507 = vpow.pop %v3506
      %v3508 = vmul.f32 %v3448, 1.442695
      %v3509 = vpow.pop %v3508
      %v3510 = vmul.f32 %v3449, 1.442695
      %v3511 = vpow.pop %v3510
      %v3512 = vmul.f32 %v3450, 1.442695
      %v3513 = vpow.pop %v3512
      %v3514 = vmul.f32 %v3451, 1.442695
      %v3515 = vpow.pop %v3514
      %v3516 = vmul.f32 %v3452, 1.442695
      %v3517 = vpow.pop %v3516
      %v3518 = vmul.f32 %v3453, 1.442695
      %v3519 = vpow.pop %v3518
      %v3520 = vmul.f32 %v3454, 1.442695
      %v3521 = vpow.pop %v3520
      %v3522 = vmul.f32 %v3455, 1.442695
      %v3523 = vpow.pop %v3522
      %v3524 = vmul.f32 %v3456, 1.442695
      %v3525 = vpow.pop %v3524
      %v3526 = vmul.f32 %v3457, 1.442695
      %v3527 = vpow.pop %v3526
      %v3528 = vmul.f32 %v3458, 1.442695
      %v3529 = vpow.pop %v3528
      %v3530 = vmul.f32 %v3459, 1.442695
      %v3531 = vpow.pop %v3530
      %v3532 = vadd.f32 %v3461, 1.0
      %v3533 = vadd.f32 %v3463, 1.0
      %v3534 = vadd.f32 %v3465, 1.0
      %v3535 = vadd.f32 %v3467, 1.0
      %v3536 = vadd.f32 %v3469, 1.0
      %v3537 = vadd.f32 %v3471, 1.0
      %v3538 = vadd.f32 %v3473, 1.0
      %v3539 = vadd.f32 %v3475, 1.0
      %v3540 = vadd.f32 %v3477, 1.0
      %v3541 = vadd.f32 %v3479, 1.0
      %v3542 = vadd.f32 %v3481, 1.0
      %v3543 = vadd.f32 %v3483, 1.0
      %v3544 = vadd.f32 %v3485, 1.0
      %v3545 = vadd.f32 %v3487, 1.0
      %v3546 = vadd.f32 %v3489, 1.0
      %v3547 = vadd.f32 %v3491, 1.0
      %v3548 = vadd.f32 %v3493, 1.0
      %v3549 = vadd.f32 %v3495, 1.0
      %v3550 = vadd.f32 %v3497, 1.0
      %v3551 = vadd.f32 %v3499, 1.0
      %v3552 = vadd.f32 %v3501, 1.0
      %v3553 = vadd.f32 %v3503, 1.0
      %v3554 = vadd.f32 %v3505, 1.0
      %v3555 = vadd.f32 %v3507, 1.0
      %v3556 = vadd.f32 %v3509, 1.0
      %v3557 = vadd.f32 %v3511, 1.0
      %v3558 = vadd.f32 %v3513, 1.0
      %v3559 = vadd.f32 %v3515, 1.0
      %v3560 = vadd.f32 %v3517, 1.0
      %v3561 = vadd.f32 %v3519, 1.0
      %v3562 = vadd.f32 %v3521, 1.0
      %v3563 = vadd.f32 %v3523, 1.0
      %v3564 = vadd.f32 %v3525, 1.0
      %v3565 = vadd.f32 %v3527, 1.0
      %v3566 = vadd.f32 %v3529, 1.0
      %v3567 = vadd.f32 %v3531, 1.0
      %v3568 = vrcp.pop %v3532
      %v3569 = vmul.f32 1.0, %v3568
      %v3570 = vrcp.pop %v3533
      %v3571 = vmul.f32 1.0, %v3570
      %v3572 = vrcp.pop %v3534
      %v3573 = vmul.f32 1.0, %v3572
      %v3574 = vrcp.pop %v3535
      %v3575 = vmul.f32 1.0, %v3574
      %v3576 = vrcp.pop %v3536
      %v3577 = vmul.f32 1.0, %v3576
      %v3578 = vrcp.pop %v3537
      %v3579 = vmul.f32 1.0, %v3578
      %v3580 = vrcp.pop %v3538
      %v3581 = vmul.f32 1.0, %v3580
      %v3582 = vrcp.pop %v3539
      %v3583 = vmul.f32 1.0, %v3582
      %v3584 = vrcp.pop %v3540
      %v3585 = vmul.f32 1.0, %v3584
      %v3586 = vrcp.pop %v3541
      %v3587 = vmul.f32 1.0, %v3586
      %v3588 = vrcp.pop %v3542
      %v3589 = vmul.f32 1.0, %v3588
      %v3590 = vrcp.pop %v3543
      %v3591 = vmul.f32 1.0, %v3590
      %v3592 = vrcp.pop %v3544
      %v3593 = vmul.f32 1.0, %v3592
      %v3594 = vrcp.pop %v3545
      %v3595 = vmul.f32 1.0, %v3594
      %v3596 = vrcp.pop %v3546
      %v3597 = vmul.f32 1.0, %v3596
      %v3598 = vrcp.pop %v3547
      %v3599 = vmul.f32 1.0, %v3598
      %v3600 = vrcp.pop %v3548
      %v3601 = vmul.f32 1.0, %v3600
      %v3602 = vrcp.pop %v3549
      %v3603 = vmul.f32 1.0, %v3602
      %v3604 = vrcp.pop %v3550
      %v3605 = vmul.f32 1.0, %v3604
      %v3606 = vrcp.pop %v3551
      %v3607 = vmul.f32 1.0, %v3606
      %v3608 = vrcp.pop %v3552
      %v3609 = vmul.f32 1.0, %v3608
      %v3610 = vrcp.pop %v3553
      %v3611 = vmul.f32 1.0, %v3610
      %v3612 = vrcp.pop %v3554
      %v3613 = vmul.f32 1.0, %v3612
      %v3614 = vrcp.pop %v3555
      %v3615 = vmul.f32 1.0, %v3614
      %v3616 = vrcp.pop %v3556
      %v3617 = vmul.f32 1.0, %v3616
      %v3618 = vrcp.pop %v3557
      %v3619 = vmul.f32 1.0, %v3618
      %v3620 = vrcp.pop %v3558
      %v3621 = vmul.f32 1.0, %v3620
      %v3622 = vrcp.pop %v3559
      %v3623 = vmul.f32 1.0, %v3622
      %v3624 = vrcp.pop %v3560
      %v3625 = vmul.f32 1.0, %v3624
      %v3626 = vrcp.pop %v3561
      %v3627 = vmul.f32 1.0, %v3626
      %v3628 = vrcp.pop %v3562
      %v3629 = vmul.f32 1.0, %v3628
      %v3630 = vrcp.pop %v3563
      %v3631 = vmul.f32 1.0, %v3630
      %v3632 = vrcp.pop %v3564
      %v3633 = vmul.f32 1.0, %v3632
      %v3634 = vrcp.pop %v3565
      %v3635 = vmul.f32 1.0, %v3634
      %v3636 = vrcp.pop %v3566
      %v3637 = vmul.f32 1.0, %v3636
      %v3638 = vrcp.pop %v3567
      %v3639 = vmul.f32 1.0, %v3638
      %3676 = vrot.lane.b32.xlu0 %v3244, 32
      %v3677 = vpop.permute.xlu0 %3676
      %3678 = vrot.lane.b32.xlu0 %v3245, 32
      %v3679 = vpop.permute.xlu0 %3678
      %3680 = vrot.lane.b32.xlu0 %v3246, 32
      %v3681 = vpop.permute.xlu0 %3680
      %3682 = vrot.lane.b32.xlu0 %v3247, 32
      %v3683 = vpop.permute.xlu0 %3682
      %3684 = vrot.lane.b32.xlu0 %v3248, 32
      %v3685 = vpop.permute.xlu0 %3684
      %3686 = vrot.lane.b32.xlu0 %v3249, 32
      %v3687 = vpop.permute.xlu0 %3686
      %3688 = vrot.lane.b32.xlu0 %v3250, 32
      %v3689 = vpop.permute.xlu0 %3688
      %3690 = vrot.lane.b32.xlu0 %v3251, 32
      %v3691 = vpop.permute.xlu0 %3690
      %3692 = vrot.lane.b32.xlu0 %v3252, 32
      %v3693 = vpop.permute.xlu0 %3692
      %3694 = vrot.lane.b32.xlu0 %v3253, 32
      %v3695 = vpop.permute.xlu0 %3694
      %3696 = vrot.lane.b32.xlu0 %v3254, 32
      %v3697 = vpop.permute.xlu0 %3696
      %3698 = vrot.lane.b32.xlu0 %v3255, 32
      %v3699 = vpop.permute.xlu0 %3698
      %3700 = vrot.lane.b32.xlu0 %v3256, 32
      %v3701 = vpop.permute.xlu0 %3700
      %3702 = vrot.lane.b32.xlu0 %v3257, 32
      %v3703 = vpop.permute.xlu0 %3702
      %3704 = vrot.lane.b32.xlu0 %v3258, 32
      %v3705 = vpop.permute.xlu0 %3704
      %3706 = vrot.lane.b32.xlu0 %v3259, 32
      %v3707 = vpop.permute.xlu0 %3706
      %3708 = vrot.lane.b32.xlu0 %v3260, 32
      %v3709 = vpop.permute.xlu0 %3708
      %3710 = vrot.lane.b32.xlu0 %v3261, 32
      %v3711 = vpop.permute.xlu0 %3710
      %3712 = vrot.lane.b32.xlu0 %v3262, 32
      %v3713 = vpop.permute.xlu0 %3712
      %3714 = vrot.lane.b32.xlu0 %v3263, 32
      %v3715 = vpop.permute.xlu0 %3714
      %3716 = vrot.lane.b32.xlu0 %v3264, 32
      %v3717 = vpop.permute.xlu0 %3716
      %3718 = vrot.lane.b32.xlu0 %v3265, 32
      %v3719 = vpop.permute.xlu0 %3718
      %3720 = vrot.lane.b32.xlu0 %v3266, 32
      %v3721 = vpop.permute.xlu0 %3720
      %3722 = vrot.lane.b32.xlu0 %v3267, 32
      %v3723 = vpop.permute.xlu0 %3722
      %3724 = vrot.lane.b32.xlu0 %v3268, 32
      %v3725 = vpop.permute.xlu0 %3724
      %3726 = vrot.lane.b32.xlu0 %v3269, 32
      %v3727 = vpop.permute.xlu0 %3726
      %3728 = vrot.lane.b32.xlu0 %v3270, 32
      %v3729 = vpop.permute.xlu0 %3728
      %3730 = vrot.lane.b32.xlu0 %v3271, 32
      %v3731 = vpop.permute.xlu0 %3730
      %3732 = vrot.lane.b32.xlu0 %v3272, 32
      %v3733 = vpop.permute.xlu0 %3732
      %3734 = vrot.lane.b32.xlu0 %v3273, 32
      %v3735 = vpop.permute.xlu0 %3734
      %3736 = vrot.lane.b32.xlu0 %v3274, 32
      %v3737 = vpop.permute.xlu0 %3736
      %3738 = vrot.lane.b32.xlu0 %v3275, 32
      %v3739 = vpop.permute.xlu0 %3738
      %3740 = vrot.lane.b32.xlu0 %v3276, 32
      %v3741 = vpop.permute.xlu0 %3740
      %3742 = vrot.lane.b32.xlu0 %v3277, 32
      %v3743 = vpop.permute.xlu0 %3742
      %3744 = vrot.lane.b32.xlu0 %v3278, 32
      %v3745 = vpop.permute.xlu0 %3744
      %3746 = vrot.lane.b32.xlu0 %v3279, 32
      %v3747 = vpop.permute.xlu0 %3746
      %v3784 = vmul.f32 %v3316, %v3677
      %v3785 = vmul.f32 %v3317, %v3679
      %v3786 = vmul.f32 %v3318, %v3681
      %v3787 = vmul.f32 %v3319, %v3683
      %v3788 = vmul.f32 %v3320, %v3685
      %v3789 = vmul.f32 %v3321, %v3687
      %v3790 = vmul.f32 %v3322, %v3689
      %v3791 = vmul.f32 %v3323, %v3691
      %v3792 = vmul.f32 %v3324, %v3693
      %v3793 = vmul.f32 %v3325, %v3695
      %v3794 = vmul.f32 %v3326, %v3697
      %v3795 = vmul.f32 %v3327, %v3699
      %v3796 = vmul.f32 %v3328, %v3701
      %v3797 = vmul.f32 %v3329, %v3703
      %v3798 = vmul.f32 %v3330, %v3705
      %v3799 = vmul.f32 %v3331, %v3707
      %v3800 = vmul.f32 %v3332, %v3709
      %v3801 = vmul.f32 %v3333, %v3711
      %v3802 = vmul.f32 %v3334, %v3713
      %v3803 = vmul.f32 %v3335, %v3715
      %v3804 = vmul.f32 %v3336, %v3717
      %v3805 = vmul.f32 %v3337, %v3719
      %v3806 = vmul.f32 %v3338, %v3721
      %v3807 = vmul.f32 %v3339, %v3723
      %v3808 = vmul.f32 %v3340, %v3725
      %v3809 = vmul.f32 %v3341, %v3727
      %v3810 = vmul.f32 %v3342, %v3729
      %v3811 = vmul.f32 %v3343, %v3731
      %v3812 = vmul.f32 %v3344, %v3733
      %v3813 = vmul.f32 %v3345, %v3735
      %v3814 = vmul.f32 %v3346, %v3737
      %v3815 = vmul.f32 %v3347, %v3739
      %v3816 = vmul.f32 %v3348, %v3741
      %v3817 = vmul.f32 %v3349, %v3743
      %v3818 = vmul.f32 %v3350, %v3745
      %v3819 = vmul.f32 %v3351, %v3747
      %v3820 = vadd.f32 %v3208, %v3784
      %v3821 = vadd.f32 %v3209, %v3785
      %v3822 = vadd.f32 %v3210, %v3786
      %v3823 = vadd.f32 %v3211, %v3787
      %v3824 = vadd.f32 %v3212, %v3788
      %v3825 = vadd.f32 %v3213, %v3789
      %v3826 = vadd.f32 %v3214, %v3790
      %v3827 = vadd.f32 %v3215, %v3791
      %v3828 = vadd.f32 %v3216, %v3792
      %v3829 = vadd.f32 %v3217, %v3793
      %v3830 = vadd.f32 %v3218, %v3794
      %v3831 = vadd.f32 %v3219, %v3795
      %v3832 = vadd.f32 %v3220, %v3796
      %v3833 = vadd.f32 %v3221, %v3797
      %v3834 = vadd.f32 %v3222, %v3798
      %v3835 = vadd.f32 %v3223, %v3799
      %v3836 = vadd.f32 %v3224, %v3800
      %v3837 = vadd.f32 %v3225, %v3801
      %v3838 = vadd.f32 %v3226, %v3802
      %v3839 = vadd.f32 %v3227, %v3803
      %v3840 = vadd.f32 %v3228, %v3804
      %v3841 = vadd.f32 %v3229, %v3805
      %v3842 = vadd.f32 %v3230, %v3806
      %v3843 = vadd.f32 %v3231, %v3807
      %v3844 = vadd.f32 %v3232, %v3808
      %v3845 = vadd.f32 %v3233, %v3809
      %v3846 = vadd.f32 %v3234, %v3810
      %v3847 = vadd.f32 %v3235, %v3811
      %v3848 = vadd.f32 %v3236, %v3812
      %v3849 = vadd.f32 %v3237, %v3813
      %v3850 = vadd.f32 %v3238, %v3814
      %v3851 = vadd.f32 %v3239, %v3815
      %v3852 = vadd.f32 %v3240, %v3816
      %v3853 = vadd.f32 %v3241, %v3817
      %v3854 = vadd.f32 %v3242, %v3818
      %v3855 = vadd.f32 %v3243, %v3819
      %v3856 = vxor.u32 %v3820, 2147483648
      %v3857 = vxor.u32 %v3821, 2147483648
      %v3858 = vxor.u32 %v3822, 2147483648
      %v3859 = vxor.u32 %v3823, 2147483648
      %v3860 = vxor.u32 %v3824, 2147483648
      %v3861 = vxor.u32 %v3825, 2147483648
      %v3862 = vxor.u32 %v3826, 2147483648
      %v3863 = vxor.u32 %v3827, 2147483648
      %v3864 = vxor.u32 %v3828, 2147483648
      %v3865 = vxor.u32 %v3829, 2147483648
      %v3866 = vxor.u32 %v3830, 2147483648
      %v3867 = vxor.u32 %v3831, 2147483648
      %v3868 = vxor.u32 %v3832, 2147483648
      %v3869 = vxor.u32 %v3833, 2147483648
      %v3870 = vxor.u32 %v3834, 2147483648
      %v3871 = vxor.u32 %v3835, 2147483648
      %v3872 = vxor.u32 %v3836, 2147483648
      %v3873 = vxor.u32 %v3837, 2147483648
      %v3874 = vxor.u32 %v3838, 2147483648
      %v3875 = vxor.u32 %v3839, 2147483648
      %v3876 = vxor.u32 %v3840, 2147483648
      %v3877 = vxor.u32 %v3841, 2147483648
      %v3878 = vxor.u32 %v3842, 2147483648
      %v3879 = vxor.u32 %v3843, 2147483648
      %v3880 = vxor.u32 %v3844, 2147483648
      %v3881 = vxor.u32 %v3845, 2147483648
      %v3882 = vxor.u32 %v3846, 2147483648
      %v3883 = vxor.u32 %v3847, 2147483648
      %v3884 = vxor.u32 %v3848, 2147483648
      %v3885 = vxor.u32 %v3849, 2147483648
      %v3886 = vxor.u32 %v3850, 2147483648
      %v3887 = vxor.u32 %v3851, 2147483648
      %v3888 = vxor.u32 %v3852, 2147483648
      %v3889 = vxor.u32 %v3853, 2147483648
      %v3890 = vxor.u32 %v3854, 2147483648
      %v3891 = vxor.u32 %v3855, 2147483648
      %v3892 = vmul.f32 %v3856, 1.442695
      %v3893 = vpow.pop %v3892
      %v3894 = vmul.f32 %v3857, 1.442695
      %v3895 = vpow.pop %v3894
      %v3896 = vmul.f32 %v3858, 1.442695
      %v3897 = vpow.pop %v3896
      %v3898 = vmul.f32 %v3859, 1.442695
      %v3899 = vpow.pop %v3898
      %v3900 = vmul.f32 %v3860, 1.442695
      %v3901 = vpow.pop %v3900
      %v3902 = vmul.f32 %v3861, 1.442695
      %v3903 = vpow.pop %v3902
      %v3904 = vmul.f32 %v3862, 1.442695
      %v3905 = vpow.pop %v3904
      %v3906 = vmul.f32 %v3863, 1.442695
      %v3907 = vpow.pop %v3906
      %v3908 = vmul.f32 %v3864, 1.442695
      %v3909 = vpow.pop %v3908
      %v3910 = vmul.f32 %v3865, 1.442695
      %v3911 = vpow.pop %v3910
      %v3912 = vmul.f32 %v3866, 1.442695
      %v3913 = vpow.pop %v3912
      %v3914 = vmul.f32 %v3867, 1.442695
      %v3915 = vpow.pop %v3914
      %v3916 = vmul.f32 %v3868, 1.442695
      %v3917 = vpow.pop %v3916
      %v3918 = vmul.f32 %v3869, 1.442695
      %v3919 = vpow.pop %v3918
      %v3920 = vmul.f32 %v3870, 1.442695
      %v3921 = vpow.pop %v3920
      %v3922 = vmul.f32 %v3871, 1.442695
      %v3923 = vpow.pop %v3922
      %v3924 = vmul.f32 %v3872, 1.442695
      %v3925 = vpow.pop %v3924
      %v3926 = vmul.f32 %v3873, 1.442695
      %v3927 = vpow.pop %v3926
      %v3928 = vmul.f32 %v3874, 1.442695
      %v3929 = vpow.pop %v3928
      %v3930 = vmul.f32 %v3875, 1.442695
      %v3931 = vpow.pop %v3930
      %v3932 = vmul.f32 %v3876, 1.442695
      %v3933 = vpow.pop %v3932
      %v3934 = vmul.f32 %v3877, 1.442695
      %v3935 = vpow.pop %v3934
      %v3936 = vmul.f32 %v3878, 1.442695
      %v3937 = vpow.pop %v3936
      %v3938 = vmul.f32 %v3879, 1.442695
      %v3939 = vpow.pop %v3938
      %v3940 = vmul.f32 %v3880, 1.442695
      %v3941 = vpow.pop %v3940
      %v3942 = vmul.f32 %v3881, 1.442695
      %v3943 = vpow.pop %v3942
      %v3944 = vmul.f32 %v3882, 1.442695
      %v3945 = vpow.pop %v3944
      %v3946 = vmul.f32 %v3883, 1.442695
      %v3947 = vpow.pop %v3946
      %v3948 = vmul.f32 %v3884, 1.442695
      %v3949 = vpow.pop %v3948
      %v3950 = vmul.f32 %v3885, 1.442695
      %v3951 = vpow.pop %v3950
      %v3952 = vmul.f32 %v3886, 1.442695
      %v3953 = vpow.pop %v3952
      %v3954 = vmul.f32 %v3887, 1.442695
      %v3955 = vpow.pop %v3954
      %v3956 = vmul.f32 %v3888, 1.442695
      %v3957 = vpow.pop %v3956
      %v3958 = vmul.f32 %v3889, 1.442695
      %v3959 = vpow.pop %v3958
      %v3960 = vmul.f32 %v3890, 1.442695
      %v3961 = vpow.pop %v3960
      %v3962 = vmul.f32 %v3891, 1.442695
      %v3963 = vpow.pop %v3962
      %v3964 = vadd.f32 %v3893, 1.0
      %v3965 = vadd.f32 %v3895, 1.0
      %v3966 = vadd.f32 %v3897, 1.0
      %v3967 = vadd.f32 %v3899, 1.0
      %v3968 = vadd.f32 %v3901, 1.0
      %v3969 = vadd.f32 %v3903, 1.0
      %v3970 = vadd.f32 %v3905, 1.0
      %v3971 = vadd.f32 %v3907, 1.0
      %v3972 = vadd.f32 %v3909, 1.0
      %v3973 = vadd.f32 %v3911, 1.0
      %v3974 = vadd.f32 %v3913, 1.0
      %v3975 = vadd.f32 %v3915, 1.0
      %v3976 = vadd.f32 %v3917, 1.0
      %v3977 = vadd.f32 %v3919, 1.0
      %v3978 = vadd.f32 %v3921, 1.0
      %v3979 = vadd.f32 %v3923, 1.0
      %v3980 = vadd.f32 %v3925, 1.0
      %v3981 = vadd.f32 %v3927, 1.0
      %v3982 = vadd.f32 %v3929, 1.0
      %v3983 = vadd.f32 %v3931, 1.0
      %v3984 = vadd.f32 %v3933, 1.0
      %v3985 = vadd.f32 %v3935, 1.0
      %v3986 = vadd.f32 %v3937, 1.0
      %v3987 = vadd.f32 %v3939, 1.0
      %v3988 = vadd.f32 %v3941, 1.0
      %v3989 = vadd.f32 %v3943, 1.0
      %v3990 = vadd.f32 %v3945, 1.0
      %v3991 = vadd.f32 %v3947, 1.0
      %v3992 = vadd.f32 %v3949, 1.0
      %v3993 = vadd.f32 %v3951, 1.0
      %v3994 = vadd.f32 %v3953, 1.0
      %v3995 = vadd.f32 %v3955, 1.0
      %v3996 = vadd.f32 %v3957, 1.0
      %v3997 = vadd.f32 %v3959, 1.0
      %v3998 = vadd.f32 %v3961, 1.0
      %v3999 = vadd.f32 %v3963, 1.0
      %v4000 = vrcp.pop %v3964
      %v4001 = vmul.f32 1.0, %v4000
      %v4002 = vrcp.pop %v3965
      %v4003 = vmul.f32 1.0, %v4002
      %v4004 = vrcp.pop %v3966
      %v4005 = vmul.f32 1.0, %v4004
      %v4006 = vrcp.pop %v3967
      %v4007 = vmul.f32 1.0, %v4006
      %v4008 = vrcp.pop %v3968
      %v4009 = vmul.f32 1.0, %v4008
      %v4010 = vrcp.pop %v3969
      %v4011 = vmul.f32 1.0, %v4010
      %v4012 = vrcp.pop %v3970
      %v4013 = vmul.f32 1.0, %v4012
      %v4014 = vrcp.pop %v3971
      %v4015 = vmul.f32 1.0, %v4014
      %v4016 = vrcp.pop %v3972
      %v4017 = vmul.f32 1.0, %v4016
      %v4018 = vrcp.pop %v3973
      %v4019 = vmul.f32 1.0, %v4018
      %v4020 = vrcp.pop %v3974
      %v4021 = vmul.f32 1.0, %v4020
      %v4022 = vrcp.pop %v3975
      %v4023 = vmul.f32 1.0, %v4022
      %v4024 = vrcp.pop %v3976
      %v4025 = vmul.f32 1.0, %v4024
      %v4026 = vrcp.pop %v3977
      %v4027 = vmul.f32 1.0, %v4026
      %v4028 = vrcp.pop %v3978
      %v4029 = vmul.f32 1.0, %v4028
      %v4030 = vrcp.pop %v3979
      %v4031 = vmul.f32 1.0, %v4030
      %v4032 = vrcp.pop %v3980
      %v4033 = vmul.f32 1.0, %v4032
      %v4034 = vrcp.pop %v3981
      %v4035 = vmul.f32 1.0, %v4034
      %v4036 = vrcp.pop %v3982
      %v4037 = vmul.f32 1.0, %v4036
      %v4038 = vrcp.pop %v3983
      %v4039 = vmul.f32 1.0, %v4038
      %v4040 = vrcp.pop %v3984
      %v4041 = vmul.f32 1.0, %v4040
      %v4042 = vrcp.pop %v3985
      %v4043 = vmul.f32 1.0, %v4042
      %v4044 = vrcp.pop %v3986
      %v4045 = vmul.f32 1.0, %v4044
      %v4046 = vrcp.pop %v3987
      %v4047 = vmul.f32 1.0, %v4046
      %v4048 = vrcp.pop %v3988
      %v4049 = vmul.f32 1.0, %v4048
      %v4050 = vrcp.pop %v3989
      %v4051 = vmul.f32 1.0, %v4050
      %v4052 = vrcp.pop %v3990
      %v4053 = vmul.f32 1.0, %v4052
      %v4054 = vrcp.pop %v3991
      %v4055 = vmul.f32 1.0, %v4054
      %v4056 = vrcp.pop %v3992
      %v4057 = vmul.f32 1.0, %v4056
      %v4058 = vrcp.pop %v3993
      %v4059 = vmul.f32 1.0, %v4058
      %v4060 = vrcp.pop %v3994
      %v4061 = vmul.f32 1.0, %v4060
      %v4062 = vrcp.pop %v3995
      %v4063 = vmul.f32 1.0, %v4062
      %v4064 = vrcp.pop %v3996
      %v4065 = vmul.f32 1.0, %v4064
      %v4066 = vrcp.pop %v3997
      %v4067 = vmul.f32 1.0, %v4066
      %v4068 = vrcp.pop %v3998
      %v4069 = vmul.f32 1.0, %v4068
      %v4070 = vrcp.pop %v3999
      %v4071 = vmul.f32 1.0, %v4070
      %v4072 = vtanh.pop %v3208
      %v4073 = vtanh.pop %v3209
      %v4074 = vtanh.pop %v3210
      %v4075 = vtanh.pop %v3211
      %v4076 = vtanh.pop %v3212
      %v4077 = vtanh.pop %v3213
      %v4078 = vtanh.pop %v3214
      %v4079 = vtanh.pop %v3215
      %v4080 = vtanh.pop %v3216
      %v4081 = vtanh.pop %v3217
      %v4082 = vtanh.pop %v3218
      %v4083 = vtanh.pop %v3219
      %v4084 = vtanh.pop %v3220
      %v4085 = vtanh.pop %v3221
      %v4086 = vtanh.pop %v3222
      %v4087 = vtanh.pop %v3223
      %v4088 = vtanh.pop %v3224
      %v4089 = vtanh.pop %v3225
      %v4090 = vtanh.pop %v3226
      %v4091 = vtanh.pop %v3227
      %v4092 = vtanh.pop %v3228
      %v4093 = vtanh.pop %v3229
      %v4094 = vtanh.pop %v3230
      %v4095 = vtanh.pop %v3231
      %v4096 = vtanh.pop %v3232
      %v4097 = vtanh.pop %v3233
      %v4098 = vtanh.pop %v3234
      %v4099 = vtanh.pop %v3235
      %v4100 = vtanh.pop %v3236
      %v4101 = vtanh.pop %v3237
      %v4102 = vtanh.pop %v3238
      %v4103 = vtanh.pop %v3239
      %v4104 = vtanh.pop %v3240
      %v4105 = vtanh.pop %v3241
      %v4106 = vtanh.pop %v3242
      %v4107 = vtanh.pop %v3243
      %v4108 = vmul.f32 %v4001, %v3677
      %v4109 = vmul.f32 %v4003, %v3679
      %v4110 = vmul.f32 %v4005, %v3681
      %v4111 = vmul.f32 %v4007, %v3683
      %v4112 = vmul.f32 %v4009, %v3685
      %v4113 = vmul.f32 %v4011, %v3687
      %v4114 = vmul.f32 %v4013, %v3689
      %v4115 = vmul.f32 %v4015, %v3691
      %v4116 = vmul.f32 %v4017, %v3693
      %v4117 = vmul.f32 %v4019, %v3695
      %v4118 = vmul.f32 %v4021, %v3697
      %v4119 = vmul.f32 %v4023, %v3699
      %v4120 = vmul.f32 %v4025, %v3701
      %v4121 = vmul.f32 %v4027, %v3703
      %v4122 = vmul.f32 %v4029, %v3705
      %v4123 = vmul.f32 %v4031, %v3707
      %v4124 = vmul.f32 %v4033, %v3709
      %v4125 = vmul.f32 %v4035, %v3711
      %v4126 = vmul.f32 %v4037, %v3713
      %v4127 = vmul.f32 %v4039, %v3715
      %v4128 = vmul.f32 %v4041, %v3717
      %v4129 = vmul.f32 %v4043, %v3719
      %v4130 = vmul.f32 %v4045, %v3721
      %v4131 = vmul.f32 %v4047, %v3723
      %v4132 = vmul.f32 %v4049, %v3725
      %v4133 = vmul.f32 %v4051, %v3727
      %v4134 = vmul.f32 %v4053, %v3729
      %v4135 = vmul.f32 %v4055, %v3731
      %v4136 = vmul.f32 %v4057, %v3733
      %v4137 = vmul.f32 %v4059, %v3735
      %v4138 = vmul.f32 %v4061, %v3737
      %v4139 = vmul.f32 %v4063, %v3739
      %v4140 = vmul.f32 %v4065, %v3741
      %v4141 = vmul.f32 %v4067, %v3743
      %v4142 = vmul.f32 %v4069, %v3745
      %v4143 = vmul.f32 %v4071, %v3747
      %4180 = vrot.lane.b32.xlu0 %v4072, 64
      %v4181 = vpop.permute.xlu0 %4180
      %4182 = vrot.lane.b32.xlu0 %v4073, 64
      %v4183 = vpop.permute.xlu0 %4182
      %4184 = vrot.lane.b32.xlu0 %v4074, 64
      %v4185 = vpop.permute.xlu0 %4184
      %4186 = vrot.lane.b32.xlu0 %v4075, 64
      %v4187 = vpop.permute.xlu0 %4186
      %4188 = vrot.lane.b32.xlu0 %v4076, 64
      %v4189 = vpop.permute.xlu0 %4188
      %4190 = vrot.lane.b32.xlu0 %v4077, 64
      %v4191 = vpop.permute.xlu0 %4190
      %4192 = vrot.lane.b32.xlu0 %v4078, 64
      %v4193 = vpop.permute.xlu0 %4192
      %4194 = vrot.lane.b32.xlu0 %v4079, 64
      %v4195 = vpop.permute.xlu0 %4194
      %4196 = vrot.lane.b32.xlu0 %v4080, 64
      %v4197 = vpop.permute.xlu0 %4196
      %4198 = vrot.lane.b32.xlu0 %v4081, 64
      %v4199 = vpop.permute.xlu0 %4198
      %4200 = vrot.lane.b32.xlu0 %v4082, 64
      %v4201 = vpop.permute.xlu0 %4200
      %4202 = vrot.lane.b32.xlu0 %v4083, 64
      %v4203 = vpop.permute.xlu0 %4202
      %4204 = vrot.lane.b32.xlu0 %v4084, 64
      %v4205 = vpop.permute.xlu0 %4204
      %4206 = vrot.lane.b32.xlu0 %v4085, 64
      %v4207 = vpop.permute.xlu0 %4206
      %4208 = vrot.lane.b32.xlu0 %v4086, 64
      %v4209 = vpop.permute.xlu0 %4208
      %4210 = vrot.lane.b32.xlu0 %v4087, 64
      %v4211 = vpop.permute.xlu0 %4210
      %4212 = vrot.lane.b32.xlu0 %v4088, 64
      %v4213 = vpop.permute.xlu0 %4212
      %4214 = vrot.lane.b32.xlu0 %v4089, 64
      %v4215 = vpop.permute.xlu0 %4214
      %4216 = vrot.lane.b32.xlu0 %v4090, 64
      %v4217 = vpop.permute.xlu0 %4216
      %4218 = vrot.lane.b32.xlu0 %v4091, 64
      %v4219 = vpop.permute.xlu0 %4218
      %4220 = vrot.lane.b32.xlu0 %v4092, 64
      %v4221 = vpop.permute.xlu0 %4220
      %4222 = vrot.lane.b32.xlu0 %v4093, 64
      %v4223 = vpop.permute.xlu0 %4222
      %4224 = vrot.lane.b32.xlu0 %v4094, 64
      %v4225 = vpop.permute.xlu0 %4224
      %4226 = vrot.lane.b32.xlu0 %v4095, 64
      %v4227 = vpop.permute.xlu0 %4226
      %4228 = vrot.lane.b32.xlu0 %v4096, 64
      %v4229 = vpop.permute.xlu0 %4228
      %4230 = vrot.lane.b32.xlu0 %v4097, 64
      %v4231 = vpop.permute.xlu0 %4230
      %4232 = vrot.lane.b32.xlu0 %v4098, 64
      %v4233 = vpop.permute.xlu0 %4232
      %4234 = vrot.lane.b32.xlu0 %v4099, 64
      %v4235 = vpop.permute.xlu0 %4234
      %4236 = vrot.lane.b32.xlu0 %v4100, 64
      %v4237 = vpop.permute.xlu0 %4236
      %4238 = vrot.lane.b32.xlu0 %v4101, 64
      %v4239 = vpop.permute.xlu0 %4238
      %4240 = vrot.lane.b32.xlu0 %v4102, 64
      %v4241 = vpop.permute.xlu0 %4240
      %4242 = vrot.lane.b32.xlu0 %v4103, 64
      %v4243 = vpop.permute.xlu0 %4242
      %4244 = vrot.lane.b32.xlu0 %v4104, 64
      %v4245 = vpop.permute.xlu0 %4244
      %4246 = vrot.lane.b32.xlu0 %v4105, 64
      %v4247 = vpop.permute.xlu0 %4246
      %4248 = vrot.lane.b32.xlu0 %v4106, 64
      %v4249 = vpop.permute.xlu0 %4248
      %4250 = vrot.lane.b32.xlu0 %v4107, 64
      %v4251 = vpop.permute.xlu0 %4250
      %v4288 = vmul.f32 %v3569, %v4181
      %v4289 = vmul.f32 %v3571, %v4183
      %v4290 = vmul.f32 %v3573, %v4185
      %v4291 = vmul.f32 %v3575, %v4187
      %v4292 = vmul.f32 %v3577, %v4189
      %v4293 = vmul.f32 %v3579, %v4191
      %v4294 = vmul.f32 %v3581, %v4193
      %v4295 = vmul.f32 %v3583, %v4195
      %v4296 = vmul.f32 %v3585, %v4197
      %v4297 = vmul.f32 %v3587, %v4199
      %v4298 = vmul.f32 %v3589, %v4201
      %v4299 = vmul.f32 %v3591, %v4203
      %v4300 = vmul.f32 %v3593, %v4205
      %v4301 = vmul.f32 %v3595, %v4207
      %v4302 = vmul.f32 %v3597, %v4209
      %v4303 = vmul.f32 %v3599, %v4211
      %v4304 = vmul.f32 %v3601, %v4213
      %v4305 = vmul.f32 %v3603, %v4215
      %v4306 = vmul.f32 %v3605, %v4217
      %v4307 = vmul.f32 %v3607, %v4219
      %v4308 = vmul.f32 %v3609, %v4221
      %v4309 = vmul.f32 %v3611, %v4223
      %v4310 = vmul.f32 %v3613, %v4225
      %v4311 = vmul.f32 %v3615, %v4227
      %v4312 = vmul.f32 %v3617, %v4229
      %v4313 = vmul.f32 %v3619, %v4231
      %v4314 = vmul.f32 %v3621, %v4233
      %v4315 = vmul.f32 %v3623, %v4235
      %v4316 = vmul.f32 %v3625, %v4237
      %v4317 = vmul.f32 %v3627, %v4239
      %v4318 = vmul.f32 %v3629, %v4241
      %v4319 = vmul.f32 %v3631, %v4243
      %v4320 = vmul.f32 %v3633, %v4245
      %v4321 = vmul.f32 %v3635, %v4247
      %v4322 = vmul.f32 %v3637, %v4249
      %v4323 = vmul.f32 %v3639, %v4251
      %4360 = vrot.lane.b32.xlu0 %v4288, 32
      %v4361 = vpop.permute.xlu0 %4360
      %4362 = vrot.lane.b32.xlu0 %v4289, 32
      %v4363 = vpop.permute.xlu0 %4362
      %4364 = vrot.lane.b32.xlu0 %v4290, 32
      %v4365 = vpop.permute.xlu0 %4364
      %4366 = vrot.lane.b32.xlu0 %v4291, 32
      %v4367 = vpop.permute.xlu0 %4366
      %4368 = vrot.lane.b32.xlu0 %v4292, 32
      %v4369 = vpop.permute.xlu0 %4368
      %4370 = vrot.lane.b32.xlu0 %v4293, 32
      %v4371 = vpop.permute.xlu0 %4370
      %4372 = vrot.lane.b32.xlu0 %v4294, 32
      %v4373 = vpop.permute.xlu0 %4372
      %4374 = vrot.lane.b32.xlu0 %v4295, 32
      %v4375 = vpop.permute.xlu0 %4374
      %4376 = vrot.lane.b32.xlu0 %v4296, 32
      %v4377 = vpop.permute.xlu0 %4376
      %4378 = vrot.lane.b32.xlu0 %v4297, 32
      %v4379 = vpop.permute.xlu0 %4378
      %4380 = vrot.lane.b32.xlu0 %v4298, 32
      %v4381 = vpop.permute.xlu0 %4380
      %4382 = vrot.lane.b32.xlu0 %v4299, 32
      %v4383 = vpop.permute.xlu0 %4382
      %4384 = vrot.lane.b32.xlu0 %v4300, 32
      %v4385 = vpop.permute.xlu0 %4384
      %4386 = vrot.lane.b32.xlu0 %v4301, 32
      %v4387 = vpop.permute.xlu0 %4386
      %4388 = vrot.lane.b32.xlu0 %v4302, 32
      %v4389 = vpop.permute.xlu0 %4388
      %4390 = vrot.lane.b32.xlu0 %v4303, 32
      %v4391 = vpop.permute.xlu0 %4390
      %4392 = vrot.lane.b32.xlu0 %v4304, 32
      %v4393 = vpop.permute.xlu0 %4392
      %4394 = vrot.lane.b32.xlu0 %v4305, 32
      %v4395 = vpop.permute.xlu0 %4394
      %4396 = vrot.lane.b32.xlu0 %v4306, 32
      %v4397 = vpop.permute.xlu0 %4396
      %4398 = vrot.lane.b32.xlu0 %v4307, 32
      %v4399 = vpop.permute.xlu0 %4398
      %4400 = vrot.lane.b32.xlu0 %v4308, 32
      %v4401 = vpop.permute.xlu0 %4400
      %4402 = vrot.lane.b32.xlu0 %v4309, 32
      %v4403 = vpop.permute.xlu0 %4402
      %4404 = vrot.lane.b32.xlu0 %v4310, 32
      %v4405 = vpop.permute.xlu0 %4404
      %4406 = vrot.lane.b32.xlu0 %v4311, 32
      %v4407 = vpop.permute.xlu0 %4406
      %4408 = vrot.lane.b32.xlu0 %v4312, 32
      %v4409 = vpop.permute.xlu0 %4408
      %4410 = vrot.lane.b32.xlu0 %v4313, 32
      %v4411 = vpop.permute.xlu0 %4410
      %4412 = vrot.lane.b32.xlu0 %v4314, 32
      %v4413 = vpop.permute.xlu0 %4412
      %4414 = vrot.lane.b32.xlu0 %v4315, 32
      %v4415 = vpop.permute.xlu0 %4414
      %4416 = vrot.lane.b32.xlu0 %v4316, 32
      %v4417 = vpop.permute.xlu0 %4416
      %4418 = vrot.lane.b32.xlu0 %v4317, 32
      %v4419 = vpop.permute.xlu0 %4418
      %4420 = vrot.lane.b32.xlu0 %v4318, 32
      %v4421 = vpop.permute.xlu0 %4420
      %4422 = vrot.lane.b32.xlu0 %v4319, 32
      %v4423 = vpop.permute.xlu0 %4422
      %4424 = vrot.lane.b32.xlu0 %v4320, 32
      %v4425 = vpop.permute.xlu0 %4424
      %4426 = vrot.lane.b32.xlu0 %v4321, 32
      %v4427 = vpop.permute.xlu0 %4426
      %4428 = vrot.lane.b32.xlu0 %v4322, 32
      %v4429 = vpop.permute.xlu0 %4428
      %4430 = vrot.lane.b32.xlu0 %v4323, 32
      %v4431 = vpop.permute.xlu0 %4430
      %v4468 = vadd.f32 %v4108, %v4361
      %v4469 = vadd.f32 %v4109, %v4363
      %v4470 = vadd.f32 %v4110, %v4365
      %v4471 = vadd.f32 %v4111, %v4367
      %v4472 = vadd.f32 %v4112, %v4369
      %v4473 = vadd.f32 %v4113, %v4371
      %v4474 = vadd.f32 %v4114, %v4373
      %v4475 = vadd.f32 %v4115, %v4375
      %v4476 = vadd.f32 %v4116, %v4377
      %v4477 = vadd.f32 %v4117, %v4379
      %v4478 = vadd.f32 %v4118, %v4381
      %v4479 = vadd.f32 %v4119, %v4383
      %v4480 = vadd.f32 %v4120, %v4385
      %v4481 = vadd.f32 %v4121, %v4387
      %v4482 = vadd.f32 %v4122, %v4389
      %v4483 = vadd.f32 %v4123, %v4391
      %v4484 = vadd.f32 %v4124, %v4393
      %v4485 = vadd.f32 %v4125, %v4395
      %v4486 = vadd.f32 %v4126, %v4397
      %v4487 = vadd.f32 %v4127, %v4399
      %v4488 = vadd.f32 %v4128, %v4401
      %v4489 = vadd.f32 %v4129, %v4403
      %v4490 = vadd.f32 %v4130, %v4405
      %v4491 = vadd.f32 %v4131, %v4407
      %v4492 = vadd.f32 %v4132, %v4409
      %v4493 = vadd.f32 %v4133, %v4411
      %v4494 = vadd.f32 %v4134, %v4413
      %v4495 = vadd.f32 %v4135, %v4415
      %v4496 = vadd.f32 %v4136, %v4417
      %v4497 = vadd.f32 %v4137, %v4419
      %v4498 = vadd.f32 %v4138, %v4421
      %v4499 = vadd.f32 %v4139, %v4423
      %v4500 = vadd.f32 %v4140, %v4425
      %v4501 = vadd.f32 %v4141, %v4427
      %v4502 = vadd.f32 %v4142, %v4429
      %v4503 = vadd.f32 %v4143, %v4431
      %4540 = vrot.lane.b32.xlu0 %v4468, 32
      %v4541 = vpop.permute.xlu0 %4540
      %4542 = vrot.lane.b32.xlu0 %v4469, 32
      %v4543 = vpop.permute.xlu0 %4542
      %4544 = vrot.lane.b32.xlu0 %v4470, 32
      %v4545 = vpop.permute.xlu0 %4544
      %4546 = vrot.lane.b32.xlu0 %v4471, 32
      %v4547 = vpop.permute.xlu0 %4546
      %4548 = vrot.lane.b32.xlu0 %v4472, 32
      %v4549 = vpop.permute.xlu0 %4548
      %4550 = vrot.lane.b32.xlu0 %v4473, 32
      %v4551 = vpop.permute.xlu0 %4550
      %4552 = vrot.lane.b32.xlu0 %v4474, 32
      %v4553 = vpop.permute.xlu0 %4552
      %4554 = vrot.lane.b32.xlu0 %v4475, 32
      %v4555 = vpop.permute.xlu0 %4554
      %4556 = vrot.lane.b32.xlu0 %v4476, 32
      %v4557 = vpop.permute.xlu0 %4556
      %4558 = vrot.lane.b32.xlu0 %v4477, 32
      %v4559 = vpop.permute.xlu0 %4558
      %4560 = vrot.lane.b32.xlu0 %v4478, 32
      %v4561 = vpop.permute.xlu0 %4560
      %4562 = vrot.lane.b32.xlu0 %v4479, 32
      %v4563 = vpop.permute.xlu0 %4562
      %4564 = vrot.lane.b32.xlu0 %v4480, 32
      %v4565 = vpop.permute.xlu0 %4564
      %4566 = vrot.lane.b32.xlu0 %v4481, 32
      %v4567 = vpop.permute.xlu0 %4566
      %4568 = vrot.lane.b32.xlu0 %v4482, 32
      %v4569 = vpop.permute.xlu0 %4568
      %4570 = vrot.lane.b32.xlu0 %v4483, 32
      %v4571 = vpop.permute.xlu0 %4570
      %4572 = vrot.lane.b32.xlu0 %v4484, 32
      %v4573 = vpop.permute.xlu0 %4572
      %4574 = vrot.lane.b32.xlu0 %v4485, 32
      %v4575 = vpop.permute.xlu0 %4574
      %4576 = vrot.lane.b32.xlu0 %v4486, 32
      %v4577 = vpop.permute.xlu0 %4576
      %4578 = vrot.lane.b32.xlu0 %v4487, 32
      %v4579 = vpop.permute.xlu0 %4578
      %4580 = vrot.lane.b32.xlu0 %v4488, 32
      %v4581 = vpop.permute.xlu0 %4580
      %4582 = vrot.lane.b32.xlu0 %v4489, 32
      %v4583 = vpop.permute.xlu0 %4582
      %4584 = vrot.lane.b32.xlu0 %v4490, 32
      %v4585 = vpop.permute.xlu0 %4584
      %4586 = vrot.lane.b32.xlu0 %v4491, 32
      %v4587 = vpop.permute.xlu0 %4586
      %4588 = vrot.lane.b32.xlu0 %v4492, 32
      %v4589 = vpop.permute.xlu0 %4588
      %4590 = vrot.lane.b32.xlu0 %v4493, 32
      %v4591 = vpop.permute.xlu0 %4590
      %4592 = vrot.lane.b32.xlu0 %v4494, 32
      %v4593 = vpop.permute.xlu0 %4592
      %4594 = vrot.lane.b32.xlu0 %v4495, 32
      %v4595 = vpop.permute.xlu0 %4594
      %4596 = vrot.lane.b32.xlu0 %v4496, 32
      %v4597 = vpop.permute.xlu0 %4596
      %4598 = vrot.lane.b32.xlu0 %v4497, 32
      %v4599 = vpop.permute.xlu0 %4598
      %4600 = vrot.lane.b32.xlu0 %v4498, 32
      %v4601 = vpop.permute.xlu0 %4600
      %4602 = vrot.lane.b32.xlu0 %v4499, 32
      %v4603 = vpop.permute.xlu0 %4602
      %4604 = vrot.lane.b32.xlu0 %v4500, 32
      %v4605 = vpop.permute.xlu0 %4604
      %4606 = vrot.lane.b32.xlu0 %v4501, 32
      %v4607 = vpop.permute.xlu0 %4606
      %4608 = vrot.lane.b32.xlu0 %v4502, 32
      %v4609 = vpop.permute.xlu0 %4608
      %4610 = vrot.lane.b32.xlu0 %v4503, 32
      %v4611 = vpop.permute.xlu0 %4610
      %v4648 = vmul.f32 %v3316, %v4541
      %v4649 = vmul.f32 %v3317, %v4543
      %v4650 = vmul.f32 %v3318, %v4545
      %v4651 = vmul.f32 %v3319, %v4547
      %v4652 = vmul.f32 %v3320, %v4549
      %v4653 = vmul.f32 %v3321, %v4551
      %v4654 = vmul.f32 %v3322, %v4553
      %v4655 = vmul.f32 %v3323, %v4555
      %v4656 = vmul.f32 %v3324, %v4557
      %v4657 = vmul.f32 %v3325, %v4559
      %v4658 = vmul.f32 %v3326, %v4561
      %v4659 = vmul.f32 %v3327, %v4563
      %v4660 = vmul.f32 %v3328, %v4565
      %v4661 = vmul.f32 %v3329, %v4567
      %v4662 = vmul.f32 %v3330, %v4569
      %v4663 = vmul.f32 %v3331, %v4571
      %v4664 = vmul.f32 %v3332, %v4573
      %v4665 = vmul.f32 %v3333, %v4575
      %v4666 = vmul.f32 %v3334, %v4577
      %v4667 = vmul.f32 %v3335, %v4579
      %v4668 = vmul.f32 %v3336, %v4581
      %v4669 = vmul.f32 %v3337, %v4583
      %v4670 = vmul.f32 %v3338, %v4585
      %v4671 = vmul.f32 %v3339, %v4587
      %v4672 = vmul.f32 %v3340, %v4589
      %v4673 = vmul.f32 %v3341, %v4591
      %v4674 = vmul.f32 %v3342, %v4593
      %v4675 = vmul.f32 %v3343, %v4595
      %v4676 = vmul.f32 %v3344, %v4597
      %v4677 = vmul.f32 %v3345, %v4599
      %v4678 = vmul.f32 %v3346, %v4601
      %v4679 = vmul.f32 %v3347, %v4603
      %v4680 = vmul.f32 %v3348, %v4605
      %v4681 = vmul.f32 %v3349, %v4607
      %v4682 = vmul.f32 %v3350, %v4609
      %v4683 = vmul.f32 %v3351, %v4611
      %4720 = vrot.lane.b32.xlu0 %v4648, 32
      %v4721 = vpop.permute.xlu0 %4720
      %4722 = vrot.lane.b32.xlu0 %v4649, 32
      %v4723 = vpop.permute.xlu0 %4722
      %4724 = vrot.lane.b32.xlu0 %v4650, 32
      %v4725 = vpop.permute.xlu0 %4724
      %4726 = vrot.lane.b32.xlu0 %v4651, 32
      %v4727 = vpop.permute.xlu0 %4726
      %4728 = vrot.lane.b32.xlu0 %v4652, 32
      %v4729 = vpop.permute.xlu0 %4728
      %4730 = vrot.lane.b32.xlu0 %v4653, 32
      %v4731 = vpop.permute.xlu0 %4730
      %4732 = vrot.lane.b32.xlu0 %v4654, 32
      %v4733 = vpop.permute.xlu0 %4732
      %4734 = vrot.lane.b32.xlu0 %v4655, 32
      %v4735 = vpop.permute.xlu0 %4734
      %4736 = vrot.lane.b32.xlu0 %v4656, 32
      %v4737 = vpop.permute.xlu0 %4736
      %4738 = vrot.lane.b32.xlu0 %v4657, 32
      %v4739 = vpop.permute.xlu0 %4738
      %4740 = vrot.lane.b32.xlu0 %v4658, 32
      %v4741 = vpop.permute.xlu0 %4740
      %4742 = vrot.lane.b32.xlu0 %v4659, 32
      %v4743 = vpop.permute.xlu0 %4742
      %4744 = vrot.lane.b32.xlu0 %v4660, 32
      %v4745 = vpop.permute.xlu0 %4744
      %4746 = vrot.lane.b32.xlu0 %v4661, 32
      %v4747 = vpop.permute.xlu0 %4746
      %4748 = vrot.lane.b32.xlu0 %v4662, 32
      %v4749 = vpop.permute.xlu0 %4748
      %4750 = vrot.lane.b32.xlu0 %v4663, 32
      %v4751 = vpop.permute.xlu0 %4750
      %4752 = vrot.lane.b32.xlu0 %v4664, 32
      %v4753 = vpop.permute.xlu0 %4752
      %4754 = vrot.lane.b32.xlu0 %v4665, 32
      %v4755 = vpop.permute.xlu0 %4754
      %4756 = vrot.lane.b32.xlu0 %v4666, 32
      %v4757 = vpop.permute.xlu0 %4756
      %4758 = vrot.lane.b32.xlu0 %v4667, 32
      %v4759 = vpop.permute.xlu0 %4758
      %4760 = vrot.lane.b32.xlu0 %v4668, 32
      %v4761 = vpop.permute.xlu0 %4760
      %4762 = vrot.lane.b32.xlu0 %v4669, 32
      %v4763 = vpop.permute.xlu0 %4762
      %4764 = vrot.lane.b32.xlu0 %v4670, 32
      %v4765 = vpop.permute.xlu0 %4764
      %4766 = vrot.lane.b32.xlu0 %v4671, 32
      %v4767 = vpop.permute.xlu0 %4766
      %4768 = vrot.lane.b32.xlu0 %v4672, 32
      %v4769 = vpop.permute.xlu0 %4768
      %4770 = vrot.lane.b32.xlu0 %v4673, 32
      %v4771 = vpop.permute.xlu0 %4770
      %4772 = vrot.lane.b32.xlu0 %v4674, 32
      %v4773 = vpop.permute.xlu0 %4772
      %4774 = vrot.lane.b32.xlu0 %v4675, 32
      %v4775 = vpop.permute.xlu0 %4774
      %4776 = vrot.lane.b32.xlu0 %v4676, 32
      %v4777 = vpop.permute.xlu0 %4776
      %4778 = vrot.lane.b32.xlu0 %v4677, 32
      %v4779 = vpop.permute.xlu0 %4778
      %4780 = vrot.lane.b32.xlu0 %v4678, 32
      %v4781 = vpop.permute.xlu0 %4780
      %4782 = vrot.lane.b32.xlu0 %v4679, 32
      %v4783 = vpop.permute.xlu0 %4782
      %4784 = vrot.lane.b32.xlu0 %v4680, 32
      %v4785 = vpop.permute.xlu0 %4784
      %4786 = vrot.lane.b32.xlu0 %v4681, 32
      %v4787 = vpop.permute.xlu0 %4786
      %4788 = vrot.lane.b32.xlu0 %v4682, 32
      %v4789 = vpop.permute.xlu0 %4788
      %4790 = vrot.lane.b32.xlu0 %v4683, 32
      %v4791 = vpop.permute.xlu0 %4790
      %v4828 = vadd.f32 %v3208, %v4721
      %v4829 = vadd.f32 %v3209, %v4723
      %v4830 = vadd.f32 %v3210, %v4725
      %v4831 = vadd.f32 %v3211, %v4727
      %v4832 = vadd.f32 %v3212, %v4729
      %v4833 = vadd.f32 %v3213, %v4731
      %v4834 = vadd.f32 %v3214, %v4733
      %v4835 = vadd.f32 %v3215, %v4735
      %v4836 = vadd.f32 %v3216, %v4737
      %v4837 = vadd.f32 %v3217, %v4739
      %v4838 = vadd.f32 %v3218, %v4741
      %v4839 = vadd.f32 %v3219, %v4743
      %v4840 = vadd.f32 %v3220, %v4745
      %v4841 = vadd.f32 %v3221, %v4747
      %v4842 = vadd.f32 %v3222, %v4749
      %v4843 = vadd.f32 %v3223, %v4751
      %v4844 = vadd.f32 %v3224, %v4753
      %v4845 = vadd.f32 %v3225, %v4755
      %v4846 = vadd.f32 %v3226, %v4757
      %v4847 = vadd.f32 %v3227, %v4759
      %v4848 = vadd.f32 %v3228, %v4761
      %v4849 = vadd.f32 %v3229, %v4763
      %v4850 = vadd.f32 %v3230, %v4765
      %v4851 = vadd.f32 %v3231, %v4767
      %v4852 = vadd.f32 %v3232, %v4769
      %v4853 = vadd.f32 %v3233, %v4771
      %v4854 = vadd.f32 %v3234, %v4773
      %v4855 = vadd.f32 %v3235, %v4775
      %v4856 = vadd.f32 %v3236, %v4777
      %v4857 = vadd.f32 %v3237, %v4779
      %v4858 = vadd.f32 %v3238, %v4781
      %v4859 = vadd.f32 %v3239, %v4783
      %v4860 = vadd.f32 %v3240, %v4785
      %v4861 = vadd.f32 %v3241, %v4787
      %v4862 = vadd.f32 %v3242, %v4789
      %v4863 = vadd.f32 %v3243, %v4791
      %v4864 = vxor.u32 %v4828, 2147483648
      %v4865 = vxor.u32 %v4829, 2147483648
      %v4866 = vxor.u32 %v4830, 2147483648
      %v4867 = vxor.u32 %v4831, 2147483648
      %v4868 = vxor.u32 %v4832, 2147483648
      %v4869 = vxor.u32 %v4833, 2147483648
      %v4870 = vxor.u32 %v4834, 2147483648
      %v4871 = vxor.u32 %v4835, 2147483648
      %v4872 = vxor.u32 %v4836, 2147483648
      %v4873 = vxor.u32 %v4837, 2147483648
      %v4874 = vxor.u32 %v4838, 2147483648
      %v4875 = vxor.u32 %v4839, 2147483648
      %v4876 = vxor.u32 %v4840, 2147483648
      %v4877 = vxor.u32 %v4841, 2147483648
      %v4878 = vxor.u32 %v4842, 2147483648
      %v4879 = vxor.u32 %v4843, 2147483648
      %v4880 = vxor.u32 %v4844, 2147483648
      %v4881 = vxor.u32 %v4845, 2147483648
      %v4882 = vxor.u32 %v4846, 2147483648
      %v4883 = vxor.u32 %v4847, 2147483648
      %v4884 = vxor.u32 %v4848, 2147483648
      %v4885 = vxor.u32 %v4849, 2147483648
      %v4886 = vxor.u32 %v4850, 2147483648
      %v4887 = vxor.u32 %v4851, 2147483648
      %v4888 = vxor.u32 %v4852, 2147483648
      %v4889 = vxor.u32 %v4853, 2147483648
      %v4890 = vxor.u32 %v4854, 2147483648
      %v4891 = vxor.u32 %v4855, 2147483648
      %v4892 = vxor.u32 %v4856, 2147483648
      %v4893 = vxor.u32 %v4857, 2147483648
      %v4894 = vxor.u32 %v4858, 2147483648
      %v4895 = vxor.u32 %v4859, 2147483648
      %v4896 = vxor.u32 %v4860, 2147483648
      %v4897 = vxor.u32 %v4861, 2147483648
      %v4898 = vxor.u32 %v4862, 2147483648
      %v4899 = vxor.u32 %v4863, 2147483648
      %v4900 = vmul.f32 %v4864, 1.442695
      %v4901 = vpow.pop %v4900
      %v4902 = vmul.f32 %v4865, 1.442695
      %v4903 = vpow.pop %v4902
      %v4904 = vmul.f32 %v4866, 1.442695
      %v4905 = vpow.pop %v4904
      %v4906 = vmul.f32 %v4867, 1.442695
      %v4907 = vpow.pop %v4906
      %v4908 = vmul.f32 %v4868, 1.442695
      %v4909 = vpow.pop %v4908
      %v4910 = vmul.f32 %v4869, 1.442695
      %v4911 = vpow.pop %v4910
      %v4912 = vmul.f32 %v4870, 1.442695
      %v4913 = vpow.pop %v4912
      %v4914 = vmul.f32 %v4871, 1.442695
      %v4915 = vpow.pop %v4914
      %v4916 = vmul.f32 %v4872, 1.442695
      %v4917 = vpow.pop %v4916
      %v4918 = vmul.f32 %v4873, 1.442695
      %v4919 = vpow.pop %v4918
      %v4920 = vmul.f32 %v4874, 1.442695
      %v4921 = vpow.pop %v4920
      %v4922 = vmul.f32 %v4875, 1.442695
      %v4923 = vpow.pop %v4922
      %v4924 = vmul.f32 %v4876, 1.442695
      %v4925 = vpow.pop %v4924
      %v4926 = vmul.f32 %v4877, 1.442695
      %v4927 = vpow.pop %v4926
      %v4928 = vmul.f32 %v4878, 1.442695
      %v4929 = vpow.pop %v4928
      %v4930 = vmul.f32 %v4879, 1.442695
      %v4931 = vpow.pop %v4930
      %v4932 = vmul.f32 %v4880, 1.442695
      %v4933 = vpow.pop %v4932
      %v4934 = vmul.f32 %v4881, 1.442695
      %v4935 = vpow.pop %v4934
      %v4936 = vmul.f32 %v4882, 1.442695
      %v4937 = vpow.pop %v4936
      %v4938 = vmul.f32 %v4883, 1.442695
      %v4939 = vpow.pop %v4938
      %v4940 = vmul.f32 %v4884, 1.442695
      %v4941 = vpow.pop %v4940
      %v4942 = vmul.f32 %v4885, 1.442695
      %v4943 = vpow.pop %v4942
      %v4944 = vmul.f32 %v4886, 1.442695
      %v4945 = vpow.pop %v4944
      %v4946 = vmul.f32 %v4887, 1.442695
      %v4947 = vpow.pop %v4946
      %v4948 = vmul.f32 %v4888, 1.442695
      %v4949 = vpow.pop %v4948
      %v4950 = vmul.f32 %v4889, 1.442695
      %v4951 = vpow.pop %v4950
      %v4952 = vmul.f32 %v4890, 1.442695
      %v4953 = vpow.pop %v4952
      %v4954 = vmul.f32 %v4891, 1.442695
      %v4955 = vpow.pop %v4954
      %v4956 = vmul.f32 %v4892, 1.442695
      %v4957 = vpow.pop %v4956
      %v4958 = vmul.f32 %v4893, 1.442695
      %v4959 = vpow.pop %v4958
      %v4960 = vmul.f32 %v4894, 1.442695
      %v4961 = vpow.pop %v4960
      %v4962 = vmul.f32 %v4895, 1.442695
      %v4963 = vpow.pop %v4962
      %v4964 = vmul.f32 %v4896, 1.442695
      %v4965 = vpow.pop %v4964
      %v4966 = vmul.f32 %v4897, 1.442695
      %v4967 = vpow.pop %v4966
      %v4968 = vmul.f32 %v4898, 1.442695
      %v4969 = vpow.pop %v4968
      %v4970 = vmul.f32 %v4899, 1.442695
      %v4971 = vpow.pop %v4970
      %v4972 = vadd.f32 %v4901, 1.0
      %v4973 = vadd.f32 %v4903, 1.0
      %v4974 = vadd.f32 %v4905, 1.0
      %v4975 = vadd.f32 %v4907, 1.0
      %v4976 = vadd.f32 %v4909, 1.0
      %v4977 = vadd.f32 %v4911, 1.0
      %v4978 = vadd.f32 %v4913, 1.0
      %v4979 = vadd.f32 %v4915, 1.0
      %v4980 = vadd.f32 %v4917, 1.0
      %v4981 = vadd.f32 %v4919, 1.0
      %v4982 = vadd.f32 %v4921, 1.0
      %v4983 = vadd.f32 %v4923, 1.0
      %v4984 = vadd.f32 %v4925, 1.0
      %v4985 = vadd.f32 %v4927, 1.0
      %v4986 = vadd.f32 %v4929, 1.0
      %v4987 = vadd.f32 %v4931, 1.0
      %v4988 = vadd.f32 %v4933, 1.0
      %v4989 = vadd.f32 %v4935, 1.0
      %v4990 = vadd.f32 %v4937, 1.0
      %v4991 = vadd.f32 %v4939, 1.0
      %v4992 = vadd.f32 %v4941, 1.0
      %v4993 = vadd.f32 %v4943, 1.0
      %v4994 = vadd.f32 %v4945, 1.0
      %v4995 = vadd.f32 %v4947, 1.0
      %v4996 = vadd.f32 %v4949, 1.0
      %v4997 = vadd.f32 %v4951, 1.0
      %v4998 = vadd.f32 %v4953, 1.0
      %v4999 = vadd.f32 %v4955, 1.0
      %v5000 = vadd.f32 %v4957, 1.0
      %v5001 = vadd.f32 %v4959, 1.0
      %v5002 = vadd.f32 %v4961, 1.0
      %v5003 = vadd.f32 %v4963, 1.0
      %v5004 = vadd.f32 %v4965, 1.0
      %v5005 = vadd.f32 %v4967, 1.0
      %v5006 = vadd.f32 %v4969, 1.0
      %v5007 = vadd.f32 %v4971, 1.0
      %v5008 = vrcp.pop %v4972
      %v5009 = vmul.f32 1.0, %v5008
      %v5010 = vrcp.pop %v4973
      %v5011 = vmul.f32 1.0, %v5010
      %v5012 = vrcp.pop %v4974
      %v5013 = vmul.f32 1.0, %v5012
      %v5014 = vrcp.pop %v4975
      %v5015 = vmul.f32 1.0, %v5014
      %v5016 = vrcp.pop %v4976
      %v5017 = vmul.f32 1.0, %v5016
      %v5018 = vrcp.pop %v4977
      %v5019 = vmul.f32 1.0, %v5018
      %v5020 = vrcp.pop %v4978
      %v5021 = vmul.f32 1.0, %v5020
      %v5022 = vrcp.pop %v4979
      %v5023 = vmul.f32 1.0, %v5022
      %v5024 = vrcp.pop %v4980
      %v5025 = vmul.f32 1.0, %v5024
      %v5026 = vrcp.pop %v4981
      %v5027 = vmul.f32 1.0, %v5026
      %v5028 = vrcp.pop %v4982
      %v5029 = vmul.f32 1.0, %v5028
      %v5030 = vrcp.pop %v4983
      %v5031 = vmul.f32 1.0, %v5030
      %v5032 = vrcp.pop %v4984
      %v5033 = vmul.f32 1.0, %v5032
      %v5034 = vrcp.pop %v4985
      %v5035 = vmul.f32 1.0, %v5034
      %v5036 = vrcp.pop %v4986
      %v5037 = vmul.f32 1.0, %v5036
      %v5038 = vrcp.pop %v4987
      %v5039 = vmul.f32 1.0, %v5038
      %v5040 = vrcp.pop %v4988
      %v5041 = vmul.f32 1.0, %v5040
      %v5042 = vrcp.pop %v4989
      %v5043 = vmul.f32 1.0, %v5042
      %v5044 = vrcp.pop %v4990
      %v5045 = vmul.f32 1.0, %v5044
      %v5046 = vrcp.pop %v4991
      %v5047 = vmul.f32 1.0, %v5046
      %v5048 = vrcp.pop %v4992
      %v5049 = vmul.f32 1.0, %v5048
      %v5050 = vrcp.pop %v4993
      %v5051 = vmul.f32 1.0, %v5050
      %v5052 = vrcp.pop %v4994
      %v5053 = vmul.f32 1.0, %v5052
      %v5054 = vrcp.pop %v4995
      %v5055 = vmul.f32 1.0, %v5054
      %v5056 = vrcp.pop %v4996
      %v5057 = vmul.f32 1.0, %v5056
      %v5058 = vrcp.pop %v4997
      %v5059 = vmul.f32 1.0, %v5058
      %v5060 = vrcp.pop %v4998
      %v5061 = vmul.f32 1.0, %v5060
      %v5062 = vrcp.pop %v4999
      %v5063 = vmul.f32 1.0, %v5062
      %v5064 = vrcp.pop %v5000
      %v5065 = vmul.f32 1.0, %v5064
      %v5066 = vrcp.pop %v5001
      %v5067 = vmul.f32 1.0, %v5066
      %v5068 = vrcp.pop %v5002
      %v5069 = vmul.f32 1.0, %v5068
      %v5070 = vrcp.pop %v5003
      %v5071 = vmul.f32 1.0, %v5070
      %v5072 = vrcp.pop %v5004
      %v5073 = vmul.f32 1.0, %v5072
      %v5074 = vrcp.pop %v5005
      %v5075 = vmul.f32 1.0, %v5074
      %v5076 = vrcp.pop %v5006
      %v5077 = vmul.f32 1.0, %v5076
      %v5078 = vrcp.pop %v5007
      %v5079 = vmul.f32 1.0, %v5078
      %v5080 = vtanh.pop %v4468
      %v5081 = vtanh.pop %v4469
      %v5082 = vtanh.pop %v4470
      %v5083 = vtanh.pop %v4471
      %v5084 = vtanh.pop %v4472
      %v5085 = vtanh.pop %v4473
      %v5086 = vtanh.pop %v4474
      %v5087 = vtanh.pop %v4475
      %v5088 = vtanh.pop %v4476
      %v5089 = vtanh.pop %v4477
      %v5090 = vtanh.pop %v4478
      %v5091 = vtanh.pop %v4479
      %v5092 = vtanh.pop %v4480
      %v5093 = vtanh.pop %v4481
      %v5094 = vtanh.pop %v4482
      %v5095 = vtanh.pop %v4483
      %v5096 = vtanh.pop %v4484
      %v5097 = vtanh.pop %v4485
      %v5098 = vtanh.pop %v4486
      %v5099 = vtanh.pop %v4487
      %v5100 = vtanh.pop %v4488
      %v5101 = vtanh.pop %v4489
      %v5102 = vtanh.pop %v4490
      %v5103 = vtanh.pop %v4491
      %v5104 = vtanh.pop %v4492
      %v5105 = vtanh.pop %v4493
      %v5106 = vtanh.pop %v4494
      %v5107 = vtanh.pop %v4495
      %v5108 = vtanh.pop %v4496
      %v5109 = vtanh.pop %v4497
      %v5110 = vtanh.pop %v4498
      %v5111 = vtanh.pop %v4499
      %v5112 = vtanh.pop %v4500
      %v5113 = vtanh.pop %v4501
      %v5114 = vtanh.pop %v4502
      %v5115 = vtanh.pop %v4503
      %5152 = vrot.lane.b32.xlu0 %v5080, 64
      %v5153 = vpop.permute.xlu0 %5152
      %5154 = vrot.lane.b32.xlu0 %v5081, 64
      %v5155 = vpop.permute.xlu0 %5154
      %5156 = vrot.lane.b32.xlu0 %v5082, 64
      %v5157 = vpop.permute.xlu0 %5156
      %5158 = vrot.lane.b32.xlu0 %v5083, 64
      %v5159 = vpop.permute.xlu0 %5158
      %5160 = vrot.lane.b32.xlu0 %v5084, 64
      %v5161 = vpop.permute.xlu0 %5160
      %5162 = vrot.lane.b32.xlu0 %v5085, 64
      %v5163 = vpop.permute.xlu0 %5162
      %5164 = vrot.lane.b32.xlu0 %v5086, 64
      %v5165 = vpop.permute.xlu0 %5164
      %5166 = vrot.lane.b32.xlu0 %v5087, 64
      %v5167 = vpop.permute.xlu0 %5166
      %5168 = vrot.lane.b32.xlu0 %v5088, 64
      %v5169 = vpop.permute.xlu0 %5168
      %5170 = vrot.lane.b32.xlu0 %v5089, 64
      %v5171 = vpop.permute.xlu0 %5170
      %5172 = vrot.lane.b32.xlu0 %v5090, 64
      %v5173 = vpop.permute.xlu0 %5172
      %5174 = vrot.lane.b32.xlu0 %v5091, 64
      %v5175 = vpop.permute.xlu0 %5174
      %5176 = vrot.lane.b32.xlu0 %v5092, 64
      %v5177 = vpop.permute.xlu0 %5176
      %5178 = vrot.lane.b32.xlu0 %v5093, 64
      %v5179 = vpop.permute.xlu0 %5178
      %5180 = vrot.lane.b32.xlu0 %v5094, 64
      %v5181 = vpop.permute.xlu0 %5180
      %5182 = vrot.lane.b32.xlu0 %v5095, 64
      %v5183 = vpop.permute.xlu0 %5182
      %5184 = vrot.lane.b32.xlu0 %v5096, 64
      %v5185 = vpop.permute.xlu0 %5184
      %5186 = vrot.lane.b32.xlu0 %v5097, 64
      %v5187 = vpop.permute.xlu0 %5186
      %5188 = vrot.lane.b32.xlu0 %v5098, 64
      %v5189 = vpop.permute.xlu0 %5188
      %5190 = vrot.lane.b32.xlu0 %v5099, 64
      %v5191 = vpop.permute.xlu0 %5190
      %5192 = vrot.lane.b32.xlu0 %v5100, 64
      %v5193 = vpop.permute.xlu0 %5192
      %5194 = vrot.lane.b32.xlu0 %v5101, 64
      %v5195 = vpop.permute.xlu0 %5194
      %5196 = vrot.lane.b32.xlu0 %v5102, 64
      %v5197 = vpop.permute.xlu0 %5196
      %5198 = vrot.lane.b32.xlu0 %v5103, 64
      %v5199 = vpop.permute.xlu0 %5198
      %5200 = vrot.lane.b32.xlu0 %v5104, 64
      %v5201 = vpop.permute.xlu0 %5200
      %5202 = vrot.lane.b32.xlu0 %v5105, 64
      %v5203 = vpop.permute.xlu0 %5202
      %5204 = vrot.lane.b32.xlu0 %v5106, 64
      %v5205 = vpop.permute.xlu0 %5204
      %5206 = vrot.lane.b32.xlu0 %v5107, 64
      %v5207 = vpop.permute.xlu0 %5206
      %5208 = vrot.lane.b32.xlu0 %v5108, 64
      %v5209 = vpop.permute.xlu0 %5208
      %5210 = vrot.lane.b32.xlu0 %v5109, 64
      %v5211 = vpop.permute.xlu0 %5210
      %5212 = vrot.lane.b32.xlu0 %v5110, 64
      %v5213 = vpop.permute.xlu0 %5212
      %5214 = vrot.lane.b32.xlu0 %v5111, 64
      %v5215 = vpop.permute.xlu0 %5214
      %5216 = vrot.lane.b32.xlu0 %v5112, 64
      %v5217 = vpop.permute.xlu0 %5216
      %5218 = vrot.lane.b32.xlu0 %v5113, 64
      %v5219 = vpop.permute.xlu0 %5218
      %5220 = vrot.lane.b32.xlu0 %v5114, 64
      %v5221 = vpop.permute.xlu0 %5220
      %5222 = vrot.lane.b32.xlu0 %v5115, 64
      %v5223 = vpop.permute.xlu0 %5222
      %v5260 = vmul.f32 %v5009, %v5153
      %v5261 = vmul.f32 %v5011, %v5155
      %v5262 = vmul.f32 %v5013, %v5157
      %v5263 = vmul.f32 %v5015, %v5159
      %v5264 = vmul.f32 %v5017, %v5161
      %v5265 = vmul.f32 %v5019, %v5163
      %v5266 = vmul.f32 %v5021, %v5165
      %v5267 = vmul.f32 %v5023, %v5167
      %v5268 = vmul.f32 %v5025, %v5169
      %v5269 = vmul.f32 %v5027, %v5171
      %v5270 = vmul.f32 %v5029, %v5173
      %v5271 = vmul.f32 %v5031, %v5175
      %v5272 = vmul.f32 %v5033, %v5177
      %v5273 = vmul.f32 %v5035, %v5179
      %v5274 = vmul.f32 %v5037, %v5181
      %v5275 = vmul.f32 %v5039, %v5183
      %v5276 = vmul.f32 %v5041, %v5185
      %v5277 = vmul.f32 %v5043, %v5187
      %v5278 = vmul.f32 %v5045, %v5189
      %v5279 = vmul.f32 %v5047, %v5191
      %v5280 = vmul.f32 %v5049, %v5193
      %v5281 = vmul.f32 %v5051, %v5195
      %v5282 = vmul.f32 %v5053, %v5197
      %v5283 = vmul.f32 %v5055, %v5199
      %v5284 = vmul.f32 %v5057, %v5201
      %v5285 = vmul.f32 %v5059, %v5203
      %v5286 = vmul.f32 %v5061, %v5205
      %v5287 = vmul.f32 %v5063, %v5207
      %v5288 = vmul.f32 %v5065, %v5209
      %v5289 = vmul.f32 %v5067, %v5211
      %v5290 = vmul.f32 %v5069, %v5213
      %v5291 = vmul.f32 %v5071, %v5215
      %v5292 = vmul.f32 %v5073, %v5217
      %v5293 = vmul.f32 %v5075, %v5219
      %v5294 = vmul.f32 %v5077, %v5221
      %v5295 = vmul.f32 %v5079, %v5223
      %5332 = vrot.lane.b32.xlu0 %v5260, 32
      %v5333 = vpop.permute.xlu0 %5332
      %5334 = vrot.lane.b32.xlu0 %v5261, 32
      %v5335 = vpop.permute.xlu0 %5334
      %5336 = vrot.lane.b32.xlu0 %v5262, 32
      %v5337 = vpop.permute.xlu0 %5336
      %5338 = vrot.lane.b32.xlu0 %v5263, 32
      %v5339 = vpop.permute.xlu0 %5338
      %5340 = vrot.lane.b32.xlu0 %v5264, 32
      %v5341 = vpop.permute.xlu0 %5340
      %5342 = vrot.lane.b32.xlu0 %v5265, 32
      %v5343 = vpop.permute.xlu0 %5342
      %5344 = vrot.lane.b32.xlu0 %v5266, 32
      %v5345 = vpop.permute.xlu0 %5344
      %5346 = vrot.lane.b32.xlu0 %v5267, 32
      %v5347 = vpop.permute.xlu0 %5346
      %5348 = vrot.lane.b32.xlu0 %v5268, 32
      %v5349 = vpop.permute.xlu0 %5348
      %5350 = vrot.lane.b32.xlu0 %v5269, 32
      %v5351 = vpop.permute.xlu0 %5350
      %5352 = vrot.lane.b32.xlu0 %v5270, 32
      %v5353 = vpop.permute.xlu0 %5352
      %5354 = vrot.lane.b32.xlu0 %v5271, 32
      %v5355 = vpop.permute.xlu0 %5354
      %5356 = vrot.lane.b32.xlu0 %v5272, 32
      %v5357 = vpop.permute.xlu0 %5356
      %5358 = vrot.lane.b32.xlu0 %v5273, 32
      %v5359 = vpop.permute.xlu0 %5358
      %5360 = vrot.lane.b32.xlu0 %v5274, 32
      %v5361 = vpop.permute.xlu0 %5360
      %5362 = vrot.lane.b32.xlu0 %v5275, 32
      %v5363 = vpop.permute.xlu0 %5362
      %5364 = vrot.lane.b32.xlu0 %v5276, 32
      %v5365 = vpop.permute.xlu0 %5364
      %5366 = vrot.lane.b32.xlu0 %v5277, 32
      %v5367 = vpop.permute.xlu0 %5366
      %5368 = vrot.lane.b32.xlu0 %v5278, 32
      %v5369 = vpop.permute.xlu0 %5368
      %5370 = vrot.lane.b32.xlu0 %v5279, 32
      %v5371 = vpop.permute.xlu0 %5370
      %5372 = vrot.lane.b32.xlu0 %v5280, 32
      %v5373 = vpop.permute.xlu0 %5372
      %5374 = vrot.lane.b32.xlu0 %v5281, 32
      %v5375 = vpop.permute.xlu0 %5374
      %5376 = vrot.lane.b32.xlu0 %v5282, 32
      %v5377 = vpop.permute.xlu0 %5376
      %5378 = vrot.lane.b32.xlu0 %v5283, 32
      %v5379 = vpop.permute.xlu0 %5378
      %5380 = vrot.lane.b32.xlu0 %v5284, 32
      %v5381 = vpop.permute.xlu0 %5380
      %5382 = vrot.lane.b32.xlu0 %v5285, 32
      %v5383 = vpop.permute.xlu0 %5382
      %5384 = vrot.lane.b32.xlu0 %v5286, 32
      %v5385 = vpop.permute.xlu0 %5384
      %5386 = vrot.lane.b32.xlu0 %v5287, 32
      %v5387 = vpop.permute.xlu0 %5386
      %5388 = vrot.lane.b32.xlu0 %v5288, 32
      %v5389 = vpop.permute.xlu0 %5388
      %5390 = vrot.lane.b32.xlu0 %v5289, 32
      %v5391 = vpop.permute.xlu0 %5390
      %5392 = vrot.lane.b32.xlu0 %v5290, 32
      %v5393 = vpop.permute.xlu0 %5392
      %5394 = vrot.lane.b32.xlu0 %v5291, 32
      %v5395 = vpop.permute.xlu0 %5394
      %5396 = vrot.lane.b32.xlu0 %v5292, 32
      %v5397 = vpop.permute.xlu0 %5396
      %5398 = vrot.lane.b32.xlu0 %v5293, 32
      %v5399 = vpop.permute.xlu0 %5398
      %5400 = vrot.lane.b32.xlu0 %v5294, 32
      %v5401 = vpop.permute.xlu0 %5400
      %5402 = vrot.lane.b32.xlu0 %v5295, 32
      %v5403 = vpop.permute.xlu0 %5402
      %vm5440 = vcmask 261120
      %5441 = vst.msk [vmem:[%s279] sm:$0xff] %vm5440, %v5333
      %5442 = vst.msk [vmem:[%s279 + $0x8] sm:$0xff] %vm5440, %v5335
      %5443 = vst.msk [vmem:[%s279 + $0x10] sm:$0xff] %vm5440, %v5337
      %5444 = vst.msk [vmem:[%s279 + $0x18] sm:$0xff] %vm5440, %v5339
      %5445 = vst.msk [vmem:[%s279 + $0x20] sm:$0xff] %vm5440, %v5341
      %5446 = vst.msk [vmem:[%s279 + $0x28] sm:$0xff] %vm5440, %v5343
      %5447 = vst.msk [vmem:[%s279 + $0x30] sm:$0xff] %vm5440, %v5345
      %5448 = vst.msk [vmem:[%s279 + $0x38] sm:$0xff] %vm5440, %v5347
      %5449 = vst.msk [vmem:[%s279 + $0x40] sm:$0xff] %vm5440, %v5349
      %5450 = vst.msk [vmem:[%s279 + $0x48] sm:$0xff] %vm5440, %v5351
      %5451 = vst.msk [vmem:[%s279 + $0x50] sm:$0xff] %vm5440, %v5353
      %5452 = vst.msk [vmem:[%s279 + $0x58] sm:$0xff] %vm5440, %v5355
      %5453 = vst.msk [vmem:[%s279 + $0x60] sm:$0xff] %vm5440, %v5357
      %5454 = vst.msk [vmem:[%s279 + $0x68] sm:$0xff] %vm5440, %v5359
      %5455 = vst.msk [vmem:[%s279 + $0x70] sm:$0xff] %vm5440, %v5361
      %5456 = vst.msk [vmem:[%s279 + $0x78] sm:$0xff] %vm5440, %v5363
      %5457 = vst.msk [vmem:[%s279 + $0x80] sm:$0xff] %vm5440, %v5365
      %5458 = vst.msk [vmem:[%s279 + $0x88] sm:$0xff] %vm5440, %v5367
      %5459 = vst.msk [vmem:[%s279 + $0x90] sm:$0xff] %vm5440, %v5369
      %5460 = vst.msk [vmem:[%s279 + $0x98] sm:$0xff] %vm5440, %v5371
      %5461 = vst.msk [vmem:[%s279 + $0xa0] sm:$0xff] %vm5440, %v5373
      %5462 = vst.msk [vmem:[%s279 + $0xa8] sm:$0xff] %vm5440, %v5375
      %5463 = vst.msk [vmem:[%s279 + $0xb0] sm:$0xff] %vm5440, %v5377
      %5464 = vst.msk [vmem:[%s279 + $0xb8] sm:$0xff] %vm5440, %v5379
      %5465 = vst.msk [vmem:[%s279 + $0xc0] sm:$0xff] %vm5440, %v5381
      %5466 = vst.msk [vmem:[%s279 + $0xc8] sm:$0xff] %vm5440, %v5383
      %5467 = vst.msk [vmem:[%s279 + $0xd0] sm:$0xff] %vm5440, %v5385
      %5468 = vst.msk [vmem:[%s279 + $0xd8] sm:$0xff] %vm5440, %v5387
      %5469 = vst.msk [vmem:[%s279 + $0xe0] sm:$0xff] %vm5440, %v5389
      %5470 = vst.msk [vmem:[%s279 + $0xe8] sm:$0xff] %vm5440, %v5391
      %5471 = vst.msk [vmem:[%s279 + $0xf0] sm:$0xff] %vm5440, %v5393
      %5472 = vst.msk [vmem:[%s279 + $0xf8] sm:$0xff] %vm5440, %v5395
      %5473 = vst.msk [vmem:[%s279 + $0x100] sm:$0xff] %vm5440, %v5397
      %5474 = vst.msk [vmem:[%s279 + $0x108] sm:$0xff] %vm5440, %v5399
      %5475 = vst.msk [vmem:[%s279 + $0x110] sm:$0xff] %vm5440, %v5401
      %5476 = vst.msk [vmem:[%s279 + $0x118] sm:$0xff] %vm5440, %v5403
      %5477 = vrot.lane.b32.xlu0 %v4468, 96
      %v5478 = vpop.permute.xlu0 %5477
      %5479 = vrot.lane.b32.xlu0 %v4469, 96
      %v5480 = vpop.permute.xlu0 %5479
      %5481 = vrot.lane.b32.xlu0 %v4470, 96
      %v5482 = vpop.permute.xlu0 %5481
      %5483 = vrot.lane.b32.xlu0 %v4471, 96
      %v5484 = vpop.permute.xlu0 %5483
      %5485 = vrot.lane.b32.xlu0 %v4472, 96
      %v5486 = vpop.permute.xlu0 %5485
      %5487 = vrot.lane.b32.xlu0 %v4473, 96
      %v5488 = vpop.permute.xlu0 %5487
      %5489 = vrot.lane.b32.xlu0 %v4474, 96
      %v5490 = vpop.permute.xlu0 %5489
      %5491 = vrot.lane.b32.xlu0 %v4475, 96
      %v5492 = vpop.permute.xlu0 %5491
      %5493 = vrot.lane.b32.xlu0 %v4476, 96
      %v5494 = vpop.permute.xlu0 %5493
      %5495 = vrot.lane.b32.xlu0 %v4477, 96
      %v5496 = vpop.permute.xlu0 %5495
      %5497 = vrot.lane.b32.xlu0 %v4478, 96
      %v5498 = vpop.permute.xlu0 %5497
      %5499 = vrot.lane.b32.xlu0 %v4479, 96
      %v5500 = vpop.permute.xlu0 %5499
      %5501 = vrot.lane.b32.xlu0 %v4480, 96
      %v5502 = vpop.permute.xlu0 %5501
      %5503 = vrot.lane.b32.xlu0 %v4481, 96
      %v5504 = vpop.permute.xlu0 %5503
      %5505 = vrot.lane.b32.xlu0 %v4482, 96
      %v5506 = vpop.permute.xlu0 %5505
      %5507 = vrot.lane.b32.xlu0 %v4483, 96
      %v5508 = vpop.permute.xlu0 %5507
      %5509 = vrot.lane.b32.xlu0 %v4484, 96
      %v5510 = vpop.permute.xlu0 %5509
      %5511 = vrot.lane.b32.xlu0 %v4485, 96
      %v5512 = vpop.permute.xlu0 %5511
      %5513 = vrot.lane.b32.xlu0 %v4486, 96
      %v5514 = vpop.permute.xlu0 %5513
      %5515 = vrot.lane.b32.xlu0 %v4487, 96
      %v5516 = vpop.permute.xlu0 %5515
      %5517 = vrot.lane.b32.xlu0 %v4488, 96
      %v5518 = vpop.permute.xlu0 %5517
      %5519 = vrot.lane.b32.xlu0 %v4489, 96
      %v5520 = vpop.permute.xlu0 %5519
      %5521 = vrot.lane.b32.xlu0 %v4490, 96
      %v5522 = vpop.permute.xlu0 %5521
      %5523 = vrot.lane.b32.xlu0 %v4491, 96
      %v5524 = vpop.permute.xlu0 %5523
      %5525 = vrot.lane.b32.xlu0 %v4492, 96
      %v5526 = vpop.permute.xlu0 %5525
      %5527 = vrot.lane.b32.xlu0 %v4493, 96
      %v5528 = vpop.permute.xlu0 %5527
      %5529 = vrot.lane.b32.xlu0 %v4494, 96
      %v5530 = vpop.permute.xlu0 %5529
      %5531 = vrot.lane.b32.xlu0 %v4495, 96
      %v5532 = vpop.permute.xlu0 %5531
      %5533 = vrot.lane.b32.xlu0 %v4496, 96
      %v5534 = vpop.permute.xlu0 %5533
      %5535 = vrot.lane.b32.xlu0 %v4497, 96
      %v5536 = vpop.permute.xlu0 %5535
      %5537 = vrot.lane.b32.xlu0 %v4498, 96
      %v5538 = vpop.permute.xlu0 %5537
      %5539 = vrot.lane.b32.xlu0 %v4499, 96
      %v5540 = vpop.permute.xlu0 %5539
      %5541 = vrot.lane.b32.xlu0 %v4500, 96
      %v5542 = vpop.permute.xlu0 %5541
      %5543 = vrot.lane.b32.xlu0 %v4501, 96
      %v5544 = vpop.permute.xlu0 %5543
      %5545 = vrot.lane.b32.xlu0 %v4502, 96
      %v5546 = vpop.permute.xlu0 %5545
      %5547 = vrot.lane.b32.xlu0 %v4503, 96
      %v5548 = vpop.permute.xlu0 %5547
      %5585 = vst.msk [vmem:[%s284] sm:$0xff] %vm5440, %v5478
      %5586 = vst.msk [vmem:[%s284 + $0x8] sm:$0xff] %vm5440, %v5480
      %5587 = vst.msk [vmem:[%s284 + $0x10] sm:$0xff] %vm5440, %v5482
      %5588 = vst.msk [vmem:[%s284 + $0x18] sm:$0xff] %vm5440, %v5484
      %5589 = vst.msk [vmem:[%s284 + $0x20] sm:$0xff] %vm5440, %v5486
      %5590 = vst.msk [vmem:[%s284 + $0x28] sm:$0xff] %vm5440, %v5488
      %5591 = vst.msk [vmem:[%s284 + $0x30] sm:$0xff] %vm5440, %v5490
      %5592 = vst.msk [vmem:[%s284 + $0x38] sm:$0xff] %vm5440, %v5492
      %5593 = vst.msk [vmem:[%s284 + $0x40] sm:$0xff] %vm5440, %v5494
      %5594 = vst.msk [vmem:[%s284 + $0x48] sm:$0xff] %vm5440, %v5496
      %5595 = vst.msk [vmem:[%s284 + $0x50] sm:$0xff] %vm5440, %v5498
      %5596 = vst.msk [vmem:[%s284 + $0x58] sm:$0xff] %vm5440, %v5500
      %5597 = vst.msk [vmem:[%s284 + $0x60] sm:$0xff] %vm5440, %v5502
      %5598 = vst.msk [vmem:[%s284 + $0x68] sm:$0xff] %vm5440, %v5504
      %5599 = vst.msk [vmem:[%s284 + $0x70] sm:$0xff] %vm5440, %v5506
      %5600 = vst.msk [vmem:[%s284 + $0x78] sm:$0xff] %vm5440, %v5508
      %5601 = vst.msk [vmem:[%s284 + $0x80] sm:$0xff] %vm5440, %v5510
      %5602 = vst.msk [vmem:[%s284 + $0x88] sm:$0xff] %vm5440, %v5512
      %5603 = vst.msk [vmem:[%s284 + $0x90] sm:$0xff] %vm5440, %v5514
      %5604 = vst.msk [vmem:[%s284 + $0x98] sm:$0xff] %vm5440, %v5516
      %5605 = vst.msk [vmem:[%s284 + $0xa0] sm:$0xff] %vm5440, %v5518
      %5606 = vst.msk [vmem:[%s284 + $0xa8] sm:$0xff] %vm5440, %v5520
      %5607 = vst.msk [vmem:[%s284 + $0xb0] sm:$0xff] %vm5440, %v5522
      %5608 = vst.msk [vmem:[%s284 + $0xb8] sm:$0xff] %vm5440, %v5524
      %5609 = vst.msk [vmem:[%s284 + $0xc0] sm:$0xff] %vm5440, %v5526
      %5610 = vst.msk [vmem:[%s284 + $0xc8] sm:$0xff] %vm5440, %v5528
      %5611 = vst.msk [vmem:[%s284 + $0xd0] sm:$0xff] %vm5440, %v5530
      %5612 = vst.msk [vmem:[%s284 + $0xd8] sm:$0xff] %vm5440, %v5532
      %5613 = vst.msk [vmem:[%s284 + $0xe0] sm:$0xff] %vm5440, %v5534
      %5614 = vst.msk [vmem:[%s284 + $0xe8] sm:$0xff] %vm5440, %v5536
      %5615 = vst.msk [vmem:[%s284 + $0xf0] sm:$0xff] %vm5440, %v5538
      %5616 = vst.msk [vmem:[%s284 + $0xf8] sm:$0xff] %vm5440, %v5540
      %5617 = vst.msk [vmem:[%s284 + $0x100] sm:$0xff] %vm5440, %v5542
      %5618 = vst.msk [vmem:[%s284 + $0x108] sm:$0xff] %vm5440, %v5544
      %5619 = vst.msk [vmem:[%s284 + $0x110] sm:$0xff] %vm5440, %v5546
      %5620 = vst.msk [vmem:[%s284 + $0x118] sm:$0xff] %vm5440, %v5548
      %p5621 = scmp.lt.s32.totalorder %s18, 1
      %s5622 = scalar_select %p5621, %s18, 1
      %s5623 = smul.addr %s5622, 36
      %s5624 = smul.addr %s5623, 8
      %s5625 = scalar_lea.vmem %s5, %s5624
      %p5626 = scmp.lt.s32.totalorder %s18, 1
      %s5627 = scalar_select %p5626, %s18, 1
      %s5628 = smul.addr %s5627, 36
      %s5629 = smul.addr %s5628, 8
      %s5630 = scalar_lea.vmem %s6, %s5629
      // Predicated region
      $region41: #{tpu_custom_call.1} parent=39 // pred_check
        %p5631 = pneg %p151
      $region42: #{tpu_custom_call.1} parent=39 // pred_check_branch
        %5633 = sbr.rel (%p5631) target = $region44
      $region43: #{tpu_custom_call.1} parent=39 // pred_region
        _
      $region44: #{tpu_custom_call.1} parent=39 // pred_fallthru
        _
      // Predicated region
      $region45: #{tpu_custom_call.1} parent=39 // pred_check
        %p5634 = pneg %p177
      $region46: #{tpu_custom_call.1} parent=39 // pred_check_branch
        %5636 = sbr.rel (%p5634) target = $region48
      $region47: #{tpu_custom_call.1} parent=39 // pred_region
        _
      $region48: #{tpu_custom_call.1} parent=39 // pred_fallthru
        _
    $region40: #{tpu_custom_call.1} parent=5 // pred_fallthru
      _
    %p5637 = scmp.le.s32.totalorder 2, %s13
    // Predicated region
    $region49: #{tpu_custom_call.1} parent=5 // pred_check
      %p5638 = pneg %p5637
    $region50: #{tpu_custom_call.1} parent=5 // pred_check_branch
      %5640 = sbr.rel (%p5638) target = $region52
    $region51: #{tpu_custom_call.1} parent=5 // pred_region
      %s5641 = ssub.s32 %s13, 2
      // Predicated region
      $region53: #{tpu_custom_call.1} parent=51 // pred_check
        %p5642 = pneg %p157
      $region54: #{tpu_custom_call.1} parent=51 // pred_check_branch
        %5644 = sbr.rel (%p5642) target = $region56
      $region55: #{tpu_custom_call.1} parent=51 // pred_region
        %p5645 = scmp.lt.s32.totalorder %s19, 1
        %s5646 = scalar_select %p5645, %s19, 1
        %s5647 = smul.addr %s5646, 36
        %s5648 = smul.addr %s5647, 8
        %s5649 = scalar_lea.vmem %s5, %s5648
      $region56: #{tpu_custom_call.1} parent=51 // pred_fallthru
        _
      // Predicated region
      $region57: #{tpu_custom_call.1} parent=51 // pred_check
        %p5650 = pneg %p183
      $region58: #{tpu_custom_call.1} parent=51 // pred_check_branch
        %5652 = sbr.rel (%p5650) target = $region60
      $region59: #{tpu_custom_call.1} parent=51 // pred_region
        %p5653 = scmp.lt.s32.totalorder %s19, 1
        %s5654 = scalar_select %p5653, %s19, 1
        %s5655 = smul.addr %s5654, 36
        %s5656 = smul.addr %s5655, 8
        %s5657 = scalar_lea.vmem %s6, %s5656
      $region60: #{tpu_custom_call.1} parent=51 // pred_fallthru
        _
    $region52: #{tpu_custom_call.1} parent=5 // pred_fallthru
      _
  $region6: #{tpu_custom_call.1} parent=0 // loop_footer
    %s17 = sadd.s32 1, %s13
  $region7: #{tpu_custom_call.1} parent=0 // loop_footer_branch
    %12 = sbr.rel target = $region3
  $region8: #{tpu_custom_call.1} parent=0 // loop_exit
    _

</llo_original>
